<compile_context>
chip_gen: v6e
topology: v6e:2x2x1
jax: 0.10.0
libtpu: 0.0.40
codegen_flags: <defaults>
</compile_context>

<pallas_src>
import functools

import jax
import jax.numpy as jnp
from jax.experimental import pallas as pl
from jax.experimental.pallas import tpu as pltpu

EPS = 1e-5                       # PyTorch BatchNorm default eps
VMEM_LIMIT = 48 * 1024 * 1024    # headroom under v7x's 64 MiB physical VMEM


# ----------------------------------------------------------------------------
# helpers
# ----------------------------------------------------------------------------
def _round_up(x, m):
    return (x + m - 1) // m * m


def _pad2d(a, rows, cols, value=0.0):
    r, c = a.shape
    if r == rows and c == cols:
        return a
    return jnp.pad(a, ((0, rows - r), (0, cols - c)), constant_values=value)


# ----------------------------------------------------------------------------
# Kernel A: tiled  y = leaky_relu(x @ w + b)
#   grid = (M tiles, N tiles, K tiles), K innermost reduction, f32 accumulator.
# ----------------------------------------------------------------------------
def _mm_bias_lrelu_kernel(x_ref, w_ref, b_ref, o_ref, acc_ref):
    @pl.when(pl.program_id(2) == 0)
    def _():
        acc_ref[...] = jnp.zeros_like(acc_ref)

    acc_ref[...] += jnp.dot(x_ref[...], w_ref[...],
                            preferred_element_type=jnp.float32)

    @pl.when(pl.program_id(2) == pl.num_programs(2) - 1)
    def _():
        y = acc_ref[...] + b_ref[...]
        y = jnp.where(y >= 0.0, y, 0.2 * y)
        o_ref[...] = y.astype(o_ref.dtype)


def matmul_bias_lrelu(x, w, b, *, out_dtype=jnp.bfloat16,
                      tm=512, tn=512, tk=1024):
    """leaky_relu(x @ w + b); (M,N,K)-tiled, bf16 operands, f32 accumulation."""
    M, K = x.shape
    N = w.shape[1]
    tm = min(tm, _round_up(M, 8))
    tn = min(tn, _round_up(N, 128))
    tk = min(tk, _round_up(K, 128))
    Mp, Np, Kp = _round_up(M, tm), _round_up(N, tn), _round_up(K, tk)

    xp = _pad2d(x.astype(jnp.bfloat16), Mp, Kp)
    wp = _pad2d(w.astype(jnp.bfloat16), Kp, Np)
    bp = _pad2d(b.reshape(1, -1).astype(jnp.float32), 1, Np)

    out = pl.pallas_call(
        _mm_bias_lrelu_kernel,
        out_shape=jax.ShapeDtypeStruct((Mp, Np), out_dtype),
        grid_spec=pltpu.PrefetchScalarGridSpec(
            num_scalar_prefetch=0,
            grid=(Mp // tm, Np // tn, Kp // tk),
            in_specs=[
                pl.BlockSpec((tm, tk), lambda i, j, k: (i, k)),
                pl.BlockSpec((tk, tn), lambda i, j, k: (k, j)),
                pl.BlockSpec((1, tn), lambda i, j, k: (0, j)),
            ],
            out_specs=pl.BlockSpec((tm, tn), lambda i, j, k: (i, j)),
            scratch_shapes=[pltpu.VMEM((tm, tn), jnp.float32)],
        ),
        compiler_params=pltpu.CompilerParams(
            dimension_semantics=("parallel", "parallel", "arbitrary"),
            vmem_limit_bytes=VMEM_LIMIT),
    )(xp, wp, bp)
    return out[:M, :N]


# ----------------------------------------------------------------------------
# Kernel B (pass 1): tiled  y = x @ w + b  plus per-M-tile column statistics.
#   grid = (M tiles, N tiles, K tiles).  Stats come from the f32 accumulator.
# ----------------------------------------------------------------------------
def _mm_bias_stats_kernel(x_ref, w_ref, b_ref, y_ref, sum_ref, sq_ref, acc_ref):
    @pl.when(pl.program_id(2) == 0)
    def _():
        acc_ref[...] = jnp.zeros_like(acc_ref)

    acc_ref[...] += jnp.dot(x_ref[...], w_ref[...],
                            preferred_element_type=jnp.float32)

    @pl.when(pl.program_id(2) == pl.num_programs(2) - 1)
    def _():
        y = acc_ref[...] + b_ref[...]
        y_ref[...] = y
        s = jnp.sum(y, axis=0, keepdims=True)          # (1, tn)
        q = jnp.sum(y * y, axis=0, keepdims=True)      # (1, tn)
        sum_ref[...] = s[None, :, :]
        sq_ref[...] = q[None, :, :]


# ----------------------------------------------------------------------------
# Kernel B (pass 2): elementwise  o = leaky_relu(y * scale + shift)
# ----------------------------------------------------------------------------
def _scale_shift_lrelu_kernel(y_ref, s_ref, t_ref, o_ref):
    y = y_ref[...] * s_ref[...] + t_ref[...]
    o_ref[...] = jnp.where(y >= 0.0, y, 0.2 * y).astype(o_ref.dtype)


def matmul_bias_bn_lrelu(x, w, b, gamma, beta, *, out_dtype=jnp.bfloat16,
                         tm=512, tn=128, tk=1024):
    """leaky_relu(batchnorm(x @ w + b)), training-mode BN (batch stats).

    Two-pass, fully M-tiled: no full-batch VMEM residency."""
    M, K = x.shape
    N = w.shape[1]
    tm = min(tm, _round_up(M, 8))
    tn = min(tn, _round_up(N, 128))
    tk = min(tk, _round_up(K, 128))
    Mp, Np, Kp = _round_up(M, tm), _round_up(N, tn), _round_up(K, tk)
    n_mt = Mp // tm

    xp = _pad2d(x.astype(jnp.bfloat16), Mp, Kp)
    wp = _pad2d(w.astype(jnp.bfloat16), Kp, Np)
    bp = _pad2d(b.reshape(1, -1).astype(jnp.float32), 1, Np)

    y_pre, psum, psq = pl.pallas_call(
        _mm_bias_stats_kernel,
        out_shape=(jax.ShapeDtypeStruct((Mp, Np), jnp.float32),
                   jax.ShapeDtypeStruct((n_mt, 1, Np), jnp.float32),
                   jax.ShapeDtypeStruct((n_mt, 1, Np), jnp.float32)),
        grid_spec=pltpu.PrefetchScalarGridSpec(
            num_scalar_prefetch=0,
            grid=(n_mt, Np // tn, Kp // tk),
            in_specs=[
                pl.BlockSpec((tm, tk), lambda i, j, k: (i, k)),
                pl.BlockSpec((tk, tn), lambda i, j, k: (k, j)),
                pl.BlockSpec((1, tn), lambda i, j, k: (0, j)),
            ],
            out_specs=[
                pl.BlockSpec((tm, tn), lambda i, j, k: (i, j)),
                pl.BlockSpec((1, 1, tn), lambda i, j, k: (i, 0, j)),
                pl.BlockSpec((1, 1, tn), lambda i, j, k: (i, 0, j)),
            ],
            scratch_shapes=[pltpu.VMEM((tm, tn), jnp.float32)],
        ),
        compiler_params=pltpu.CompilerParams(
            dimension_semantics=("parallel", "parallel", "arbitrary"),
            vmem_limit_bytes=VMEM_LIMIT),
    )(xp, wp, bp)

    # Finalize batch statistics (tiny (N,) vectors, XLA-side).  Padded rows of
    # x are exactly zero, so their pass-1 outputs equal the bias: subtract
    # their exact contribution instead of masking inside the kernel.
    n_pad = Mp - M
    bias_vec = bp[0]
    col_sum = jnp.sum(psum, axis=0)[0] - n_pad * bias_vec
    col_sq = jnp.sum(psq, axis=0)[0] - n_pad * bias_vec * bias_vec
    mu = col_sum / M
    var = jnp.maximum(col_sq / M - mu * mu, 0.0)        # biased variance
    gp = _pad2d(gamma.reshape(1, -1).astype(jnp.float32), 1, Np, value=1.0)
    bep = _pad2d(beta.reshape(1, -1).astype(jnp.float32), 1, Np)
    scale = gp * jax.lax.rsqrt(var + EPS)[None, :]
    shift = bep - mu[None, :] * scale

    out = pl.pallas_call(
        _scale_shift_lrelu_kernel,
        out_shape=jax.ShapeDtypeStruct((Mp, Np), out_dtype),
        grid_spec=pltpu.PrefetchScalarGridSpec(
            num_scalar_prefetch=0,
            grid=(n_mt, Np // tn),
            in_specs=[
                pl.BlockSpec((tm, tn), lambda i, j: (i, j)),
                pl.BlockSpec((1, tn), lambda i, j: (0, j)),
                pl.BlockSpec((1, tn), lambda i, j: (0, j)),
            ],
            out_specs=pl.BlockSpec((tm, tn), lambda i, j: (i, j)),
        ),
        compiler_params=pltpu.CompilerParams(
            dimension_semantics=("parallel", "parallel"),
            vmem_limit_bytes=VMEM_LIMIT),
    )(y_pre, scale, shift)
    return out[:M, :N]


# ----------------------------------------------------------------------------
# Kernel C: fused fc head
#   sigmoid( leaky_relu(batchnorm1d(x @ w1 + b1)) @ w2 + b2 )
#   grid = (K tiles,); full batch (small) and the full 1024-wide feature tile
#   stay resident, so the (B,1024) activation never touches HBM.
# ----------------------------------------------------------------------------
def _fc_bn_lrelu_head_kernel(x_ref, w1_ref, b1_ref, g_ref, be_ref,
                             w2_ref, b2_ref, o_ref, acc_ref):
    @pl.when(pl.program_id(0) == 0)
    def _():
        acc_ref[...] = jnp.zeros_like(acc_ref)

    acc_ref[...] += jnp.dot(x_ref[...], w1_ref[...],
                            preferred_element_type=jnp.float32)

    @pl.when(pl.program_id(0) == pl.num_programs(0) - 1)
    def _():
        y = acc_ref[...] + b1_ref[...]
        mu = jnp.mean(y, axis=0, keepdims=True)                 # batch stats
        var = jnp.mean((y - mu) ** 2, axis=0, keepdims=True)    # biased var
        y = (y - mu) * jax.lax.rsqrt(var + EPS) * g_ref[...] + be_ref[...]
        y = jnp.where(y >= 0.0, y, 0.2 * y)
        z = jnp.dot(y.astype(jnp.bfloat16), w2_ref[...],
                    preferred_element_type=jnp.float32) + b2_ref[...]
        s = pl.reciprocal(1.0 + jnp.exp(-z), approx=True)        # EUP sigmoid
        o_ref[...] = jnp.clip(s, 0.0, 1.0).astype(o_ref.dtype)


def fc_bn_lrelu_sigmoid_head(x, w1, b1, gamma, beta, w2, b2, *,
                             out_dtype=jnp.float32, tk=512):
    B, K = x.shape
    H = w1.shape[1]
    N = w2.shape[1]
    tk = min(tk, _round_up(K, 128))
    Kp = _round_up(K, tk)
    Hp = _round_up(H, 128)
    Np = _round_up(N, 128)

    xp = _pad2d(x.astype(jnp.bfloat16), B, Kp)
    w1p = _pad2d(w1.astype(jnp.bfloat16), Kp, Hp)
    b1p = _pad2d(b1.reshape(1, -1).astype(jnp.float32), 1, Hp)
    gp = _pad2d(gamma.reshape(1, -1).astype(jnp.float32), 1, Hp, value=1.0)
    bep = _pad2d(beta.reshape(1, -1).astype(jnp.float32), 1, Hp)
    w2p = _pad2d(w2.astype(jnp.bfloat16), Hp, Np)
    b2p = _pad2d(b2.reshape(1, -1).astype(jnp.float32), 1, Np)

    out = pl.pallas_call(
        _fc_bn_lrelu_head_kernel,
        out_shape=jax.ShapeDtypeStruct((B, Np), out_dtype),
        grid_spec=pltpu.PrefetchScalarGridSpec(
            num_scalar_prefetch=0,
            grid=(Kp // tk,),
            in_specs=[
                pl.BlockSpec((B, tk), lambda k: (0, k)),
                pl.BlockSpec((tk, Hp), lambda k: (k, 0)),
                pl.BlockSpec((1, Hp), lambda k: (0, 0)),
                pl.BlockSpec((1, Hp), lambda k: (0, 0)),
                pl.BlockSpec((1, Hp), lambda k: (0, 0)),
                pl.BlockSpec((Hp, Np), lambda k: (0, 0)),
                pl.BlockSpec((1, Np), lambda k: (0, 0)),
            ],
            out_specs=pl.BlockSpec((B, Np), lambda k: (0, 0)),
            scratch_shapes=[pltpu.VMEM((B, Hp), jnp.float32)],
        ),
        compiler_params=pltpu.CompilerParams(
            dimension_semantics=("arbitrary",),
            vmem_limit_bytes=VMEM_LIMIT),
    )(xp, w1p, b1p, gp, bep, w2p, b2p)
    return out[:, :N]


# ----------------------------------------------------------------------------
# im2col (XLA-side, kept bf16 and fused inside the same jit)
# ----------------------------------------------------------------------------
def _im2col(x_nhwc, k, s, p):
    """(B,H,W,C) -> ((B*Ho*Wo), k*k*C) patches for a kxk, stride-s, pad-p conv.
    Patch channel order is (kh, kw, c), rows ordered (b, oh, ow)."""
    B, H, W, C = x_nhwc.shape
    Ho = (H + 2 * p - k) // s + 1
    Wo = (W + 2 * p - k) // s + 1
    xp = jnp.pad(x_nhwc, ((0, 0), (p, p), (p, p), (0, 0)))
    cols = []
    for kh in range(k):
        for kw in range(k):
            cols.append(xp[:, kh:kh + s * Ho:s, kw:kw + s * Wo:s, :])
    patches = jnp.concatenate(cols, axis=-1)          # (B, Ho, Wo, k*k*C)
    return patches.reshape(B * Ho * Wo, k * k * C), Ho, Wo


# ----------------------------------------------------------------------------
# Parameter init (mirrors utils.initialize_weights: N(0,.02) weights, zero
# biases, BN gamma ~ N(1,.02), BN beta = 0).  PyTorch layouts kept.
# ----------------------------------------------------------------------------
def init_discriminator_params(key, input_dim, output_dim, input_size,
                              class_num):
    s4 = input_size // 4
    fc_in = 128 * s4 * s4
    ks = jax.random.split(key, 6)

    def nrm(k, shape, std=0.02):
        return std * jax.random.normal(k, shape, jnp.float32)

    return dict(
        wc1=nrm(ks[0], (64, input_dim + class_num, 4, 4)),  # Conv (Co,Ci,kH,kW)
        bc1=jnp.zeros((64,), jnp.float32),
        wc2=nrm(ks[1], (128, 64, 4, 4)),
        bc2=jnp.zeros((128,), jnp.float32),
        gc2=1.0 + nrm(ks[2], (128,)),                        # BatchNorm2d(128)
        bec2=jnp.zeros((128,), jnp.float32),
        wf1=nrm(ks[3], (1024, fc_in)),                       # Linear (out,in)
        bf1=jnp.zeros((1024,), jnp.float32),
        gf1=1.0 + nrm(ks[4], (1024,)),                       # BatchNorm1d(1024)
        bef1=jnp.zeros((1024,), jnp.float32),
        wf2=nrm(ks[5], (output_dim, 1024)),
        bf2=jnp.zeros((output_dim,), jnp.float32),
    )


def discriminator_forward(params, image, label, input_size):
    """image: (B, input_dim, H, W), label: (B, class_num, H, W) (NCHW, like
    the PyTorch module).  Returns (B, output_dim) sigmoid probabilities."""
    B = image.shape[0]
    s4 = input_size // 4

    x = jnp.concatenate([image, label], axis=1)        # (B, Cin, H, W)
    x = jnp.transpose(x, (0, 2, 3, 1)).astype(jnp.bfloat16)  # NCHW -> NHWC

    # --- Conv2d(Cin, 64, 4, 2, 1) + LeakyReLU(0.2) ---------------------------
    patches1, Ho1, Wo1 = _im2col(x, 4, 2, 1)           # (B*Ho1*Wo1, 16*Cin)
    w1 = jnp.transpose(params['wc1'], (2, 3, 1, 0)).reshape(-1, 64)
    h = matmul_bias_lrelu(patches1, w1, params['bc1'],
                          out_dtype=jnp.bfloat16, tm=1024)
    h = h.reshape(B, Ho1, Wo1, 64)

    # --- Conv2d(64, 128, 4, 2, 1) + BatchNorm2d + LeakyReLU(0.2) -------------
    # TODO(synk): im2col still materializes a 4x-expanded patch matrix in HBM
    # (kept bf16, fused in this jit); an in-kernel tap gather would remove the
    # read amplification on low-HBM-BW parts (v5e).
    patches2, Ho2, Wo2 = _im2col(h, 4, 2, 1)           # (B*Ho2*Wo2, 1024)
    w2 = jnp.transpose(params['wc2'], (2, 3, 1, 0)).reshape(-1, 128)
    h = matmul_bias_bn_lrelu(patches2, w2, params['bc2'], params['gc2'],
                             params['bec2'], out_dtype=jnp.bfloat16)
    # rows are (b, oh, ow) with channels last -> contiguous flatten (no
    # transpose); fc1 weight rows are permuted once to match this order.
    h = h.reshape(B, Ho2 * Wo2 * 128)                  # (B, 128*s4*s4)

    # --- Linear + BatchNorm1d + LeakyReLU + Linear + Sigmoid, fused ----------
    # torch .view flattens NCHW as (c, h, w); our activation is (h, w, c).
    wf1 = params['wf1'].T.reshape(128, s4, s4, 1024)   # rows indexed (c, h, w)
    wf1 = jnp.transpose(wf1, (1, 2, 0, 3)).reshape(s4 * s4 * 128, 1024)
    out = fc_bn_lrelu_sigmoid_head(h, wf1, params['bf1'], params['gf1'],
                                   params['bef1'], params['wf2'].T,
                                   params['bf2'], out_dtype=jnp.float32)
    return out                                          # (B, output_dim)


# TODO(synk): BatchNorm running_mean/running_var buffer updates are not
# modeled (forward-only kernel using batch statistics).

if __name__ == "__main__":
    key = jax.random.PRNGKey(0)
    kp, kx, kl = jax.random.split(key, 3)

    # Small shapes consistent with the module: input_size=16 -> fc_in = 2048.
    B, input_dim, output_dim, input_size, class_num = 2, 1, 1, 16, 8

    params = init_discriminator_params(kp, input_dim, output_dim, input_size,
                                       class_num)
    image = jax.random.normal(kx, (B, input_dim, input_size, input_size),
                              jnp.float32)
    label_idx = jax.random.randint(kl, (B,), 0, class_num)
    # CGAN "fill" tensor: one-hot label broadcast over the spatial map.
    label = jax.nn.one_hot(label_idx, class_num, dtype=jnp.float32)
    label = jnp.broadcast_to(label[:, :, None, None],
                             (B, class_num, input_size, input_size))

    fwd = jax.jit(functools.partial(discriminator_forward,
                                    input_size=input_size))
    out = jax.block_until_ready(fwd(params, image, label))

    assert out.shape == (B, output_dim), out.shape
    assert bool(jnp.all(jnp.isfinite(out)))
    assert bool(jnp.all((out >= 0.0) & (out <= 1.0)))
    print("KERNEL_OK")
</pallas_src>

<mosaic_0001>
module attributes {stable_mosaic.version = 11 : i64} {
  func.func @_mm_bias_lrelu_kernel(%arg0: i32, %arg1: i32, %arg2: i32, %arg3: memref<128x256xbf16, #tpu.memory_space<vmem>>, %arg4: memref<256x128xbf16, #tpu.memory_space<vmem>>, %arg5: memref<1x128xf32, #tpu.memory_space<vmem>>, %arg6: memref<128x128xbf16, #tpu.memory_space<vmem>>, %arg7: memref<128x128xf32, #tpu.memory_space<vmem>>) attributes {dimension_semantics = [#tpu.dimension_semantics<parallel>, #tpu.dimension_semantics<parallel>, #tpu.dimension_semantics<arbitrary>], iteration_bounds = array<i64: 1, 1, 1>, scalar_prefetch = 0 : i64, scratch_operands = 1 : i64, tpu.core_type = #tpu.core_type<tc>, window_params = [{transform_indices = @transform_0, window_bounds = array<i64: 128, 256>}, {transform_indices = @transform_1, window_bounds = array<i64: 256, 128>}, {transform_indices = @transform_2, window_bounds = array<i64: 1, 128>}, {transform_indices = @transform_3, window_bounds = array<i64: 128, 128>}]} {
    %c0_i32 = arith.constant 0 : i32
    %0 = arith.cmpi eq, %arg2, %c0_i32 : i32
    %1 = arith.extui %0 : i1 to i32
    %c0_i32_0 = arith.constant 0 : i32
    %2 = arith.cmpi ne, %1, %c0_i32_0 : i32
    scf.if %2 {
      %cst_10 = arith.constant 0.000000e+00 : f32
      %12 = vector.broadcast %cst_10 : f32 to vector<128x128xf32>
      %c0_11 = arith.constant 0 : index
      %c0_12 = arith.constant 0 : index
      %13 = vector.load %arg7[%c0_11, %c0_12] : memref<128x128xf32, #tpu.memory_space<vmem>>, vector<128x128xf32>
      tpu.vector_store %arg7[%c0_11, %c0_12], %12 {strides = array<i32>} : memref<128x128xf32, #tpu.memory_space<vmem>>, vector<128x128xf32>,
    } else {
    }
    %c0 = arith.constant 0 : index
    %c0_1 = arith.constant 0 : index
    %3 = vector.load %arg7[%c0, %c0_1] : memref<128x128xf32, #tpu.memory_space<vmem>>, vector<128x128xf32>
    %c0_2 = arith.constant 0 : index
    %c0_3 = arith.constant 0 : index
    %4 = vector.load %arg3[%c0_2, %c0_3] : memref<128x256xbf16, #tpu.memory_space<vmem>>, vector<128x256xbf16>
    %c0_4 = arith.constant 0 : index
    %c0_5 = arith.constant 0 : index
    %5 = vector.load %arg4[%c0_4, %c0_5] : memref<256x128xbf16, #tpu.memory_space<vmem>>, vector<256x128xbf16>
    %cst = arith.constant dense<0.000000e+00> : vector<128x128xf32>
    %6 = tpu.matmul %4, %5, %cst {dimension_numbers = #tpu.dot_dimension_numbers<[1], [0], [0], [1], [0, 0, 1, 1], [], []>} : vector<128x256xbf16>, vector<256x128xbf16>, vector<128x128xf32> -> vector<128x128xf32>
    %7 = arith.addf %3, %6 : vector<128x128xf32>
    %c0_6 = arith.constant 0 : index
    %c0_7 = arith.constant 0 : index
    %8 = vector.load %arg7[%c0_6, %c0_7] : memref<128x128xf32, #tpu.memory_space<vmem>>, vector<128x128xf32>
    tpu.vector_store %arg7[%c0_6, %c0_7], %7 {strides = array<i32>} : memref<128x128xf32, #tpu.memory_space<vmem>>, vector<128x128xf32>,
    %c0_i32_8 = arith.constant 0 : i32
    %9 = arith.cmpi eq, %arg2, %c0_i32_8 : i32
    %10 = arith.extui %9 : i1 to i32
    %c0_i32_9 = arith.constant 0 : i32
    %11 = arith.cmpi ne, %10, %c0_i32_9 : i32
    scf.if %11 {
      %c0_10 = arith.constant 0 : index
      %c0_11 = arith.constant 0 : index
      %12 = vector.load %arg7[%c0_10, %c0_11] : memref<128x128xf32, #tpu.memory_space<vmem>>, vector<128x128xf32>
      %c0_12 = arith.constant 0 : index
      %c0_13 = arith.constant 0 : index
      %13 = vector.load %arg5[%c0_12, %c0_13] : memref<1x128xf32, #tpu.memory_space<vmem>>, vector<1x128xf32>
      %14 = vector.broadcast %13 : vector<1x128xf32> to vector<128x128xf32>
      %15 = arith.addf %12, %14 : vector<128x128xf32>
      %cst_14 = arith.constant 0.000000e+00 : f32
      %16 = vector.broadcast %cst_14 : f32 to vector<128x128xf32>
      %17 = arith.cmpf oge, %15, %16 : vector<128x128xf32>
      %cst_15 = arith.constant 2.000000e-01 : f32
      %18 = vector.broadcast %cst_15 : f32 to vector<128x128xf32>
      %19 = arith.mulf %18, %15 : vector<128x128xf32>
      %20 = arith.select %17, %15, %19 : vector<128x128xi1>, vector<128x128xf32>
      %21 = arith.truncf %20 : vector<128x128xf32> to vector<128x128xbf16>
      %c0_16 = arith.constant 0 : index
      %c0_17 = arith.constant 0 : index
      %22 = vector.load %arg6[%c0_16, %c0_17] : memref<128x128xbf16, #tpu.memory_space<vmem>>, vector<128x128xbf16>
      tpu.vector_store %arg6[%c0_16, %c0_17], %21 {strides = array<i32>} : memref<128x128xbf16, #tpu.memory_space<vmem>>, vector<128x128xbf16>,
    } else {
    }
    return
  }
  func.func @transform_0(%arg0: i32, %arg1: i32, %arg2: i32) -> (i32, i32) {
    %c0_i32 = arith.constant 0 : i32
    return %arg0, %arg2 : i32, i32
  }
  func.func @transform_1(%arg0: i32, %arg1: i32, %arg2: i32) -> (i32, i32) {
    %c0_i32 = arith.constant 0 : i32
    return %arg2, %arg1 : i32, i32
  }
  func.func @transform_2(%arg0: i32, %arg1: i32, %arg2: i32) -> (i32, i32) {
    %c0_i32 = arith.constant 0 : i32
    %c0_i32_0 = arith.constant 0 : i32
    return %c0_i32, %arg1 : i32, i32
  }
  func.func @transform_3(%arg0: i32, %arg1: i32, %arg2: i32) -> (i32, i32) {
    %c0_i32 = arith.constant 0 : i32
    return %arg0, %arg1 : i32, i32
  }
}

module attributes {stable_mosaic.version = 11 : i64} {
  func.func @_mm_bias_stats_kernel(%arg0: i32, %arg1: i32, %arg2: i32, %arg3: memref<32x1024xbf16, #tpu.memory_space<vmem>>, %arg4: memref<1024x128xbf16, #tpu.memory_space<vmem>>, %arg5: memref<1x128xf32, #tpu.memory_space<vmem>>, %arg6: memref<32x128xf32, #tpu.memory_space<vmem>>, %arg7: memref<1x1x128xf32, #tpu.memory_space<vmem>>, %arg8: memref<1x1x128xf32, #tpu.memory_space<vmem>>, %arg9: memref<32x128xf32, #tpu.memory_space<vmem>>) attributes {dimension_semantics = [#tpu.dimension_semantics<parallel>, #tpu.dimension_semantics<parallel>, #tpu.dimension_semantics<arbitrary>], iteration_bounds = array<i64: 1, 1, 1>, scalar_prefetch = 0 : i64, scratch_operands = 1 : i64, tpu.core_type = #tpu.core_type<tc>, window_params = [{transform_indices = @transform_0, window_bounds = array<i64: 32, 1024>}, {transform_indices = @transform_1, window_bounds = array<i64: 1024, 128>}, {transform_indices = @transform_2, window_bounds = array<i64: 1, 128>}, {transform_indices = @transform_3, window_bounds = array<i64: 32, 128>}, {transform_indices = @transform_4, window_bounds = array<i64: 1, 1, 128>}, {transform_indices = @transform_5, window_bounds = array<i64: 1, 1, 128>}]} {
    %c0_i32 = arith.constant 0 : i32
    %0 = arith.cmpi eq, %arg2, %c0_i32 : i32
    %1 = arith.extui %0 : i1 to i32
    %c0_i32_0 = arith.constant 0 : i32
    %2 = arith.cmpi ne, %1, %c0_i32_0 : i32
    scf.if %2 {
      %cst_10 = arith.constant 0.000000e+00 : f32
      %12 = vector.broadcast %cst_10 : f32 to vector<32x128xf32>
      %c0_11 = arith.constant 0 : index
      %c0_12 = arith.constant 0 : index
      %13 = vector.load %arg9[%c0_11, %c0_12] : memref<32x128xf32, #tpu.memory_space<vmem>>, vector<32x128xf32>
      tpu.vector_store %arg9[%c0_11, %c0_12], %12 {strides = array<i32>} : memref<32x128xf32, #tpu.memory_space<vmem>>, vector<32x128xf32>,
    } else {
    }
    %c0 = arith.constant 0 : index
    %c0_1 = arith.constant 0 : index
    %3 = vector.load %arg9[%c0, %c0_1] : memref<32x128xf32, #tpu.memory_space<vmem>>, vector<32x128xf32>
    %c0_2 = arith.constant 0 : index
    %c0_3 = arith.constant 0 : index
    %4 = vector.load %arg3[%c0_2, %c0_3] : memref<32x1024xbf16, #tpu.memory_space<vmem>>, vector<32x1024xbf16>
    %c0_4 = arith.constant 0 : index
    %c0_5 = arith.constant 0 : index
    %5 = vector.load %arg4[%c0_4, %c0_5] : memref<1024x128xbf16, #tpu.memory_space<vmem>>, vector<1024x128xbf16>
    %cst = arith.constant dense<0.000000e+00> : vector<32x128xf32>
    %6 = tpu.matmul %4, %5, %cst {dimension_numbers = #tpu.dot_dimension_numbers<[1], [0], [0], [1], [0, 0, 1, 1], [], []>} : vector<32x1024xbf16>, vector<1024x128xbf16>, vector<32x128xf32> -> vector<32x128xf32>
    %7 = arith.addf %3, %6 : vector<32x128xf32>
    %c0_6 = arith.constant 0 : index
    %c0_7 = arith.constant 0 : index
    %8 = vector.load %arg9[%c0_6, %c0_7] : memref<32x128xf32, #tpu.memory_space<vmem>>, vector<32x128xf32>
    tpu.vector_store %arg9[%c0_6, %c0_7], %7 {strides = array<i32>} : memref<32x128xf32, #tpu.memory_space<vmem>>, vector<32x128xf32>,
    %c0_i32_8 = arith.constant 0 : i32
    %9 = arith.cmpi eq, %arg2, %c0_i32_8 : i32
    %10 = arith.extui %9 : i1 to i32
    %c0_i32_9 = arith.constant 0 : i32
    %11 = arith.cmpi ne, %10, %c0_i32_9 : i32
    scf.if %11 {
      %c0_10 = arith.constant 0 : index
      %c0_11 = arith.constant 0 : index
      %12 = vector.load %arg9[%c0_10, %c0_11] : memref<32x128xf32, #tpu.memory_space<vmem>>, vector<32x128xf32>
      %c0_12 = arith.constant 0 : index
      %c0_13 = arith.constant 0 : index
      %13 = vector.load %arg5[%c0_12, %c0_13] : memref<1x128xf32, #tpu.memory_space<vmem>>, vector<1x128xf32>
      %14 = vector.broadcast %13 : vector<1x128xf32> to vector<32x128xf32>
      %15 = arith.addf %12, %14 : vector<32x128xf32>
      %c0_14 = arith.constant 0 : index
      %c0_15 = arith.constant 0 : index
      %16 = vector.load %arg6[%c0_14, %c0_15] : memref<32x128xf32, #tpu.memory_space<vmem>>, vector<32x128xf32>
      tpu.vector_store %arg6[%c0_14, %c0_15], %15 {strides = array<i32>} : memref<32x128xf32, #tpu.memory_space<vmem>>, vector<32x128xf32>,
      %cst_16 = arith.constant dense<0.000000e+00> : vector<128xf32>
      %17 = vector.multi_reduction <add>, %15, %cst_16 [0] : vector<32x128xf32> to vector<128xf32>
      %18 = vector.shape_cast %17 : vector<128xf32> to vector<1x128xf32>
      %19 = arith.mulf %15, %15 : vector<32x128xf32>
      %cst_17 = arith.constant dense<0.000000e+00> : vector<128xf32>
      %20 = vector.multi_reduction <add>, %19, %cst_17 [0] : vector<32x128xf32> to vector<128xf32>
      %21 = vector.shape_cast %20 : vector<128xf32> to vector<1x128xf32>
      %22 = vector.shape_cast %18 : vector<1x128xf32> to vector<1x1x128xf32>
      %c0_18 = arith.constant 0 : index
      %c0_19 = arith.constant 0 : index
      %c0_20 = arith.constant 0 : index
      %23 = vector.load %arg7[%c0_18, %c0_19, %c0_20] : memref<1x1x128xf32, #tpu.memory_space<vmem>>, vector<1x1x128xf32>
      tpu.vector_store %arg7[%c0_18, %c0_19, %c0_20], %22 {strides = array<i32>} : memref<1x1x128xf32, #tpu.memory_space<vmem>>, vector<1x1x128xf32>,
      %24 = vector.shape_cast %21 : vector<1x128xf32> to vector<1x1x128xf32>
      %c0_21 = arith.constant 0 : index
      %c0_22 = arith.constant 0 : index
      %c0_23 = arith.constant 0 : index
      %25 = vector.load %arg8[%c0_21, %c0_22, %c0_23] : memref<1x1x128xf32, #tpu.memory_space<vmem>>, vector<1x1x128xf32>
      tpu.vector_store %arg8[%c0_21, %c0_22, %c0_23], %24 {strides = array<i32>} : memref<1x1x128xf32, #tpu.memory_space<vmem>>, vector<1x1x128xf32>,
    } else {
    }
    return
  }
  func.func @transform_0(%arg0: i32, %arg1: i32, %arg2: i32) -> (i32, i32) {
    %c0_i32 = arith.constant 0 : i32
    return %arg0, %arg2 : i32, i32
  }
  func.func @transform_1(%arg0: i32, %arg1: i32, %arg2: i32) -> (i32, i32) {
    %c0_i32 = arith.constant 0 : i32
    return %arg2, %arg1 : i32, i32
  }
  func.func @transform_2(%arg0: i32, %arg1: i32, %arg2: i32) -> (i32, i32) {
    %c0_i32 = arith.constant 0 : i32
    %c0_i32_0 = arith.constant 0 : i32
    return %c0_i32, %arg1 : i32, i32
  }
  func.func @transform_3(%arg0: i32, %arg1: i32, %arg2: i32) -> (i32, i32) {
    %c0_i32 = arith.constant 0 : i32
    return %arg0, %arg1 : i32, i32
  }
  func.func @transform_4(%arg0: i32, %arg1: i32, %arg2: i32) -> (i32, i32, i32) {
    %c0_i32 = arith.constant 0 : i32
    %c0_i32_0 = arith.constant 0 : i32
    return %arg0, %c0_i32, %arg1 : i32, i32, i32
  }
  func.func @transform_5(%arg0: i32, %arg1: i32, %arg2: i32) -> (i32, i32, i32) {
    %c0_i32 = arith.constant 0 : i32
    %c0_i32_0 = arith.constant 0 : i32
    return %arg0, %c0_i32, %arg1 : i32, i32, i32
  }
}

module attributes {stable_mosaic.version = 11 : i64} {
  func.func @_scale_shift_lrelu_kernel(%arg0: i32, %arg1: i32, %arg2: memref<32x128xf32, #tpu.memory_space<vmem>>, %arg3: memref<1x128xf32, #tpu.memory_space<vmem>>, %arg4: memref<1x128xf32, #tpu.memory_space<vmem>>, %arg5: memref<32x128xbf16, #tpu.memory_space<vmem>>) attributes {dimension_semantics = [#tpu.dimension_semantics<parallel>, #tpu.dimension_semantics<parallel>], iteration_bounds = array<i64: 1, 1>, scalar_prefetch = 0 : i64, scratch_operands = 0 : i64, tpu.core_type = #tpu.core_type<tc>, window_params = [{transform_indices = @transform_0, window_bounds = array<i64: 32, 128>}, {transform_indices = @transform_1, window_bounds = array<i64: 1, 128>}, {transform_indices = @transform_2, window_bounds = array<i64: 1, 128>}, {transform_indices = @transform_3, window_bounds = array<i64: 32, 128>}]} {
    %c0 = arith.constant 0 : index
    %c0_0 = arith.constant 0 : index
    %0 = vector.load %arg2[%c0, %c0_0] : memref<32x128xf32, #tpu.memory_space<vmem>>, vector<32x128xf32>
    %c0_1 = arith.constant 0 : index
    %c0_2 = arith.constant 0 : index
    %1 = vector.load %arg3[%c0_1, %c0_2] : memref<1x128xf32, #tpu.memory_space<vmem>>, vector<1x128xf32>
    %2 = vector.broadcast %1 : vector<1x128xf32> to vector<32x128xf32>
    %3 = arith.mulf %0, %2 : vector<32x128xf32>
    %c0_3 = arith.constant 0 : index
    %c0_4 = arith.constant 0 : index
    %4 = vector.load %arg4[%c0_3, %c0_4] : memref<1x128xf32, #tpu.memory_space<vmem>>, vector<1x128xf32>
    %5 = vector.broadcast %4 : vector<1x128xf32> to vector<32x128xf32>
    %6 = arith.addf %3, %5 : vector<32x128xf32>
    %cst = arith.constant 0.000000e+00 : f32
    %7 = vector.broadcast %cst : f32 to vector<32x128xf32>
    %8 = arith.cmpf oge, %6, %7 : vector<32x128xf32>
    %cst_5 = arith.constant 2.000000e-01 : f32
    %9 = vector.broadcast %cst_5 : f32 to vector<32x128xf32>
    %10 = arith.mulf %9, %6 : vector<32x128xf32>
    %11 = arith.select %8, %6, %10 : vector<32x128xi1>, vector<32x128xf32>
    %12 = arith.truncf %11 : vector<32x128xf32> to vector<32x128xbf16>
    %c0_6 = arith.constant 0 : index
    %c0_7 = arith.constant 0 : index
    %13 = vector.load %arg5[%c0_6, %c0_7] : memref<32x128xbf16, #tpu.memory_space<vmem>>, vector<32x128xbf16>
    tpu.vector_store %arg5[%c0_6, %c0_7], %12 {strides = array<i32>} : memref<32x128xbf16, #tpu.memory_space<vmem>>, vector<32x128xbf16>,
    return
  }
  func.func @transform_0(%arg0: i32, %arg1: i32) -> (i32, i32) {
    %c0_i32 = arith.constant 0 : i32
    return %arg0, %arg1 : i32, i32
  }
  func.func @transform_1(%arg0: i32, %arg1: i32) -> (i32, i32) {
    %c0_i32 = arith.constant 0 : i32
    %c0_i32_0 = arith.constant 0 : i32
    return %c0_i32, %arg1 : i32, i32
  }
  func.func @transform_2(%arg0: i32, %arg1: i32) -> (i32, i32) {
    %c0_i32 = arith.constant 0 : i32
    %c0_i32_0 = arith.constant 0 : i32
    return %c0_i32, %arg1 : i32, i32
  }
  func.func @transform_3(%arg0: i32, %arg1: i32) -> (i32, i32) {
    %c0_i32 = arith.constant 0 : i32
    return %arg0, %arg1 : i32, i32
  }
}

module attributes {stable_mosaic.version = 11 : i64} {
  func.func @_fc_bn_lrelu_head_kernel(%arg0: i32, %arg1: memref<2x512xbf16, #tpu.memory_space<vmem>>, %arg2: memref<512x1024xbf16, #tpu.memory_space<vmem>>, %arg3: memref<1x1024xf32, #tpu.memory_space<vmem>>, %arg4: memref<1x1024xf32, #tpu.memory_space<vmem>>, %arg5: memref<1x1024xf32, #tpu.memory_space<vmem>>, %arg6: memref<1024x128xbf16, #tpu.memory_space<vmem>>, %arg7: memref<1x128xf32, #tpu.memory_space<vmem>>, %arg8: memref<2x128xf32, #tpu.memory_space<vmem>>, %arg9: memref<2x1024xf32, #tpu.memory_space<vmem>>) attributes {dimension_semantics = [#tpu.dimension_semantics<arbitrary>], iteration_bounds = array<i64: 4>, scalar_prefetch = 0 : i64, scratch_operands = 1 : i64, tpu.core_type = #tpu.core_type<tc>, window_params = [{transform_indices = @transform_0, window_bounds = array<i64: 2, 512>}, {transform_indices = @transform_1, window_bounds = array<i64: 512, 1024>}, {pipeline_mode = #tpu.pipeline_mode<synchronous>, transform_indices = @transform_2, window_bounds = array<i64: 1, 1024>}, {pipeline_mode = #tpu.pipeline_mode<synchronous>, transform_indices = @transform_3, window_bounds = array<i64: 1, 1024>}, {pipeline_mode = #tpu.pipeline_mode<synchronous>, transform_indices = @transform_4, window_bounds = array<i64: 1, 1024>}, {pipeline_mode = #tpu.pipeline_mode<synchronous>, transform_indices = @transform_5, window_bounds = array<i64: 1024, 128>}, {pipeline_mode = #tpu.pipeline_mode<synchronous>, transform_indices = @transform_6, window_bounds = array<i64: 1, 128>}, {pipeline_mode = #tpu.pipeline_mode<synchronous>, transform_indices = @transform_7, window_bounds = array<i64: 2, 128>}]} {
    %c0_i32 = arith.constant 0 : i32
    %0 = arith.cmpi eq, %arg0, %c0_i32 : i32
    %1 = arith.extui %0 : i1 to i32
    %c0_i32_0 = arith.constant 0 : i32
    %2 = arith.cmpi ne, %1, %c0_i32_0 : i32
    scf.if %2 {
      %cst_9 = arith.constant 0.000000e+00 : f32
      %12 = vector.broadcast %cst_9 : f32 to vector<2x1024xf32>
      %c0_10 = arith.constant 0 : index
      %c0_11 = arith.constant 0 : index
      %13 = vector.load %arg9[%c0_10, %c0_11] : memref<2x1024xf32, #tpu.memory_space<vmem>>, vector<2x1024xf32>
      tpu.vector_store %arg9[%c0_10, %c0_11], %12 {strides = array<i32>} : memref<2x1024xf32, #tpu.memory_space<vmem>>, vector<2x1024xf32>,
    } else {
    }
    %c0 = arith.constant 0 : index
    %c0_1 = arith.constant 0 : index
    %3 = vector.load %arg9[%c0, %c0_1] : memref<2x1024xf32, #tpu.memory_space<vmem>>, vector<2x1024xf32>
    %c0_2 = arith.constant 0 : index
    %c0_3 = arith.constant 0 : index
    %4 = vector.load %arg1[%c0_2, %c0_3] : memref<2x512xbf16, #tpu.memory_space<vmem>>, vector<2x512xbf16>
    %c0_4 = arith.constant 0 : index
    %c0_5 = arith.constant 0 : index
    %5 = vector.load %arg2[%c0_4, %c0_5] : memref<512x1024xbf16, #tpu.memory_space<vmem>>, vector<512x1024xbf16>
    %cst = arith.constant dense<0.000000e+00> : vector<2x1024xf32>
    %6 = tpu.matmul %4, %5, %cst {dimension_numbers = #tpu.dot_dimension_numbers<[1], [0], [0], [1], [0, 0, 1, 1], [], []>} : vector<2x512xbf16>, vector<512x1024xbf16>, vector<2x1024xf32> -> vector<2x1024xf32>
    %7 = arith.addf %3, %6 : vector<2x1024xf32>
    %c0_6 = arith.constant 0 : index
    %c0_7 = arith.constant 0 : index
    %8 = vector.load %arg9[%c0_6, %c0_7] : memref<2x1024xf32, #tpu.memory_space<vmem>>, vector<2x1024xf32>
    tpu.vector_store %arg9[%c0_6, %c0_7], %7 {strides = array<i32>} : memref<2x1024xf32, #tpu.memory_space<vmem>>, vector<2x1024xf32>,
    %c3_i32 = arith.constant 3 : i32
    %9 = arith.cmpi eq, %arg0, %c3_i32 : i32
    %10 = arith.extui %9 : i1 to i32
    %c0_i32_8 = arith.constant 0 : i32
    %11 = arith.cmpi ne, %10, %c0_i32_8 : i32
    scf.if %11 {
      %c0_9 = arith.constant 0 : index
      %c0_10 = arith.constant 0 : index
      %12 = vector.load %arg9[%c0_9, %c0_10] : memref<2x1024xf32, #tpu.memory_space<vmem>>, vector<2x1024xf32>
      %c0_11 = arith.constant 0 : index
      %c0_12 = arith.constant 0 : index
      %13 = vector.load %arg3[%c0_11, %c0_12] : memref<1x1024xf32, #tpu.memory_space<vmem>>, vector<1x1024xf32>
      %14 = vector.broadcast %13 : vector<1x1024xf32> to vector<2x1024xf32>
      %15 = arith.addf %12, %14 : vector<2x1024xf32>
      %cst_13 = arith.constant dense<0.000000e+00> : vector<1024xf32>
      %16 = vector.multi_reduction <add>, %15, %cst_13 [0] : vector<2x1024xf32> to vector<1024xf32>
      %17 = vector.shape_cast %16 : vector<1024xf32> to vector<1x1024xf32>
      %cst_14 = arith.constant 2.000000e+00 : f32
      %18 = vector.broadcast %cst_14 : f32 to vector<1x1024xf32>
      %19 = arith.divf %17, %18 : vector<1x1024xf32>
      %20 = vector.broadcast %19 : vector<1x1024xf32> to vector<2x1024xf32>
      %21 = arith.subf %15, %20 : vector<2x1024xf32>
      %22 = arith.mulf %21, %21 : vector<2x1024xf32>
      %cst_15 = arith.constant dense<0.000000e+00> : vector<1024xf32>
      %23 = vector.multi_reduction <add>, %22, %cst_15 [0] : vector<2x1024xf32> to vector<1024xf32>
      %24 = vector.shape_cast %23 : vector<1024xf32> to vector<1x1024xf32>
      %cst_16 = arith.constant 2.000000e+00 : f32
      %25 = vector.broadcast %cst_16 : f32 to vector<1x1024xf32>
      %26 = arith.divf %24, %25 : vector<1x1024xf32>
      %27 = vector.broadcast %19 : vector<1x1024xf32> to vector<2x1024xf32>
      %28 = arith.subf %15, %27 : vector<2x1024xf32>
      %cst_17 = arith.constant 9.99999974E-6 : f32
      %29 = vector.broadcast %cst_17 : f32 to vector<1x1024xf32>
      %30 = arith.addf %26, %29 : vector<1x1024xf32>
      %31 = math.rsqrt %30 : vector<1x1024xf32>
      %32 = vector.broadcast %31 : vector<1x1024xf32> to vector<2x1024xf32>
      %33 = arith.mulf %28, %32 : vector<2x1024xf32>
      %c0_18 = arith.constant 0 : index
      %c0_19 = arith.constant 0 : index
      %34 = vector.load %arg4[%c0_18, %c0_19] : memref<1x1024xf32, #tpu.memory_space<vmem>>, vector<1x1024xf32>
      %35 = vector.broadcast %34 : vector<1x1024xf32> to vector<2x1024xf32>
      %36 = arith.mulf %33, %35 : vector<2x1024xf32>
      %c0_20 = arith.constant 0 : index
      %c0_21 = arith.constant 0 : index
      %37 = vector.load %arg5[%c0_20, %c0_21] : memref<1x1024xf32, #tpu.memory_space<vmem>>, vector<1x1024xf32>
      %38 = vector.broadcast %37 : vector<1x1024xf32> to vector<2x1024xf32>
      %39 = arith.addf %36, %38 : vector<2x1024xf32>
      %cst_22 = arith.constant 0.000000e+00 : f32
      %40 = vector.broadcast %cst_22 : f32 to vector<2x1024xf32>
      %41 = arith.cmpf oge, %39, %40 : vector<2x1024xf32>
      %cst_23 = arith.constant 2.000000e-01 : f32
      %42 = vector.broadcast %cst_23 : f32 to vector<2x1024xf32>
      %43 = arith.mulf %42, %39 : vector<2x1024xf32>
      %44 = arith.select %41, %39, %43 : vector<2x1024xi1>, vector<2x1024xf32>
      %45 = arith.truncf %44 : vector<2x1024xf32> to vector<2x1024xbf16>
      %c0_24 = arith.constant 0 : index
      %c0_25 = arith.constant 0 : index
      %46 = vector.load %arg6[%c0_24, %c0_25] : memref<1024x128xbf16, #tpu.memory_space<vmem>>, vector<1024x128xbf16>
      %cst_26 = arith.constant dense<0.000000e+00> : vector<2x128xf32>
      %47 = tpu.matmul %45, %46, %cst_26 {dimension_numbers = #tpu.dot_dimension_numbers<[1], [0], [0], [1], [0, 0, 1, 1], [], []>} : vector<2x1024xbf16>, vector<1024x128xbf16>, vector<2x128xf32> -> vector<2x128xf32>
      %c0_27 = arith.constant 0 : index
      %c0_28 = arith.constant 0 : index
      %48 = vector.load %arg7[%c0_27, %c0_28] : memref<1x128xf32, #tpu.memory_space<vmem>>, vector<1x128xf32>
      %49 = vector.broadcast %48 : vector<1x128xf32> to vector<2x128xf32>
      %50 = arith.addf %47, %49 : vector<2x128xf32>
      %cst_29 = arith.constant 0.000000e+00 : f32
      %51 = vector.broadcast %cst_29 : f32 to vector<2x128xf32>
      %52 = arith.subf %51, %50 : vector<2x128xf32>
      %53 = math.exp %52 : vector<2x128xf32>
      %cst_30 = arith.constant 1.000000e+00 : f32
      %54 = vector.broadcast %cst_30 : f32 to vector<2x128xf32>
      %55 = arith.addf %54, %53 : vector<2x128xf32>
      %56 = tpu.reciprocal %55 {approx = true} : vector<2x128xf32> -> vector<2x128xf32>
      %cst_31 = arith.constant 0.000000e+00 : f32
      %cst_32 = arith.constant 1.000000e+00 : f32
      %57 = vector.broadcast %cst_31 : f32 to vector<2x128xf32>
      %58 = arith.maximumf %57, %56 : vector<2x128xf32>
      %59 = vector.broadcast %cst_32 : f32 to vector<2x128xf32>
      %60 = arith.minimumf %59, %58 : vector<2x128xf32>
      %c0_33 = arith.constant 0 : index
      %c0_34 = arith.constant 0 : index
      %61 = vector.load %arg8[%c0_33, %c0_34] : memref<2x128xf32, #tpu.memory_space<vmem>>, vector<2x128xf32>
      tpu.vector_store %arg8[%c0_33, %c0_34], %60 {strides = array<i32>} : memref<2x128xf32, #tpu.memory_space<vmem>>, vector<2x128xf32>,
    } else {
    }
    return
  }
  func.func @transform_0(%arg0: i32) -> (i32, i32) {
    %c0_i32 = arith.constant 0 : i32
    %c0_i32_0 = arith.constant 0 : i32
    return %c0_i32, %arg0 : i32, i32
  }
  func.func @transform_1(%arg0: i32) -> (i32, i32) {
    %c0_i32 = arith.constant 0 : i32
    %c0_i32_0 = arith.constant 0 : i32
    return %arg0, %c0_i32 : i32, i32
  }
  func.func @transform_2(%arg0: i32) -> (i32, i32) {
    %c0_i32 = arith.constant 0 : i32
    %c0_i32_0 = arith.constant 0 : i32
    %c0_i32_1 = arith.constant 0 : i32
    return %c0_i32, %c0_i32_0 : i32, i32
  }
  func.func @transform_3(%arg0: i32) -> (i32, i32) {
    %c0_i32 = arith.constant 0 : i32
    %c0_i32_0 = arith.constant 0 : i32
    %c0_i32_1 = arith.constant 0 : i32
    return %c0_i32, %c0_i32_0 : i32, i32
  }
  func.func @transform_4(%arg0: i32) -> (i32, i32) {
    %c0_i32 = arith.constant 0 : i32
    %c0_i32_0 = arith.constant 0 : i32
    %c0_i32_1 = arith.constant 0 : i32
    return %c0_i32, %c0_i32_0 : i32, i32
  }
  func.func @transform_5(%arg0: i32) -> (i32, i32) {
    %c0_i32 = arith.constant 0 : i32
    %c0_i32_0 = arith.constant 0 : i32
    %c0_i32_1 = arith.constant 0 : i32
    return %c0_i32, %c0_i32_0 : i32, i32
  }
  func.func @transform_6(%arg0: i32) -> (i32, i32) {
    %c0_i32 = arith.constant 0 : i32
    %c0_i32_0 = arith.constant 0 : i32
    %c0_i32_1 = arith.constant 0 : i32
    return %c0_i32, %c0_i32_0 : i32, i32
  }
  func.func @transform_7(%arg0: i32) -> (i32, i32) {
    %c0_i32 = arith.constant 0 : i32
    %c0_i32_0 = arith.constant 0 : i32
    %c0_i32_1 = arith.constant 0 : i32
    return %c0_i32, %c0_i32_0 : i32, i32
  }
}

</mosaic_0001>

<llo_original>
// kernel: discriminator_forward.4
$region0: #{discriminator_forward.4}
  #allocation0 [shape = 'u32[]', space=smem, size = 0x4, offset = 0x4, fixed_abs, tag = 'smem constant byte address 0x4 - core index']
  #allocation1 [shape = 'u32[144,128]{1,0:T(1,128)}', space=vmem, size = 0x12000, scoped, tag = 'internal scratch']
  #allocation2 [shape = 'f32[128,128]{1,0:T(8,128)}', space=vmem, size = 0x10000, scoped, tag = 'scratch operand']
  %s0 = inlined_call_operand.vmem [shape: bf16[128,256], index: 0, kind: input, shape index: {}]
  %s1 = inlined_call_operand.vmem [shape: bf16[256,128], index: 1, kind: input, shape index: {}]
  %s2 = inlined_call_operand.vmem [shape: f32[1,128], index: 2, kind: input, shape index: {}]
  %s3 = inlined_call_operand.vmem [shape: bf16[128,128], index: 3, kind: output, shape index: {}]
  %s4 = sld [smem:[#allocation0]]
  $region30: #{discriminator_forward.4} parent=0
    _
  %s6 = ssub.s32 1, %s4
  %s7 = scalar_select 0, %s6, %s4
  // Predicated region
  $region2: #{discriminator_forward.4} parent=0 // pred_check
    _
  $region3: #{discriminator_forward.4} parent=0 // pred_check_branch
    %9 = sbr.rel (0) target = $region5
  $region4: #{discriminator_forward.4} parent=0 // pred_region
    _
  $region5: #{discriminator_forward.4} parent=0 // pred_fallthru
    _
  // Predicated region
  $region6: #{discriminator_forward.4} parent=0 // pred_check
    _
  $region7: #{discriminator_forward.4} parent=0 // pred_check_branch
    %11 = sbr.rel (0) target = $region9
  $region8: #{discriminator_forward.4} parent=0 // pred_region
    _
  $region9: #{discriminator_forward.4} parent=0 // pred_fallthru
    _
  // Predicated region
  $region10: #{discriminator_forward.4} parent=0 // pred_check
    _
  $region11: #{discriminator_forward.4} parent=0 // pred_check_branch
    %13 = sbr.rel (0) target = $region13
  $region12: #{discriminator_forward.4} parent=0 // pred_region
    _
  $region13: #{discriminator_forward.4} parent=0 // pred_fallthru
    _
  %p15 = scmp.eq.s32.totalorder 0, 0
  // Predicated region
  $region14: #{discriminator_forward.4} parent=0 // pred_check
    %p16 = pneg %p15
  $region15: #{discriminator_forward.4} parent=0 // pred_check_branch
    %18 = sbr.rel (%p16) target = $region17
  $region16: #{discriminator_forward.4} parent=0 // pred_region
    %19 = vst [vmem:[#allocation2] sm:$0xff] 0.0
    %20 = vst [vmem:[#allocation2 + $0x8] sm:$0xff] 0.0
    %21 = vst [vmem:[#allocation2 + $0x10] sm:$0xff] 0.0
    %22 = vst [vmem:[#allocation2 + $0x18] sm:$0xff] 0.0
    %23 = vst [vmem:[#allocation2 + $0x20] sm:$0xff] 0.0
    %24 = vst [vmem:[#allocation2 + $0x28] sm:$0xff] 0.0
    %25 = vst [vmem:[#allocation2 + $0x30] sm:$0xff] 0.0
    %26 = vst [vmem:[#allocation2 + $0x38] sm:$0xff] 0.0
    %27 = vst [vmem:[#allocation2 + $0x40] sm:$0xff] 0.0
    %28 = vst [vmem:[#allocation2 + $0x48] sm:$0xff] 0.0
    %29 = vst [vmem:[#allocation2 + $0x50] sm:$0xff] 0.0
    %30 = vst [vmem:[#allocation2 + $0x58] sm:$0xff] 0.0
    %31 = vst [vmem:[#allocation2 + $0x60] sm:$0xff] 0.0
    %32 = vst [vmem:[#allocation2 + $0x68] sm:$0xff] 0.0
    %33 = vst [vmem:[#allocation2 + $0x70] sm:$0xff] 0.0
    %34 = vst [vmem:[#allocation2 + $0x78] sm:$0xff] 0.0
  $region17: #{discriminator_forward.4} parent=0 // pred_fallthru
    _
  %v35 = vld [vmem:[#allocation2] sm:$0xff]
  %v36 = vld [vmem:[#allocation2 + $0x8] sm:$0xff]
  %v37 = vld [vmem:[#allocation2 + $0x10] sm:$0xff]
  %v38 = vld [vmem:[#allocation2 + $0x18] sm:$0xff]
  %v39 = vld [vmem:[#allocation2 + $0x20] sm:$0xff]
  %v40 = vld [vmem:[#allocation2 + $0x28] sm:$0xff]
  %v41 = vld [vmem:[#allocation2 + $0x30] sm:$0xff]
  %v42 = vld [vmem:[#allocation2 + $0x38] sm:$0xff]
  %v43 = vld [vmem:[#allocation2 + $0x40] sm:$0xff]
  %v44 = vld [vmem:[#allocation2 + $0x48] sm:$0xff]
  %v45 = vld [vmem:[#allocation2 + $0x50] sm:$0xff]
  %v46 = vld [vmem:[#allocation2 + $0x58] sm:$0xff]
  %v47 = vld [vmem:[#allocation2 + $0x60] sm:$0xff]
  %v48 = vld [vmem:[#allocation2 + $0x68] sm:$0xff]
  %v49 = vld [vmem:[#allocation2 + $0x70] sm:$0xff]
  %v50 = vld [vmem:[#allocation2 + $0x78] sm:$0xff]
  %v51 = vld [vmem:[%s0] sm:$0xff]
  %v52 = vld [vmem:[%s0 + $0x8] sm:$0xff]
  %v53 = vld [vmem:[%s0 + $0x10] sm:$0xff]
  %v54 = vld [vmem:[%s0 + $0x18] sm:$0xff]
  %v55 = vld [vmem:[%s0 + $0x20] sm:$0xff]
  %v56 = vld [vmem:[%s0 + $0x28] sm:$0xff]
  %v57 = vld [vmem:[%s0 + $0x30] sm:$0xff]
  %v58 = vld [vmem:[%s0 + $0x38] sm:$0xff]
  %v59 = vld [vmem:[%s0 + $0x40] sm:$0xff]
  %v60 = vld [vmem:[%s0 + $0x48] sm:$0xff]
  %v61 = vld [vmem:[%s0 + $0x50] sm:$0xff]
  %v62 = vld [vmem:[%s0 + $0x58] sm:$0xff]
  %v63 = vld [vmem:[%s0 + $0x60] sm:$0xff]
  %v64 = vld [vmem:[%s0 + $0x68] sm:$0xff]
  %v65 = vld [vmem:[%s0 + $0x70] sm:$0xff]
  %v66 = vld [vmem:[%s0 + $0x78] sm:$0xff]
  %v67 = vld [vmem:[%s1] sm:$0xf]
  %v68 = vld [vmem:[%s1 + $0x4] sm:$0xf]
  %v69 = vld [vmem:[%s1 + $0x8] sm:$0xf]
  %v70 = vld [vmem:[%s1 + $0xc] sm:$0xf]
  %v71 = vld [vmem:[%s1 + $0x10] sm:$0xf]
  %v72 = vld [vmem:[%s1 + $0x14] sm:$0xf]
  %v73 = vld [vmem:[%s1 + $0x18] sm:$0xf]
  %v74 = vld [vmem:[%s1 + $0x1c] sm:$0xf]
  %v75 = vld [vmem:[%s1 + $0x20] sm:$0xf]
  %v76 = vld [vmem:[%s1 + $0x24] sm:$0xf]
  %v77 = vld [vmem:[%s1 + $0x28] sm:$0xf]
  %v78 = vld [vmem:[%s1 + $0x2c] sm:$0xf]
  %v79 = vld [vmem:[%s1 + $0x30] sm:$0xf]
  %v80 = vld [vmem:[%s1 + $0x34] sm:$0xf]
  %v81 = vld [vmem:[%s1 + $0x38] sm:$0xf]
  %v82 = vld [vmem:[%s1 + $0x3c] sm:$0xf]
  %v83 = vld [vmem:[%s1 + $0x40] sm:$0xf]
  %v84 = vld [vmem:[%s1 + $0x44] sm:$0xf]
  %v85 = vld [vmem:[%s1 + $0x48] sm:$0xf]
  %v86 = vld [vmem:[%s1 + $0x4c] sm:$0xf]
  %v87 = vld [vmem:[%s1 + $0x50] sm:$0xf]
  %v88 = vld [vmem:[%s1 + $0x54] sm:$0xf]
  %v89 = vld [vmem:[%s1 + $0x58] sm:$0xf]
  %v90 = vld [vmem:[%s1 + $0x5c] sm:$0xf]
  %v91 = vld [vmem:[%s1 + $0x60] sm:$0xf]
  %v92 = vld [vmem:[%s1 + $0x64] sm:$0xf]
  %v93 = vld [vmem:[%s1 + $0x68] sm:$0xf]
  %v94 = vld [vmem:[%s1 + $0x6c] sm:$0xf]
  %v95 = vld [vmem:[%s1 + $0x70] sm:$0xf]
  %v96 = vld [vmem:[%s1 + $0x74] sm:$0xf]
  %v97 = vld [vmem:[%s1 + $0x78] sm:$0xf]
  %v98 = vld [vmem:[%s1 + $0x7c] sm:$0xf]
  %v115 = vunpack.c.l.b16 %v51
  %v116 = vunpack.c.h.b16 %v51
  %v117 = vunpack.c.l.b16 %v52
  %v118 = vunpack.c.h.b16 %v52
  %v119 = vunpack.c.l.b16 %v53
  %v120 = vunpack.c.h.b16 %v53
  %v121 = vunpack.c.l.b16 %v54
  %v122 = vunpack.c.h.b16 %v54
  %v123 = vunpack.c.l.b16 %v55
  %v124 = vunpack.c.h.b16 %v55
  %v125 = vunpack.c.l.b16 %v56
  %v126 = vunpack.c.h.b16 %v56
  %v127 = vunpack.c.l.b16 %v57
  %v128 = vunpack.c.h.b16 %v57
  %v129 = vunpack.c.l.b16 %v58
  %v130 = vunpack.c.h.b16 %v58
  %v131 = vunpack.c.l.b16 %v59
  %v132 = vunpack.c.h.b16 %v59
  %v133 = vunpack.c.l.b16 %v60
  %v134 = vunpack.c.h.b16 %v60
  %v135 = vunpack.c.l.b16 %v61
  %v136 = vunpack.c.h.b16 %v61
  %v137 = vunpack.c.l.b16 %v62
  %v138 = vunpack.c.h.b16 %v62
  %v139 = vunpack.c.l.b16 %v63
  %v140 = vunpack.c.h.b16 %v63
  %v141 = vunpack.c.l.b16 %v64
  %v142 = vunpack.c.h.b16 %v64
  %v143 = vunpack.c.l.b16 %v65
  %v144 = vunpack.c.h.b16 %v65
  %v145 = vunpack.c.l.b16 %v66
  %v146 = vunpack.c.h.b16 %v66
  %v147 = vpack.c.b16 %v117, %v115
  %v148 = vpack.c.b16 %v118, %v116
  %v149 = vpack.c.b16 %v121, %v119
  %v150 = vpack.c.b16 %v122, %v120
  %v151 = vpack.c.b16 %v125, %v123
  %v152 = vpack.c.b16 %v126, %v124
  %v153 = vpack.c.b16 %v129, %v127
  %v154 = vpack.c.b16 %v130, %v128
  %v155 = vpack.c.b16 %v133, %v131
  %v156 = vpack.c.b16 %v134, %v132
  %v157 = vpack.c.b16 %v137, %v135
  %v158 = vpack.c.b16 %v138, %v136
  %v159 = vpack.c.b16 %v141, %v139
  %v160 = vpack.c.b16 %v142, %v140
  %v161 = vpack.c.b16 %v145, %v143
  %v162 = vpack.c.b16 %v146, %v144
  %v211 = vunpack.c.l.b16 %v67
  %v212 = vunpack.c.l.b16 %v68
  %v213 = vunpack.c.l.b16 %v69
  %v214 = vunpack.c.l.b16 %v70
  %v215 = vunpack.c.l.b16 %v71
  %v216 = vunpack.c.l.b16 %v72
  %v217 = vunpack.c.l.b16 %v73
  %v218 = vunpack.c.l.b16 %v74
  %v219 = vunpack.c.l.b16 %v75
  %v220 = vunpack.c.l.b16 %v76
  %v221 = vunpack.c.l.b16 %v77
  %v222 = vunpack.c.l.b16 %v78
  %v223 = vunpack.c.l.b16 %v79
  %v224 = vunpack.c.l.b16 %v80
  %v225 = vunpack.c.l.b16 %v81
  %v226 = vunpack.c.l.b16 %v82
  %v227 = vunpack.c.l.b16 %v83
  %v228 = vunpack.c.l.b16 %v84
  %v229 = vunpack.c.l.b16 %v85
  %v230 = vunpack.c.l.b16 %v86
  %v231 = vunpack.c.l.b16 %v87
  %v232 = vunpack.c.l.b16 %v88
  %v233 = vunpack.c.l.b16 %v89
  %v234 = vunpack.c.l.b16 %v90
  %v235 = vunpack.c.l.b16 %v91
  %v236 = vunpack.c.l.b16 %v92
  %v237 = vunpack.c.l.b16 %v93
  %v238 = vunpack.c.l.b16 %v94
  %v239 = vunpack.c.l.b16 %v95
  %v240 = vunpack.c.l.b16 %v96
  %v241 = vunpack.c.l.b16 %v97
  %v242 = vunpack.c.l.b16 %v98
  %v243 = vpack.c.b16 %v212, %v211
  %v244 = vpack.c.b16 %v214, %v213
  %v245 = vpack.c.b16 %v216, %v215
  %v246 = vpack.c.b16 %v218, %v217
  %v247 = vpack.c.b16 %v220, %v219
  %v248 = vpack.c.b16 %v222, %v221
  %v249 = vpack.c.b16 %v224, %v223
  %v250 = vpack.c.b16 %v226, %v225
  %v251 = vpack.c.b16 %v228, %v227
  %v252 = vpack.c.b16 %v230, %v229
  %v253 = vpack.c.b16 %v232, %v231
  %v254 = vpack.c.b16 %v234, %v233
  %v255 = vpack.c.b16 %v236, %v235
  %v256 = vpack.c.b16 %v238, %v237
  %v257 = vpack.c.b16 %v240, %v239
  %v258 = vpack.c.b16 %v242, %v241
  %275 = vmatprep.subr.bf16.mxu0 0
  %276 = vmatpush1.bf16.msra.mxu0 %v250
  %277 = vmatprep.subr.bf16.mxu0 0
  %278 = vmatpush1.bf16.msra.mxu0 %v249
  %279 = vmatprep.subr.bf16.mxu0 0
  %280 = vmatpush1.bf16.msra.mxu0 %v248
  %281 = vmatprep.subr.bf16.mxu0 0
  %282 = vmatpush1.bf16.msra.mxu0 %v247
  %283 = vmatprep.subr.bf16.mxu0 0
  %284 = vmatpush1.bf16.msra.mxu0 %v246
  %285 = vmatprep.subr.bf16.mxu0 0
  %286 = vmatpush1.bf16.msra.mxu0 %v245
  %287 = vmatprep.subr.bf16.mxu0 0
  %288 = vmatpush1.bf16.msra.mxu0 %v244
  %289 = vmatprep.subr.bf16.mxu0 0
  %290 = vmatpush1.bf16.msra.mxu0 %v243
  %291 = vmatprep.subr.bf16.mxu0 0
  %292 = vmatpush2.bf16.msra.mxu0 %v258
  %293 = vmatprep.subr.bf16.mxu0 0
  %294 = vmatpush2.bf16.msra.mxu0 %v257
  %295 = vmatprep.subr.bf16.mxu0 0
  %296 = vmatpush2.bf16.msra.mxu0 %v256
  %297 = vmatprep.subr.bf16.mxu0 0
  %298 = vmatpush2.bf16.msra.mxu0 %v255
  %299 = vmatprep.subr.bf16.mxu0 0
  %300 = vmatpush2.bf16.msra.mxu0 %v254
  %301 = vmatprep.subr.bf16.mxu0 0
  %302 = vmatpush2.bf16.msra.mxu0 %v253
  %303 = vmatprep.subr.bf16.mxu0 0
  %304 = vmatpush2.bf16.msra.mxu0 %v252
  %305 = vmatprep.subr.bf16.mxu0 0
  %306 = vmatpush2.bf16.msra.mxu0 %v251
  %307 = vmatprep.mubr.bf16.mxu0 %v148
  %308 = vmatmul.mubr.bf16.gmra.mxu0 %v147
  %v309 = vpop.f32.mrf.mxu0
  %v310 = vadd.f32 0.0, %v309
  %v311 = vpop.f32.mrf.mxu0
  %v312 = vpop.f32.mrf.mxu0
  %v313 = vadd.f32 0.0, %v312
  %v314 = vpop.f32.mrf.mxu0
  %315 = vmatprep.mubr.bf16.mxu0 %v150
  %316 = vmatmul.mubr.bf16.gmra.mxu0 %v149
  %v317 = vpop.f32.mrf.mxu0
  %v318 = vadd.f32 0.0, %v317
  %v319 = vpop.f32.mrf.mxu0
  %v320 = vpop.f32.mrf.mxu0
  %v321 = vadd.f32 0.0, %v320
  %v322 = vpop.f32.mrf.mxu0
  %323 = vmatprep.mubr.bf16.mxu0 %v152
  %324 = vmatmul.mubr.bf16.gmra.mxu0 %v151
  %v325 = vpop.f32.mrf.mxu0
  %v326 = vadd.f32 0.0, %v325
  %v327 = vpop.f32.mrf.mxu0
  %v328 = vpop.f32.mrf.mxu0
  %v329 = vadd.f32 0.0, %v328
  %v330 = vpop.f32.mrf.mxu0
  %331 = vmatprep.mubr.bf16.mxu0 %v154
  %332 = vmatmul.mubr.bf16.gmra.mxu0 %v153
  %v333 = vpop.f32.mrf.mxu0
  %v334 = vadd.f32 0.0, %v333
  %v335 = vpop.f32.mrf.mxu0
  %v336 = vpop.f32.mrf.mxu0
  %v337 = vadd.f32 0.0, %v336
  %v338 = vpop.f32.mrf.mxu0
  %339 = vmatprep.mubr.bf16.mxu0 %v156
  %340 = vmatmul.mubr.bf16.gmra.mxu0 %v155
  %v341 = vpop.f32.mrf.mxu0
  %v342 = vadd.f32 0.0, %v341
  %v343 = vpop.f32.mrf.mxu0
  %v344 = vpop.f32.mrf.mxu0
  %v345 = vadd.f32 0.0, %v344
  %v346 = vpop.f32.mrf.mxu0
  %347 = vmatprep.mubr.bf16.mxu0 %v158
  %348 = vmatmul.mubr.bf16.gmra.mxu0 %v157
  %v349 = vpop.f32.mrf.mxu0
  %v350 = vadd.f32 0.0, %v349
  %v351 = vpop.f32.mrf.mxu0
  %v352 = vpop.f32.mrf.mxu0
  %v353 = vadd.f32 0.0, %v352
  %v354 = vpop.f32.mrf.mxu0
  %355 = vmatprep.mubr.bf16.mxu0 %v160
  %356 = vmatmul.mubr.bf16.gmra.mxu0 %v159
  %v357 = vpop.f32.mrf.mxu0
  %v358 = vadd.f32 0.0, %v357
  %v359 = vpop.f32.mrf.mxu0
  %v360 = vpop.f32.mrf.mxu0
  %v361 = vadd.f32 0.0, %v360
  %v362 = vpop.f32.mrf.mxu0
  %363 = vmatprep.mubr.bf16.mxu0 %v162
  %364 = vmatmul.mubr.bf16.gmra.mxu0 %v161
  %v365 = vpop.f32.mrf.mxu0
  %v366 = vadd.f32 0.0, %v365
  %v367 = vpop.f32.mrf.mxu0
  %v368 = vpop.f32.mrf.mxu0
  %v369 = vadd.f32 0.0, %v368
  %v370 = vpop.f32.mrf.mxu0
  %371 = vdwg.mxu0
  %v372 = vadd.f32 %v35, %v310
  %v373 = vadd.f32 %v36, %v313
  %v374 = vadd.f32 %v37, %v318
  %v375 = vadd.f32 %v38, %v321
  %v376 = vadd.f32 %v39, %v326
  %v377 = vadd.f32 %v40, %v329
  %v378 = vadd.f32 %v41, %v334
  %v379 = vadd.f32 %v42, %v337
  %v380 = vadd.f32 %v43, %v342
  %v381 = vadd.f32 %v44, %v345
  %v382 = vadd.f32 %v45, %v350
  %v383 = vadd.f32 %v46, %v353
  %v384 = vadd.f32 %v47, %v358
  %v385 = vadd.f32 %v48, %v361
  %v386 = vadd.f32 %v49, %v366
  %v387 = vadd.f32 %v50, %v369
  %388 = vst [vmem:[#allocation2] sm:$0xff] %v372
  %389 = vst [vmem:[#allocation2 + $0x8] sm:$0xff] %v373
  %390 = vst [vmem:[#allocation2 + $0x10] sm:$0xff] %v374
  %391 = vst [vmem:[#allocation2 + $0x18] sm:$0xff] %v375
  %392 = vst [vmem:[#allocation2 + $0x20] sm:$0xff] %v376
  %393 = vst [vmem:[#allocation2 + $0x28] sm:$0xff] %v377
  %394 = vst [vmem:[#allocation2 + $0x30] sm:$0xff] %v378
  %395 = vst [vmem:[#allocation2 + $0x38] sm:$0xff] %v379
  %396 = vst [vmem:[#allocation2 + $0x40] sm:$0xff] %v380
  %397 = vst [vmem:[#allocation2 + $0x48] sm:$0xff] %v381
  %398 = vst [vmem:[#allocation2 + $0x50] sm:$0xff] %v382
  %399 = vst [vmem:[#allocation2 + $0x58] sm:$0xff] %v383
  %400 = vst [vmem:[#allocation2 + $0x60] sm:$0xff] %v384
  %401 = vst [vmem:[#allocation2 + $0x68] sm:$0xff] %v385
  %402 = vst [vmem:[#allocation2 + $0x70] sm:$0xff] %v386
  %403 = vst [vmem:[#allocation2 + $0x78] sm:$0xff] %v387
  // Predicated region
  $region18: #{discriminator_forward.4} parent=0 // pred_check
    %p404 = pneg %p15
  $region19: #{discriminator_forward.4} parent=0 // pred_check_branch
    %406 = sbr.rel (%p404) target = $region21
  $region20: #{discriminator_forward.4} parent=0 // pred_region
    %v407 = vld [vmem:[#allocation2] sm:$0xff]
    %v408 = vld [vmem:[#allocation2 + $0x8] sm:$0xff]
    %v409 = vld [vmem:[#allocation2 + $0x10] sm:$0xff]
    %v410 = vld [vmem:[#allocation2 + $0x18] sm:$0xff]
    %v411 = vld [vmem:[#allocation2 + $0x20] sm:$0xff]
    %v412 = vld [vmem:[#allocation2 + $0x28] sm:$0xff]
    %v413 = vld [vmem:[#allocation2 + $0x30] sm:$0xff]
    %v414 = vld [vmem:[#allocation2 + $0x38] sm:$0xff]
    %v415 = vld [vmem:[#allocation2 + $0x40] sm:$0xff]
    %v416 = vld [vmem:[#allocation2 + $0x48] sm:$0xff]
    %v417 = vld [vmem:[#allocation2 + $0x50] sm:$0xff]
    %v418 = vld [vmem:[#allocation2 + $0x58] sm:$0xff]
    %v419 = vld [vmem:[#allocation2 + $0x60] sm:$0xff]
    %v420 = vld [vmem:[#allocation2 + $0x68] sm:$0xff]
    %v421 = vld [vmem:[#allocation2 + $0x70] sm:$0xff]
    %v422 = vld [vmem:[#allocation2 + $0x78] sm:$0xff]
    %v423 = vld [vmem:[%s2] sm:$0x1]
    %v425 = vlaneseq
    %v426 = vshrl.u32 %v425, 7
    %v427 = vsub.s32 0, %v426
    %v428 = vrot.slane %v423, %v427
    %v430 = vadd.f32 %v407, %v428
    %v431 = vadd.f32 %v408, %v428
    %v432 = vadd.f32 %v409, %v428
    %v433 = vadd.f32 %v410, %v428
    %v434 = vadd.f32 %v411, %v428
    %v435 = vadd.f32 %v412, %v428
    %v436 = vadd.f32 %v413, %v428
    %v437 = vadd.f32 %v414, %v428
    %v438 = vadd.f32 %v415, %v428
    %v439 = vadd.f32 %v416, %v428
    %v440 = vadd.f32 %v417, %v428
    %v441 = vadd.f32 %v418, %v428
    %v442 = vadd.f32 %v419, %v428
    %v443 = vadd.f32 %v420, %v428
    %v444 = vadd.f32 %v421, %v428
    %v445 = vadd.f32 %v422, %v428
    %vm446 = vcmp.ge.f32.partialorder %v430, 0.0
    %vm447 = vcmp.ge.f32.partialorder %v431, 0.0
    %vm448 = vcmp.ge.f32.partialorder %v432, 0.0
    %vm449 = vcmp.ge.f32.partialorder %v433, 0.0
    %vm450 = vcmp.ge.f32.partialorder %v434, 0.0
    %vm451 = vcmp.ge.f32.partialorder %v435, 0.0
    %vm452 = vcmp.ge.f32.partialorder %v436, 0.0
    %vm453 = vcmp.ge.f32.partialorder %v437, 0.0
    %vm454 = vcmp.ge.f32.partialorder %v438, 0.0
    %vm455 = vcmp.ge.f32.partialorder %v439, 0.0
    %vm456 = vcmp.ge.f32.partialorder %v440, 0.0
    %vm457 = vcmp.ge.f32.partialorder %v441, 0.0
    %vm458 = vcmp.ge.f32.partialorder %v442, 0.0
    %vm459 = vcmp.ge.f32.partialorder %v443, 0.0
    %vm460 = vcmp.ge.f32.partialorder %v444, 0.0
    %vm461 = vcmp.ge.f32.partialorder %v445, 0.0
    %v462 = vmul.f32 %v430, 0.2
    %v463 = vmul.f32 %v431, 0.2
    %v464 = vmul.f32 %v432, 0.2
    %v465 = vmul.f32 %v433, 0.2
    %v466 = vmul.f32 %v434, 0.2
    %v467 = vmul.f32 %v435, 0.2
    %v468 = vmul.f32 %v436, 0.2
    %v469 = vmul.f32 %v437, 0.2
    %v470 = vmul.f32 %v438, 0.2
    %v471 = vmul.f32 %v439, 0.2
    %v472 = vmul.f32 %v440, 0.2
    %v473 = vmul.f32 %v441, 0.2
    %v474 = vmul.f32 %v442, 0.2
    %v475 = vmul.f32 %v443, 0.2
    %v476 = vmul.f32 %v444, 0.2
    %v477 = vmul.f32 %v445, 0.2
    %v478 = vsel %vm446, %v430, %v462
    %v479 = vsel %vm447, %v431, %v463
    %v480 = vsel %vm448, %v432, %v464
    %v481 = vsel %vm449, %v433, %v465
    %v482 = vsel %vm450, %v434, %v466
    %v483 = vsel %vm451, %v435, %v467
    %v484 = vsel %vm452, %v436, %v468
    %v485 = vsel %vm453, %v437, %v469
    %v486 = vsel %vm454, %v438, %v470
    %v487 = vsel %vm455, %v439, %v471
    %v488 = vsel %vm456, %v440, %v472
    %v489 = vsel %vm457, %v441, %v473
    %v490 = vsel %vm458, %v442, %v474
    %v491 = vsel %vm459, %v443, %v475
    %v492 = vsel %vm460, %v444, %v476
    %v493 = vsel %vm461, %v445, %v477
    %v494 = vpack.c.bf16 %v479, %v478
    %v495 = vpack.c.bf16 %v481, %v480
    %v496 = vpack.c.bf16 %v483, %v482
    %v497 = vpack.c.bf16 %v485, %v484
    %v498 = vpack.c.bf16 %v487, %v486
    %v499 = vpack.c.bf16 %v489, %v488
    %v500 = vpack.c.bf16 %v491, %v490
    %v501 = vpack.c.bf16 %v493, %v492
    %v510 = vunpack.c.l.b16 %v494
    %v511 = vunpack.c.h.b16 %v494
    %v512 = vunpack.c.l.b16 %v495
    %v513 = vunpack.c.h.b16 %v495
    %v514 = vunpack.c.l.b16 %v496
    %v515 = vunpack.c.h.b16 %v496
    %v516 = vunpack.c.l.b16 %v497
    %v517 = vunpack.c.h.b16 %v497
    %v518 = vunpack.c.l.b16 %v498
    %v519 = vunpack.c.h.b16 %v498
    %v520 = vunpack.c.l.b16 %v499
    %v521 = vunpack.c.h.b16 %v499
    %v522 = vunpack.c.l.b16 %v500
    %v523 = vunpack.c.h.b16 %v500
    %v524 = vunpack.c.l.b16 %v501
    %v525 = vunpack.c.h.b16 %v501
    %v526 = vpack.c.b16 %v510, %v510
    %v527 = vpack.c.b16 %v511, %v511
    %v528 = vpack.c.b16 %v512, %v512
    %v529 = vpack.c.b16 %v513, %v513
    %v530 = vpack.c.b16 %v514, %v514
    %v531 = vpack.c.b16 %v515, %v515
    %v532 = vpack.c.b16 %v516, %v516
    %v533 = vpack.c.b16 %v517, %v517
    %v534 = vpack.c.b16 %v518, %v518
    %v535 = vpack.c.b16 %v519, %v519
    %v536 = vpack.c.b16 %v520, %v520
    %v537 = vpack.c.b16 %v521, %v521
    %v538 = vpack.c.b16 %v522, %v522
    %v539 = vpack.c.b16 %v523, %v523
    %v540 = vpack.c.b16 %v524, %v524
    %v541 = vpack.c.b16 %v525, %v525
    %558 = vst [vmem:[%s3] sm:$0xf] %v526
    %559 = vst [vmem:[%s3 + $0x4] sm:$0xf] %v527
    %560 = vst [vmem:[%s3 + $0x8] sm:$0xf] %v528
    %561 = vst [vmem:[%s3 + $0xc] sm:$0xf] %v529
    %562 = vst [vmem:[%s3 + $0x10] sm:$0xf] %v530
    %563 = vst [vmem:[%s3 + $0x14] sm:$0xf] %v531
    %564 = vst [vmem:[%s3 + $0x18] sm:$0xf] %v532
    %565 = vst [vmem:[%s3 + $0x1c] sm:$0xf] %v533
    %566 = vst [vmem:[%s3 + $0x20] sm:$0xf] %v534
    %567 = vst [vmem:[%s3 + $0x24] sm:$0xf] %v535
    %568 = vst [vmem:[%s3 + $0x28] sm:$0xf] %v536
    %569 = vst [vmem:[%s3 + $0x2c] sm:$0xf] %v537
    %570 = vst [vmem:[%s3 + $0x30] sm:$0xf] %v538
    %571 = vst [vmem:[%s3 + $0x34] sm:$0xf] %v539
    %572 = vst [vmem:[%s3 + $0x38] sm:$0xf] %v540
    %573 = vst [vmem:[%s3 + $0x3c] sm:$0xf] %v541
  $region21: #{discriminator_forward.4} parent=0 // pred_fallthru
    _
  // Predicated region
  $region22: #{discriminator_forward.4} parent=0 // pred_check
    _
  $region23: #{discriminator_forward.4} parent=0 // pred_check_branch
    %575 = sbr.rel (0) target = $region25
  $region24: #{discriminator_forward.4} parent=0 // pred_region
    _
  $region25: #{discriminator_forward.4} parent=0 // pred_fallthru
    _
  // Predicated region
  $region26: #{discriminator_forward.4} parent=0 // pred_check
    _
  $region27: #{discriminator_forward.4} parent=0 // pred_check_branch
    %577 = sbr.rel (0) target = $region29
  $region28: #{discriminator_forward.4} parent=0 // pred_region
    _
  $region29: #{discriminator_forward.4} parent=0 // pred_fallthru
    _

// kernel: discriminator_forward.6
$region0: #{discriminator_forward.6}
  #allocation0 [shape = 'u32[]', space=smem, size = 0x4, offset = 0x4, fixed_abs, tag = 'smem constant byte address 0x4 - core index']
  #allocation1 [shape = 'u32[144,128]{1,0:T(1,128)}', space=vmem, size = 0x12000, scoped, tag = 'internal scratch']
  %s0 = inlined_call_operand.vmem [shape: f32[32,128], index: 0, kind: input, shape index: {}]
  %s1 = inlined_call_operand.vmem [shape: f32[1,128], index: 1, kind: input, shape index: {}]
  %s2 = inlined_call_operand.vmem [shape: f32[1,128], index: 2, kind: input, shape index: {}]
  %s3 = inlined_call_operand.vmem [shape: bf16[32,128], index: 3, kind: output, shape index: {}]
  %s4 = sld [smem:[#allocation0]]
  $region22: #{discriminator_forward.6} parent=0
    _
  %s6 = ssub.s32 1, %s4
  %s7 = scalar_select 0, %s6, %s4
  // Predicated region
  $region2: #{discriminator_forward.6} parent=0 // pred_check
    _
  $region3: #{discriminator_forward.6} parent=0 // pred_check_branch
    %9 = sbr.rel (0) target = $region5
  $region4: #{discriminator_forward.6} parent=0 // pred_region
    _
  $region5: #{discriminator_forward.6} parent=0 // pred_fallthru
    _
  // Predicated region
  $region6: #{discriminator_forward.6} parent=0 // pred_check
    _
  $region7: #{discriminator_forward.6} parent=0 // pred_check_branch
    %11 = sbr.rel (0) target = $region9
  $region8: #{discriminator_forward.6} parent=0 // pred_region
    _
  $region9: #{discriminator_forward.6} parent=0 // pred_fallthru
    _
  // Predicated region
  $region10: #{discriminator_forward.6} parent=0 // pred_check
    _
  $region11: #{discriminator_forward.6} parent=0 // pred_check_branch
    %13 = sbr.rel (0) target = $region13
  $region12: #{discriminator_forward.6} parent=0 // pred_region
    _
  $region13: #{discriminator_forward.6} parent=0 // pred_fallthru
    _
  %v14 = vld [vmem:[%s0] sm:$0xff]
  %v15 = vld [vmem:[%s0 + $0x8] sm:$0xff]
  %v16 = vld [vmem:[%s0 + $0x10] sm:$0xff]
  %v17 = vld [vmem:[%s0 + $0x18] sm:$0xff]
  %v18 = vld [vmem:[%s1] sm:$0x1]
  %v20 = vlaneseq
  %v21 = vshrl.u32 %v20, 7
  %v22 = vsub.s32 0, %v21
  %v23 = vrot.slane %v18, %v22
  %v25 = vmul.f32 %v14, %v23
  %v26 = vmul.f32 %v15, %v23
  %v27 = vmul.f32 %v16, %v23
  %v28 = vmul.f32 %v17, %v23
  %v29 = vld [vmem:[%s2] sm:$0x1]
  %v31 = vlaneseq
  %v32 = vshrl.u32 %v31, 7
  %v33 = vsub.s32 0, %v32
  %v34 = vrot.slane %v29, %v33
  %v36 = vadd.f32 %v25, %v34
  %v37 = vadd.f32 %v26, %v34
  %v38 = vadd.f32 %v27, %v34
  %v39 = vadd.f32 %v28, %v34
  %vm40 = vcmp.ge.f32.partialorder %v36, 0.0
  %vm41 = vcmp.ge.f32.partialorder %v37, 0.0
  %vm42 = vcmp.ge.f32.partialorder %v38, 0.0
  %vm43 = vcmp.ge.f32.partialorder %v39, 0.0
  %v44 = vmul.f32 %v36, 0.2
  %v45 = vmul.f32 %v37, 0.2
  %v46 = vmul.f32 %v38, 0.2
  %v47 = vmul.f32 %v39, 0.2
  %v48 = vsel %vm40, %v36, %v44
  %v49 = vsel %vm41, %v37, %v45
  %v50 = vsel %vm42, %v38, %v46
  %v51 = vsel %vm43, %v39, %v47
  %v52 = vpack.c.bf16 %v49, %v48
  %v53 = vpack.c.bf16 %v51, %v50
  %v56 = vunpack.c.l.b16 %v52
  %v57 = vunpack.c.h.b16 %v52
  %v58 = vunpack.c.l.b16 %v53
  %v59 = vunpack.c.h.b16 %v53
  %v60 = vpack.c.b16 %v56, %v56
  %v61 = vpack.c.b16 %v57, %v57
  %v62 = vpack.c.b16 %v58, %v58
  %v63 = vpack.c.b16 %v59, %v59
  %68 = vst [vmem:[%s3] sm:$0xf] %v60
  %69 = vst [vmem:[%s3 + $0x4] sm:$0xf] %v61
  %70 = vst [vmem:[%s3 + $0x8] sm:$0xf] %v62
  %71 = vst [vmem:[%s3 + $0xc] sm:$0xf] %v63
  // Predicated region
  $region14: #{discriminator_forward.6} parent=0 // pred_check
    _
  $region15: #{discriminator_forward.6} parent=0 // pred_check_branch
    %73 = sbr.rel (0) target = $region17
  $region16: #{discriminator_forward.6} parent=0 // pred_region
    _
  $region17: #{discriminator_forward.6} parent=0 // pred_fallthru
    _
  // Predicated region
  $region18: #{discriminator_forward.6} parent=0 // pred_check
    _
  $region19: #{discriminator_forward.6} parent=0 // pred_check_branch
    %75 = sbr.rel (0) target = $region21
  $region20: #{discriminator_forward.6} parent=0 // pred_region
    _
  $region21: #{discriminator_forward.6} parent=0 // pred_fallthru
    _

// kernel: discriminator_forward.5
$region0: #{discriminator_forward.5}
  #allocation0 [shape = 'u32[]', space=smem, size = 0x4, offset = 0x4, fixed_abs, tag = 'smem constant byte address 0x4 - core index']
  #allocation1 [shape = 'u32[144,128]{1,0:T(1,128)}', space=vmem, size = 0x12000, scoped, tag = 'internal scratch']
  #allocation2 [shape = 'f32[32,128]{1,0:T(8,128)}', space=vmem, size = 0x4000, scoped, tag = 'scratch operand']
  %s0 = inlined_call_operand.vmem [shape: bf16[32,1024], index: 0, kind: input, shape index: {}]
  %s1 = inlined_call_operand.vmem [shape: bf16[1024,128], index: 1, kind: input, shape index: {}]
  %s2 = inlined_call_operand.vmem [shape: f32[1,128], index: 2, kind: input, shape index: {}]
  %s3 = inlined_call_operand.vmem [shape: f32[32,128], index: 3, kind: output, shape index: {0}]
  %s4 = inlined_call_operand.vmem [shape: f32[1,1,128], index: 4, kind: output, shape index: {1}]
  %s5 = inlined_call_operand.vmem [shape: f32[1,1,128], index: 5, kind: output, shape index: {2}]
  %6 = xla_tuple %s3, %s4, %s5
  %s7 = sld [smem:[#allocation0]]
  $region46: #{discriminator_forward.5} parent=0
    _
  %s9 = ssub.s32 1, %s7
  %s10 = scalar_select 0, %s9, %s7
  // Predicated region
  $region2: #{discriminator_forward.5} parent=0 // pred_check
    _
  $region3: #{discriminator_forward.5} parent=0 // pred_check_branch
    %12 = sbr.rel (0) target = $region5
  $region4: #{discriminator_forward.5} parent=0 // pred_region
    _
  $region5: #{discriminator_forward.5} parent=0 // pred_fallthru
    _
  // Predicated region
  $region6: #{discriminator_forward.5} parent=0 // pred_check
    _
  $region7: #{discriminator_forward.5} parent=0 // pred_check_branch
    %14 = sbr.rel (0) target = $region9
  $region8: #{discriminator_forward.5} parent=0 // pred_region
    _
  $region9: #{discriminator_forward.5} parent=0 // pred_fallthru
    _
  // Predicated region
  $region10: #{discriminator_forward.5} parent=0 // pred_check
    _
  $region11: #{discriminator_forward.5} parent=0 // pred_check_branch
    %16 = sbr.rel (0) target = $region13
  $region12: #{discriminator_forward.5} parent=0 // pred_region
    _
  $region13: #{discriminator_forward.5} parent=0 // pred_fallthru
    _
  %p18 = scmp.eq.s32.totalorder 0, 0
  // Predicated region
  $region14: #{discriminator_forward.5} parent=0 // pred_check
    %p19 = pneg %p18
  $region15: #{discriminator_forward.5} parent=0 // pred_check_branch
    %21 = sbr.rel (%p19) target = $region17
  $region16: #{discriminator_forward.5} parent=0 // pred_region
    %22 = vst [vmem:[#allocation2] sm:$0xff] 0.0
    %23 = vst [vmem:[#allocation2 + $0x8] sm:$0xff] 0.0
    %24 = vst [vmem:[#allocation2 + $0x10] sm:$0xff] 0.0
    %25 = vst [vmem:[#allocation2 + $0x18] sm:$0xff] 0.0
  $region17: #{discriminator_forward.5} parent=0 // pred_fallthru
    _
  %v26 = vld [vmem:[#allocation2] sm:$0xff]
  %v27 = vld [vmem:[#allocation2 + $0x8] sm:$0xff]
  %v28 = vld [vmem:[#allocation2 + $0x10] sm:$0xff]
  %v29 = vld [vmem:[#allocation2 + $0x18] sm:$0xff]
  %v30 = vld [vmem:[%s0] sm:$0xff]
  %v31 = vld [vmem:[%s0 + $0x8] sm:$0xff]
  %v32 = vld [vmem:[%s0 + $0x10] sm:$0xff]
  %v33 = vld [vmem:[%s0 + $0x18] sm:$0xff]
  %v34 = vld [vmem:[%s0 + $0x20] sm:$0xff]
  %v35 = vld [vmem:[%s0 + $0x28] sm:$0xff]
  %v36 = vld [vmem:[%s0 + $0x30] sm:$0xff]
  %v37 = vld [vmem:[%s0 + $0x38] sm:$0xff]
  %v38 = vld [vmem:[%s0 + $0x40] sm:$0xff]
  %v39 = vld [vmem:[%s0 + $0x48] sm:$0xff]
  %v40 = vld [vmem:[%s0 + $0x50] sm:$0xff]
  %v41 = vld [vmem:[%s0 + $0x58] sm:$0xff]
  %v42 = vld [vmem:[%s0 + $0x60] sm:$0xff]
  %v43 = vld [vmem:[%s0 + $0x68] sm:$0xff]
  %v44 = vld [vmem:[%s0 + $0x70] sm:$0xff]
  %v45 = vld [vmem:[%s0 + $0x78] sm:$0xff]
  %v46 = vld [vmem:[%s1] sm:$0xf]
  %v47 = vld [vmem:[%s1 + $0x4] sm:$0xf]
  %v48 = vld [vmem:[%s1 + $0x8] sm:$0xf]
  %v49 = vld [vmem:[%s1 + $0xc] sm:$0xf]
  %v50 = vld [vmem:[%s1 + $0x10] sm:$0xf]
  %v51 = vld [vmem:[%s1 + $0x14] sm:$0xf]
  %v52 = vld [vmem:[%s1 + $0x18] sm:$0xf]
  %v53 = vld [vmem:[%s1 + $0x1c] sm:$0xf]
  %v54 = vld [vmem:[%s1 + $0x20] sm:$0xf]
  %v55 = vld [vmem:[%s1 + $0x24] sm:$0xf]
  %v56 = vld [vmem:[%s1 + $0x28] sm:$0xf]
  %v57 = vld [vmem:[%s1 + $0x2c] sm:$0xf]
  %v58 = vld [vmem:[%s1 + $0x30] sm:$0xf]
  %v59 = vld [vmem:[%s1 + $0x34] sm:$0xf]
  %v60 = vld [vmem:[%s1 + $0x38] sm:$0xf]
  %v61 = vld [vmem:[%s1 + $0x3c] sm:$0xf]
  %v62 = vld [vmem:[%s1 + $0x40] sm:$0xf]
  %v63 = vld [vmem:[%s1 + $0x44] sm:$0xf]
  %v64 = vld [vmem:[%s1 + $0x48] sm:$0xf]
  %v65 = vld [vmem:[%s1 + $0x4c] sm:$0xf]
  %v66 = vld [vmem:[%s1 + $0x50] sm:$0xf]
  %v67 = vld [vmem:[%s1 + $0x54] sm:$0xf]
  %v68 = vld [vmem:[%s1 + $0x58] sm:$0xf]
  %v69 = vld [vmem:[%s1 + $0x5c] sm:$0xf]
  %v70 = vld [vmem:[%s1 + $0x60] sm:$0xf]
  %v71 = vld [vmem:[%s1 + $0x64] sm:$0xf]
  %v72 = vld [vmem:[%s1 + $0x68] sm:$0xf]
  %v73 = vld [vmem:[%s1 + $0x6c] sm:$0xf]
  %v74 = vld [vmem:[%s1 + $0x70] sm:$0xf]
  %v75 = vld [vmem:[%s1 + $0x74] sm:$0xf]
  %v76 = vld [vmem:[%s1 + $0x78] sm:$0xf]
  %v77 = vld [vmem:[%s1 + $0x7c] sm:$0xf]
  %v78 = vld [vmem:[%s1 + $0x80] sm:$0xf]
  %v79 = vld [vmem:[%s1 + $0x84] sm:$0xf]
  %v80 = vld [vmem:[%s1 + $0x88] sm:$0xf]
  %v81 = vld [vmem:[%s1 + $0x8c] sm:$0xf]
  %v82 = vld [vmem:[%s1 + $0x90] sm:$0xf]
  %v83 = vld [vmem:[%s1 + $0x94] sm:$0xf]
  %v84 = vld [vmem:[%s1 + $0x98] sm:$0xf]
  %v85 = vld [vmem:[%s1 + $0x9c] sm:$0xf]
  %v86 = vld [vmem:[%s1 + $0xa0] sm:$0xf]
  %v87 = vld [vmem:[%s1 + $0xa4] sm:$0xf]
  %v88 = vld [vmem:[%s1 + $0xa8] sm:$0xf]
  %v89 = vld [vmem:[%s1 + $0xac] sm:$0xf]
  %v90 = vld [vmem:[%s1 + $0xb0] sm:$0xf]
  %v91 = vld [vmem:[%s1 + $0xb4] sm:$0xf]
  %v92 = vld [vmem:[%s1 + $0xb8] sm:$0xf]
  %v93 = vld [vmem:[%s1 + $0xbc] sm:$0xf]
  %v94 = vld [vmem:[%s1 + $0xc0] sm:$0xf]
  %v95 = vld [vmem:[%s1 + $0xc4] sm:$0xf]
  %v96 = vld [vmem:[%s1 + $0xc8] sm:$0xf]
  %v97 = vld [vmem:[%s1 + $0xcc] sm:$0xf]
  %v98 = vld [vmem:[%s1 + $0xd0] sm:$0xf]
  %v99 = vld [vmem:[%s1 + $0xd4] sm:$0xf]
  %v100 = vld [vmem:[%s1 + $0xd8] sm:$0xf]
  %v101 = vld [vmem:[%s1 + $0xdc] sm:$0xf]
  %v102 = vld [vmem:[%s1 + $0xe0] sm:$0xf]
  %v103 = vld [vmem:[%s1 + $0xe4] sm:$0xf]
  %v104 = vld [vmem:[%s1 + $0xe8] sm:$0xf]
  %v105 = vld [vmem:[%s1 + $0xec] sm:$0xf]
  %v106 = vld [vmem:[%s1 + $0xf0] sm:$0xf]
  %v107 = vld [vmem:[%s1 + $0xf4] sm:$0xf]
  %v108 = vld [vmem:[%s1 + $0xf8] sm:$0xf]
  %v109 = vld [vmem:[%s1 + $0xfc] sm:$0xf]
  %v110 = vld [vmem:[%s1 + $0x100] sm:$0xf]
  %v111 = vld [vmem:[%s1 + $0x104] sm:$0xf]
  %v112 = vld [vmem:[%s1 + $0x108] sm:$0xf]
  %v113 = vld [vmem:[%s1 + $0x10c] sm:$0xf]
  %v114 = vld [vmem:[%s1 + $0x110] sm:$0xf]
  %v115 = vld [vmem:[%s1 + $0x114] sm:$0xf]
  %v116 = vld [vmem:[%s1 + $0x118] sm:$0xf]
  %v117 = vld [vmem:[%s1 + $0x11c] sm:$0xf]
  %v118 = vld [vmem:[%s1 + $0x120] sm:$0xf]
  %v119 = vld [vmem:[%s1 + $0x124] sm:$0xf]
  %v120 = vld [vmem:[%s1 + $0x128] sm:$0xf]
  %v121 = vld [vmem:[%s1 + $0x12c] sm:$0xf]
  %v122 = vld [vmem:[%s1 + $0x130] sm:$0xf]
  %v123 = vld [vmem:[%s1 + $0x134] sm:$0xf]
  %v124 = vld [vmem:[%s1 + $0x138] sm:$0xf]
  %v125 = vld [vmem:[%s1 + $0x13c] sm:$0xf]
  %v126 = vld [vmem:[%s1 + $0x140] sm:$0xf]
  %v127 = vld [vmem:[%s1 + $0x144] sm:$0xf]
  %v128 = vld [vmem:[%s1 + $0x148] sm:$0xf]
  %v129 = vld [vmem:[%s1 + $0x14c] sm:$0xf]
  %v130 = vld [vmem:[%s1 + $0x150] sm:$0xf]
  %v131 = vld [vmem:[%s1 + $0x154] sm:$0xf]
  %v132 = vld [vmem:[%s1 + $0x158] sm:$0xf]
  %v133 = vld [vmem:[%s1 + $0x15c] sm:$0xf]
  %v134 = vld [vmem:[%s1 + $0x160] sm:$0xf]
  %v135 = vld [vmem:[%s1 + $0x164] sm:$0xf]
  %v136 = vld [vmem:[%s1 + $0x168] sm:$0xf]
  %v137 = vld [vmem:[%s1 + $0x16c] sm:$0xf]
  %v138 = vld [vmem:[%s1 + $0x170] sm:$0xf]
  %v139 = vld [vmem:[%s1 + $0x174] sm:$0xf]
  %v140 = vld [vmem:[%s1 + $0x178] sm:$0xf]
  %v141 = vld [vmem:[%s1 + $0x17c] sm:$0xf]
  %v142 = vld [vmem:[%s1 + $0x180] sm:$0xf]
  %v143 = vld [vmem:[%s1 + $0x184] sm:$0xf]
  %v144 = vld [vmem:[%s1 + $0x188] sm:$0xf]
  %v145 = vld [vmem:[%s1 + $0x18c] sm:$0xf]
  %v146 = vld [vmem:[%s1 + $0x190] sm:$0xf]
  %v147 = vld [vmem:[%s1 + $0x194] sm:$0xf]
  %v148 = vld [vmem:[%s1 + $0x198] sm:$0xf]
  %v149 = vld [vmem:[%s1 + $0x19c] sm:$0xf]
  %v150 = vld [vmem:[%s1 + $0x1a0] sm:$0xf]
  %v151 = vld [vmem:[%s1 + $0x1a4] sm:$0xf]
  %v152 = vld [vmem:[%s1 + $0x1a8] sm:$0xf]
  %v153 = vld [vmem:[%s1 + $0x1ac] sm:$0xf]
  %v154 = vld [vmem:[%s1 + $0x1b0] sm:$0xf]
  %v155 = vld [vmem:[%s1 + $0x1b4] sm:$0xf]
  %v156 = vld [vmem:[%s1 + $0x1b8] sm:$0xf]
  %v157 = vld [vmem:[%s1 + $0x1bc] sm:$0xf]
  %v158 = vld [vmem:[%s1 + $0x1c0] sm:$0xf]
  %v159 = vld [vmem:[%s1 + $0x1c4] sm:$0xf]
  %v160 = vld [vmem:[%s1 + $0x1c8] sm:$0xf]
  %v161 = vld [vmem:[%s1 + $0x1cc] sm:$0xf]
  %v162 = vld [vmem:[%s1 + $0x1d0] sm:$0xf]
  %v163 = vld [vmem:[%s1 + $0x1d4] sm:$0xf]
  %v164 = vld [vmem:[%s1 + $0x1d8] sm:$0xf]
  %v165 = vld [vmem:[%s1 + $0x1dc] sm:$0xf]
  %v166 = vld [vmem:[%s1 + $0x1e0] sm:$0xf]
  %v167 = vld [vmem:[%s1 + $0x1e4] sm:$0xf]
  %v168 = vld [vmem:[%s1 + $0x1e8] sm:$0xf]
  %v169 = vld [vmem:[%s1 + $0x1ec] sm:$0xf]
  %v170 = vld [vmem:[%s1 + $0x1f0] sm:$0xf]
  %v171 = vld [vmem:[%s1 + $0x1f4] sm:$0xf]
  %v172 = vld [vmem:[%s1 + $0x1f8] sm:$0xf]
  %v173 = vld [vmem:[%s1 + $0x1fc] sm:$0xf]
  %v190 = vunpack.c.l.b16 %v30
  %v191 = vunpack.c.h.b16 %v30
  %v192 = vunpack.c.l.b16 %v31
  %v193 = vunpack.c.h.b16 %v31
  %v194 = vunpack.c.l.b16 %v32
  %v195 = vunpack.c.h.b16 %v32
  %v196 = vunpack.c.l.b16 %v33
  %v197 = vunpack.c.h.b16 %v33
  %v198 = vunpack.c.l.b16 %v34
  %v199 = vunpack.c.h.b16 %v34
  %v200 = vunpack.c.l.b16 %v35
  %v201 = vunpack.c.h.b16 %v35
  %v202 = vunpack.c.l.b16 %v36
  %v203 = vunpack.c.h.b16 %v36
  %v204 = vunpack.c.l.b16 %v37
  %v205 = vunpack.c.h.b16 %v37
  %v206 = vunpack.c.l.b16 %v38
  %v207 = vunpack.c.h.b16 %v38
  %v208 = vunpack.c.l.b16 %v39
  %v209 = vunpack.c.h.b16 %v39
  %v210 = vunpack.c.l.b16 %v40
  %v211 = vunpack.c.h.b16 %v40
  %v212 = vunpack.c.l.b16 %v41
  %v213 = vunpack.c.h.b16 %v41
  %v214 = vunpack.c.l.b16 %v42
  %v215 = vunpack.c.h.b16 %v42
  %v216 = vunpack.c.l.b16 %v43
  %v217 = vunpack.c.h.b16 %v43
  %v218 = vunpack.c.l.b16 %v44
  %v219 = vunpack.c.h.b16 %v44
  %v220 = vunpack.c.l.b16 %v45
  %v221 = vunpack.c.h.b16 %v45
  %v222 = vpack.c.b16 %v198, %v190
  %v223 = vpack.c.b16 %v199, %v191
  %v224 = vpack.c.b16 %v200, %v192
  %v225 = vpack.c.b16 %v201, %v193
  %v226 = vpack.c.b16 %v202, %v194
  %v227 = vpack.c.b16 %v203, %v195
  %v228 = vpack.c.b16 %v204, %v196
  %v229 = vpack.c.b16 %v205, %v197
  %v230 = vpack.c.b16 %v214, %v206
  %v231 = vpack.c.b16 %v215, %v207
  %v232 = vpack.c.b16 %v216, %v208
  %v233 = vpack.c.b16 %v217, %v209
  %v234 = vpack.c.b16 %v218, %v210
  %v235 = vpack.c.b16 %v219, %v211
  %v236 = vpack.c.b16 %v220, %v212
  %v237 = vpack.c.b16 %v221, %v213
  %v382 = vunpack.c.l.b16 %v46
  %v383 = vunpack.c.l.b16 %v47
  %v384 = vunpack.c.l.b16 %v48
  %v385 = vunpack.c.l.b16 %v49
  %v386 = vunpack.c.l.b16 %v50
  %v387 = vunpack.c.l.b16 %v51
  %v388 = vunpack.c.l.b16 %v52
  %v389 = vunpack.c.l.b16 %v53
  %v390 = vunpack.c.l.b16 %v54
  %v391 = vunpack.c.l.b16 %v55
  %v392 = vunpack.c.l.b16 %v56
  %v393 = vunpack.c.l.b16 %v57
  %v394 = vunpack.c.l.b16 %v58
  %v395 = vunpack.c.l.b16 %v59
  %v396 = vunpack.c.l.b16 %v60
  %v397 = vunpack.c.l.b16 %v61
  %v398 = vunpack.c.l.b16 %v62
  %v399 = vunpack.c.l.b16 %v63
  %v400 = vunpack.c.l.b16 %v64
  %v401 = vunpack.c.l.b16 %v65
  %v402 = vunpack.c.l.b16 %v66
  %v403 = vunpack.c.l.b16 %v67
  %v404 = vunpack.c.l.b16 %v68
  %v405 = vunpack.c.l.b16 %v69
  %v406 = vunpack.c.l.b16 %v70
  %v407 = vunpack.c.l.b16 %v71
  %v408 = vunpack.c.l.b16 %v72
  %v409 = vunpack.c.l.b16 %v73
  %v410 = vunpack.c.l.b16 %v74
  %v411 = vunpack.c.l.b16 %v75
  %v412 = vunpack.c.l.b16 %v76
  %v413 = vunpack.c.l.b16 %v77
  %v414 = vunpack.c.l.b16 %v78
  %v415 = vunpack.c.l.b16 %v79
  %v416 = vunpack.c.l.b16 %v80
  %v417 = vunpack.c.l.b16 %v81
  %v418 = vunpack.c.l.b16 %v82
  %v419 = vunpack.c.l.b16 %v83
  %v420 = vunpack.c.l.b16 %v84
  %v421 = vunpack.c.l.b16 %v85
  %v422 = vunpack.c.l.b16 %v86
  %v423 = vunpack.c.l.b16 %v87
  %v424 = vunpack.c.l.b16 %v88
  %v425 = vunpack.c.l.b16 %v89
  %v426 = vunpack.c.l.b16 %v90
  %v427 = vunpack.c.l.b16 %v91
  %v428 = vunpack.c.l.b16 %v92
  %v429 = vunpack.c.l.b16 %v93
  %v430 = vunpack.c.l.b16 %v94
  %v431 = vunpack.c.l.b16 %v95
  %v432 = vunpack.c.l.b16 %v96
  %v433 = vunpack.c.l.b16 %v97
  %v434 = vunpack.c.l.b16 %v98
  %v435 = vunpack.c.l.b16 %v99
  %v436 = vunpack.c.l.b16 %v100
  %v437 = vunpack.c.l.b16 %v101
  %v438 = vunpack.c.l.b16 %v102
  %v439 = vunpack.c.l.b16 %v103
  %v440 = vunpack.c.l.b16 %v104
  %v441 = vunpack.c.l.b16 %v105
  %v442 = vunpack.c.l.b16 %v106
  %v443 = vunpack.c.l.b16 %v107
  %v444 = vunpack.c.l.b16 %v108
  %v445 = vunpack.c.l.b16 %v109
  %v446 = vunpack.c.l.b16 %v110
  %v447 = vunpack.c.l.b16 %v111
  %v448 = vunpack.c.l.b16 %v112
  %v449 = vunpack.c.l.b16 %v113
  %v450 = vunpack.c.l.b16 %v114
  %v451 = vunpack.c.l.b16 %v115
  %v452 = vunpack.c.l.b16 %v116
  %v453 = vunpack.c.l.b16 %v117
  %v454 = vunpack.c.l.b16 %v118
  %v455 = vunpack.c.l.b16 %v119
  %v456 = vunpack.c.l.b16 %v120
  %v457 = vunpack.c.l.b16 %v121
  %v458 = vunpack.c.l.b16 %v122
  %v459 = vunpack.c.l.b16 %v123
  %v460 = vunpack.c.l.b16 %v124
  %v461 = vunpack.c.l.b16 %v125
  %v462 = vunpack.c.l.b16 %v126
  %v463 = vunpack.c.l.b16 %v127
  %v464 = vunpack.c.l.b16 %v128
  %v465 = vunpack.c.l.b16 %v129
  %v466 = vunpack.c.l.b16 %v130
  %v467 = vunpack.c.l.b16 %v131
  %v468 = vunpack.c.l.b16 %v132
  %v469 = vunpack.c.l.b16 %v133
  %v470 = vunpack.c.l.b16 %v134
  %v471 = vunpack.c.l.b16 %v135
  %v472 = vunpack.c.l.b16 %v136
  %v473 = vunpack.c.l.b16 %v137
  %v474 = vunpack.c.l.b16 %v138
  %v475 = vunpack.c.l.b16 %v139
  %v476 = vunpack.c.l.b16 %v140
  %v477 = vunpack.c.l.b16 %v141
  %v478 = vunpack.c.l.b16 %v142
  %v479 = vunpack.c.l.b16 %v143
  %v480 = vunpack.c.l.b16 %v144
  %v481 = vunpack.c.l.b16 %v145
  %v482 = vunpack.c.l.b16 %v146
  %v483 = vunpack.c.l.b16 %v147
  %v484 = vunpack.c.l.b16 %v148
  %v485 = vunpack.c.l.b16 %v149
  %v486 = vunpack.c.l.b16 %v150
  %v487 = vunpack.c.l.b16 %v151
  %v488 = vunpack.c.l.b16 %v152
  %v489 = vunpack.c.l.b16 %v153
  %v490 = vunpack.c.l.b16 %v154
  %v491 = vunpack.c.l.b16 %v155
  %v492 = vunpack.c.l.b16 %v156
  %v493 = vunpack.c.l.b16 %v157
  %v494 = vunpack.c.l.b16 %v158
  %v495 = vunpack.c.l.b16 %v159
  %v496 = vunpack.c.l.b16 %v160
  %v497 = vunpack.c.l.b16 %v161
  %v498 = vunpack.c.l.b16 %v162
  %v499 = vunpack.c.l.b16 %v163
  %v500 = vunpack.c.l.b16 %v164
  %v501 = vunpack.c.l.b16 %v165
  %v502 = vunpack.c.l.b16 %v166
  %v503 = vunpack.c.l.b16 %v167
  %v504 = vunpack.c.l.b16 %v168
  %v505 = vunpack.c.l.b16 %v169
  %v506 = vunpack.c.l.b16 %v170
  %v507 = vunpack.c.l.b16 %v171
  %v508 = vunpack.c.l.b16 %v172
  %v509 = vunpack.c.l.b16 %v173
  %v510 = vpack.c.b16 %v383, %v382
  %v511 = vpack.c.b16 %v385, %v384
  %v512 = vpack.c.b16 %v387, %v386
  %v513 = vpack.c.b16 %v389, %v388
  %v514 = vpack.c.b16 %v391, %v390
  %v515 = vpack.c.b16 %v393, %v392
  %v516 = vpack.c.b16 %v395, %v394
  %v517 = vpack.c.b16 %v397, %v396
  %v518 = vpack.c.b16 %v399, %v398
  %v519 = vpack.c.b16 %v401, %v400
  %v520 = vpack.c.b16 %v403, %v402
  %v521 = vpack.c.b16 %v405, %v404
  %v522 = vpack.c.b16 %v407, %v406
  %v523 = vpack.c.b16 %v409, %v408
  %v524 = vpack.c.b16 %v411, %v410
  %v525 = vpack.c.b16 %v413, %v412
  %v526 = vpack.c.b16 %v415, %v414
  %v527 = vpack.c.b16 %v417, %v416
  %v528 = vpack.c.b16 %v419, %v418
  %v529 = vpack.c.b16 %v421, %v420
  %v530 = vpack.c.b16 %v423, %v422
  %v531 = vpack.c.b16 %v425, %v424
  %v532 = vpack.c.b16 %v427, %v426
  %v533 = vpack.c.b16 %v429, %v428
  %v534 = vpack.c.b16 %v431, %v430
  %v535 = vpack.c.b16 %v433, %v432
  %v536 = vpack.c.b16 %v435, %v434
  %v537 = vpack.c.b16 %v437, %v436
  %v538 = vpack.c.b16 %v439, %v438
  %v539 = vpack.c.b16 %v441, %v440
  %v540 = vpack.c.b16 %v443, %v442
  %v541 = vpack.c.b16 %v445, %v444
  %v542 = vpack.c.b16 %v447, %v446
  %v543 = vpack.c.b16 %v449, %v448
  %v544 = vpack.c.b16 %v451, %v450
  %v545 = vpack.c.b16 %v453, %v452
  %v546 = vpack.c.b16 %v455, %v454
  %v547 = vpack.c.b16 %v457, %v456
  %v548 = vpack.c.b16 %v459, %v458
  %v549 = vpack.c.b16 %v461, %v460
  %v550 = vpack.c.b16 %v463, %v462
  %v551 = vpack.c.b16 %v465, %v464
  %v552 = vpack.c.b16 %v467, %v466
  %v553 = vpack.c.b16 %v469, %v468
  %v554 = vpack.c.b16 %v471, %v470
  %v555 = vpack.c.b16 %v473, %v472
  %v556 = vpack.c.b16 %v475, %v474
  %v557 = vpack.c.b16 %v477, %v476
  %v558 = vpack.c.b16 %v479, %v478
  %v559 = vpack.c.b16 %v481, %v480
  %v560 = vpack.c.b16 %v483, %v482
  %v561 = vpack.c.b16 %v485, %v484
  %v562 = vpack.c.b16 %v487, %v486
  %v563 = vpack.c.b16 %v489, %v488
  %v564 = vpack.c.b16 %v491, %v490
  %v565 = vpack.c.b16 %v493, %v492
  %v566 = vpack.c.b16 %v495, %v494
  %v567 = vpack.c.b16 %v497, %v496
  %v568 = vpack.c.b16 %v499, %v498
  %v569 = vpack.c.b16 %v501, %v500
  %v570 = vpack.c.b16 %v503, %v502
  %v571 = vpack.c.b16 %v505, %v504
  %v572 = vpack.c.b16 %v507, %v506
  %v573 = vpack.c.b16 %v509, %v508
  %638 = vmatprep.subr.bf16.mxu0 0
  %639 = vmatpush1.bf16.msra.mxu0 %v517
  %640 = vmatprep.subr.bf16.mxu0 0
  %641 = vmatpush1.bf16.msra.mxu0 %v516
  %642 = vmatprep.subr.bf16.mxu0 0
  %643 = vmatpush1.bf16.msra.mxu0 %v515
  %644 = vmatprep.subr.bf16.mxu0 0
  %645 = vmatpush1.bf16.msra.mxu0 %v514
  %646 = vmatprep.subr.bf16.mxu0 0
  %647 = vmatpush1.bf16.msra.mxu0 %v513
  %648 = vmatprep.subr.bf16.mxu0 0
  %649 = vmatpush1.bf16.msra.mxu0 %v512
  %650 = vmatprep.subr.bf16.mxu0 0
  %651 = vmatpush1.bf16.msra.mxu0 %v511
  %652 = vmatprep.subr.bf16.mxu0 0
  %653 = vmatpush1.bf16.msra.mxu0 %v510
  %654 = vmatprep.subr.bf16.mxu0 0
  %655 = vmatpush2.bf16.msra.mxu0 %v525
  %656 = vmatprep.subr.bf16.mxu0 0
  %657 = vmatpush2.bf16.msra.mxu0 %v524
  %658 = vmatprep.subr.bf16.mxu0 0
  %659 = vmatpush2.bf16.msra.mxu0 %v523
  %660 = vmatprep.subr.bf16.mxu0 0
  %661 = vmatpush2.bf16.msra.mxu0 %v522
  %662 = vmatprep.subr.bf16.mxu0 0
  %663 = vmatpush2.bf16.msra.mxu0 %v521
  %664 = vmatprep.subr.bf16.mxu0 0
  %665 = vmatpush2.bf16.msra.mxu0 %v520
  %666 = vmatprep.subr.bf16.mxu0 0
  %667 = vmatpush2.bf16.msra.mxu0 %v519
  %668 = vmatprep.subr.bf16.mxu0 0
  %669 = vmatpush2.bf16.msra.mxu0 %v518
  %670 = vmatprep.mubr.bf16.mxu0 %v223
  %671 = vmatmul.mubr.bf16.gmra.mxu0 %v222
  %v672 = vpop.f32.mrf.mxu0
  %v673 = vadd.f32 0.0, %v672
  %v674 = vpop.f32.mrf.mxu0
  %v675 = vpop.f32.mrf.mxu0
  %v676 = vadd.f32 0.0, %v675
  %v677 = vpop.f32.mrf.mxu0
  %678 = vmatprep.mubr.bf16.mxu0 %v231
  %679 = vmatmul.mubr.bf16.gmra.mxu0 %v230
  %v680 = vpop.f32.mrf.mxu0
  %v681 = vadd.f32 0.0, %v680
  %v682 = vpop.f32.mrf.mxu0
  %v683 = vpop.f32.mrf.mxu0
  %v684 = vadd.f32 0.0, %v683
  %v685 = vpop.f32.mrf.mxu0
  %686 = vdwg.mxu0
  %687 = vmatprep.subr.bf16.mxu0 0
  %688 = vmatpush1.bf16.msra.mxu0 %v533
  %689 = vmatprep.subr.bf16.mxu0 0
  %690 = vmatpush1.bf16.msra.mxu0 %v532
  %691 = vmatprep.subr.bf16.mxu0 0
  %692 = vmatpush1.bf16.msra.mxu0 %v531
  %693 = vmatprep.subr.bf16.mxu0 0
  %694 = vmatpush1.bf16.msra.mxu0 %v530
  %695 = vmatprep.subr.bf16.mxu0 0
  %696 = vmatpush1.bf16.msra.mxu0 %v529
  %697 = vmatprep.subr.bf16.mxu0 0
  %698 = vmatpush1.bf16.msra.mxu0 %v528
  %699 = vmatprep.subr.bf16.mxu0 0
  %700 = vmatpush1.bf16.msra.mxu0 %v527
  %701 = vmatprep.subr.bf16.mxu0 0
  %702 = vmatpush1.bf16.msra.mxu0 %v526
  %703 = vmatprep.subr.bf16.mxu0 0
  %704 = vmatpush2.bf16.msra.mxu0 %v541
  %705 = vmatprep.subr.bf16.mxu0 0
  %706 = vmatpush2.bf16.msra.mxu0 %v540
  %707 = vmatprep.subr.bf16.mxu0 0
  %708 = vmatpush2.bf16.msra.mxu0 %v539
  %709 = vmatprep.subr.bf16.mxu0 0
  %710 = vmatpush2.bf16.msra.mxu0 %v538
  %711 = vmatprep.subr.bf16.mxu0 0
  %712 = vmatpush2.bf16.msra.mxu0 %v537
  %713 = vmatprep.subr.bf16.mxu0 0
  %714 = vmatpush2.bf16.msra.mxu0 %v536
  %715 = vmatprep.subr.bf16.mxu0 0
  %716 = vmatpush2.bf16.msra.mxu0 %v535
  %717 = vmatprep.subr.bf16.mxu0 0
  %718 = vmatpush2.bf16.msra.mxu0 %v534
  %719 = vmatprep.mubr.bf16.mxu0 %v225
  %720 = vmatmul.mubr.bf16.gmra.mxu0 %v224
  %v721 = vpop.f32.mrf.mxu0
  %v722 = vadd.f32 %v673, %v721
  %v723 = vpop.f32.mrf.mxu0
  %v724 = vpop.f32.mrf.mxu0
  %v725 = vadd.f32 %v676, %v724
  %v726 = vpop.f32.mrf.mxu0
  %727 = vmatprep.mubr.bf16.mxu0 %v233
  %728 = vmatmul.mubr.bf16.gmra.mxu0 %v232
  %v729 = vpop.f32.mrf.mxu0
  %v730 = vadd.f32 %v681, %v729
  %v731 = vpop.f32.mrf.mxu0
  %v732 = vpop.f32.mrf.mxu0
  %v733 = vadd.f32 %v684, %v732
  %v734 = vpop.f32.mrf.mxu0
  %735 = vdwg.mxu0
  %736 = vmatprep.subr.bf16.mxu0 0
  %737 = vmatpush1.bf16.msra.mxu0 %v549
  %738 = vmatprep.subr.bf16.mxu0 0
  %739 = vmatpush1.bf16.msra.mxu0 %v548
  %740 = vmatprep.subr.bf16.mxu0 0
  %741 = vmatpush1.bf16.msra.mxu0 %v547
  %742 = vmatprep.subr.bf16.mxu0 0
  %743 = vmatpush1.bf16.msra.mxu0 %v546
  %744 = vmatprep.subr.bf16.mxu0 0
  %745 = vmatpush1.bf16.msra.mxu0 %v545
  %746 = vmatprep.subr.bf16.mxu0 0
  %747 = vmatpush1.bf16.msra.mxu0 %v544
  %748 = vmatprep.subr.bf16.mxu0 0
  %749 = vmatpush1.bf16.msra.mxu0 %v543
  %750 = vmatprep.subr.bf16.mxu0 0
  %751 = vmatpush1.bf16.msra.mxu0 %v542
  %752 = vmatprep.subr.bf16.mxu0 0
  %753 = vmatpush2.bf16.msra.mxu0 %v557
  %754 = vmatprep.subr.bf16.mxu0 0
  %755 = vmatpush2.bf16.msra.mxu0 %v556
  %756 = vmatprep.subr.bf16.mxu0 0
  %757 = vmatpush2.bf16.msra.mxu0 %v555
  %758 = vmatprep.subr.bf16.mxu0 0
  %759 = vmatpush2.bf16.msra.mxu0 %v554
  %760 = vmatprep.subr.bf16.mxu0 0
  %761 = vmatpush2.bf16.msra.mxu0 %v553
  %762 = vmatprep.subr.bf16.mxu0 0
  %763 = vmatpush2.bf16.msra.mxu0 %v552
  %764 = vmatprep.subr.bf16.mxu0 0
  %765 = vmatpush2.bf16.msra.mxu0 %v551
  %766 = vmatprep.subr.bf16.mxu0 0
  %767 = vmatpush2.bf16.msra.mxu0 %v550
  %768 = vmatprep.mubr.bf16.mxu0 %v227
  %769 = vmatmul.mubr.bf16.gmra.mxu0 %v226
  %v770 = vpop.f32.mrf.mxu0
  %v771 = vadd.f32 %v722, %v770
  %v772 = vpop.f32.mrf.mxu0
  %v773 = vpop.f32.mrf.mxu0
  %v774 = vadd.f32 %v725, %v773
  %v775 = vpop.f32.mrf.mxu0
  %776 = vmatprep.mubr.bf16.mxu0 %v235
  %777 = vmatmul.mubr.bf16.gmra.mxu0 %v234
  %v778 = vpop.f32.mrf.mxu0
  %v779 = vadd.f32 %v730, %v778
  %v780 = vpop.f32.mrf.mxu0
  %v781 = vpop.f32.mrf.mxu0
  %v782 = vadd.f32 %v733, %v781
  %v783 = vpop.f32.mrf.mxu0
  %784 = vdwg.mxu0
  %785 = vmatprep.subr.bf16.mxu0 0
  %786 = vmatpush1.bf16.msra.mxu0 %v565
  %787 = vmatprep.subr.bf16.mxu0 0
  %788 = vmatpush1.bf16.msra.mxu0 %v564
  %789 = vmatprep.subr.bf16.mxu0 0
  %790 = vmatpush1.bf16.msra.mxu0 %v563
  %791 = vmatprep.subr.bf16.mxu0 0
  %792 = vmatpush1.bf16.msra.mxu0 %v562
  %793 = vmatprep.subr.bf16.mxu0 0
  %794 = vmatpush1.bf16.msra.mxu0 %v561
  %795 = vmatprep.subr.bf16.mxu0 0
  %796 = vmatpush1.bf16.msra.mxu0 %v560
  %797 = vmatprep.subr.bf16.mxu0 0
  %798 = vmatpush1.bf16.msra.mxu0 %v559
  %799 = vmatprep.subr.bf16.mxu0 0
  %800 = vmatpush1.bf16.msra.mxu0 %v558
  %801 = vmatprep.subr.bf16.mxu0 0
  %802 = vmatpush2.bf16.msra.mxu0 %v573
  %803 = vmatprep.subr.bf16.mxu0 0
  %804 = vmatpush2.bf16.msra.mxu0 %v572
  %805 = vmatprep.subr.bf16.mxu0 0
  %806 = vmatpush2.bf16.msra.mxu0 %v571
  %807 = vmatprep.subr.bf16.mxu0 0
  %808 = vmatpush2.bf16.msra.mxu0 %v570
  %809 = vmatprep.subr.bf16.mxu0 0
  %810 = vmatpush2.bf16.msra.mxu0 %v569
  %811 = vmatprep.subr.bf16.mxu0 0
  %812 = vmatpush2.bf16.msra.mxu0 %v568
  %813 = vmatprep.subr.bf16.mxu0 0
  %814 = vmatpush2.bf16.msra.mxu0 %v567
  %815 = vmatprep.subr.bf16.mxu0 0
  %816 = vmatpush2.bf16.msra.mxu0 %v566
  %817 = vmatprep.mubr.bf16.mxu0 %v229
  %818 = vmatmul.mubr.bf16.gmra.mxu0 %v228
  %v819 = vpop.f32.mrf.mxu0
  %v820 = vadd.f32 %v771, %v819
  %v821 = vpop.f32.mrf.mxu0
  %v822 = vpop.f32.mrf.mxu0
  %v823 = vadd.f32 %v774, %v822
  %v824 = vpop.f32.mrf.mxu0
  %825 = vmatprep.mubr.bf16.mxu0 %v237
  %826 = vmatmul.mubr.bf16.gmra.mxu0 %v236
  %v827 = vpop.f32.mrf.mxu0
  %v828 = vadd.f32 %v779, %v827
  %v829 = vpop.f32.mrf.mxu0
  %v830 = vpop.f32.mrf.mxu0
  %v831 = vadd.f32 %v782, %v830
  %v832 = vpop.f32.mrf.mxu0
  %833 = vdwg.mxu0
  %v834 = vadd.f32 %v26, %v820
  %v835 = vadd.f32 %v27, %v823
  %v836 = vadd.f32 %v28, %v828
  %v837 = vadd.f32 %v29, %v831
  %838 = vst [vmem:[#allocation2] sm:$0xff] %v834
  %839 = vst [vmem:[#allocation2 + $0x8] sm:$0xff] %v835
  %840 = vst [vmem:[#allocation2 + $0x10] sm:$0xff] %v836
  %841 = vst [vmem:[#allocation2 + $0x18] sm:$0xff] %v837
  // Predicated region
  $region18: #{discriminator_forward.5} parent=0 // pred_check
    %p842 = pneg %p18
  $region19: #{discriminator_forward.5} parent=0 // pred_check_branch
    %844 = sbr.rel (%p842) target = $region21
  $region20: #{discriminator_forward.5} parent=0 // pred_region
    %v845 = vld [vmem:[#allocation2] sm:$0xff]
    %v846 = vld [vmem:[#allocation2 + $0x8] sm:$0xff]
    %v847 = vld [vmem:[#allocation2 + $0x10] sm:$0xff]
    %v848 = vld [vmem:[#allocation2 + $0x18] sm:$0xff]
    %v849 = vld [vmem:[%s2] sm:$0x1]
    %v851 = vlaneseq
    %v852 = vshrl.u32 %v851, 7
    %v853 = vsub.s32 0, %v852
    %v854 = vrot.slane %v849, %v853
    %v856 = vadd.f32 %v845, %v854
    %v857 = vadd.f32 %v846, %v854
    %v858 = vadd.f32 %v847, %v854
    %v859 = vadd.f32 %v848, %v854
    %860 = vst [vmem:[%s3] sm:$0xff] %v856
    %861 = vst [vmem:[%s3 + $0x8] sm:$0xff] %v857
    %862 = vst [vmem:[%s3 + $0x10] sm:$0xff] %v858
    %863 = vst [vmem:[%s3 + $0x18] sm:$0xff] %v859
    %v864 = vadd.f32 %v856, %v857
    %v865 = vadd.f32 %v864, %v858
    %v866 = vadd.f32 %v865, %v859
    %v867 = vrot.slane %v866, 4
    %v868 = vadd.f32 %v866, %v867
    %v869 = vrot.slane %v868, 2
    %v870 = vadd.f32 %v868, %v869
    %v871 = vrot.slane %v870, 1
    %v872 = vadd.f32 %v870, %v871
    %v873 = vmul.f32 %v856, %v856
    %v874 = vmul.f32 %v857, %v857
    %v875 = vmul.f32 %v858, %v858
    %v876 = vmul.f32 %v859, %v859
    %v877 = vadd.f32 %v873, %v874
    %v878 = vadd.f32 %v877, %v875
    %v879 = vadd.f32 %v878, %v876
    %v880 = vrot.slane %v879, 4
    %v881 = vadd.f32 %v879, %v880
    %v882 = vrot.slane %v881, 2
    %v883 = vadd.f32 %v881, %v882
    %v884 = vrot.slane %v883, 1
    %v885 = vadd.f32 %v883, %v884
    %886 = vst [vmem:[%s4] sm:$0x1] %v872
    %887 = vst [vmem:[%s5] sm:$0x1] %v885
  $region21: #{discriminator_forward.5} parent=0 // pred_fallthru
    _
  // Predicated region
  $region22: #{discriminator_forward.5} parent=0 // pred_check
    _
  $region23: #{discriminator_forward.5} parent=0 // pred_check_branch
    %889 = sbr.rel (0) target = $region25
  $region24: #{discriminator_forward.5} parent=0 // pred_region
    _
  $region25: #{discriminator_forward.5} parent=0 // pred_fallthru
    _
  // Predicated region
  $region26: #{discriminator_forward.5} parent=0 // pred_check
    _
  $region27: #{discriminator_forward.5} parent=0 // pred_check_branch
    %891 = sbr.rel (0) target = $region29
  $region28: #{discriminator_forward.5} parent=0 // pred_region
    _
  $region29: #{discriminator_forward.5} parent=0 // pred_fallthru
    _
  // Predicated region
  $region30: #{discriminator_forward.5} parent=0 // pred_check
    _
  $region31: #{discriminator_forward.5} parent=0 // pred_check_branch
    %893 = sbr.rel (0) target = $region33
  $region32: #{discriminator_forward.5} parent=0 // pred_region
    _
  $region33: #{discriminator_forward.5} parent=0 // pred_fallthru
    _
  // Predicated region
  $region34: #{discriminator_forward.5} parent=0 // pred_check
    _
  $region35: #{discriminator_forward.5} parent=0 // pred_check_branch
    %895 = sbr.rel (0) target = $region37
  $region36: #{discriminator_forward.5} parent=0 // pred_region
    _
  $region37: #{discriminator_forward.5} parent=0 // pred_fallthru
    _
  // Predicated region
  $region38: #{discriminator_forward.5} parent=0 // pred_check
    _
  $region39: #{discriminator_forward.5} parent=0 // pred_check_branch
    %897 = sbr.rel (0) target = $region41
  $region40: #{discriminator_forward.5} parent=0 // pred_region
    _
  $region41: #{discriminator_forward.5} parent=0 // pred_fallthru
    _
  // Predicated region
  $region42: #{discriminator_forward.5} parent=0 // pred_check
    _
  $region43: #{discriminator_forward.5} parent=0 // pred_check_branch
    %899 = sbr.rel (0) target = $region45
  $region44: #{discriminator_forward.5} parent=0 // pred_region
    _
  $region45: #{discriminator_forward.5} parent=0 // pred_fallthru
    _

// kernel: discriminator_forward.7
$region0: #{discriminator_forward.7}
  #allocation0 [shape = 'u32[]', space=smem, size = 0x4, offset = 0x4, fixed_abs, tag = 'smem constant byte address 0x4 - core index']
  #allocation1 [shape = 'u32[144,128]{1,0:T(1,128)}', space=vmem, size = 0x12000, scoped, tag = 'internal scratch']
  #allocation2 [shape = 'f32[2,1024]{1,0:T(2,128)}', space=vmem, size = 0x2000, scoped, tag = 'scratch operand']
  %s0 = inlined_call_operand.vmem [shape: bf16[2,2048], index: 0, kind: input, shape index: {}]
  %s1 = inlined_call_operand.vmem [shape: bf16[2048,1024], index: 1, kind: input, shape index: {}]
  %s2 = inlined_call_operand.vmem [shape: f32[1,1024], index: 2, kind: input, shape index: {}]
  %s3 = inlined_call_operand.vmem [shape: f32[1,1024], index: 3, kind: input, shape index: {}]
  %s4 = inlined_call_operand.vmem [shape: f32[1,1024], index: 4, kind: input, shape index: {}]
  %s5 = inlined_call_operand.vmem [shape: bf16[1024,128], index: 5, kind: input, shape index: {}]
  %s6 = inlined_call_operand.vmem [shape: f32[1,128], index: 6, kind: input, shape index: {}]
  %s7 = inlined_call_operand.vmem [shape: f32[2,128], index: 7, kind: output, shape index: {}]
  %s8 = sld [smem:[#allocation0]]
  $region69: #{discriminator_forward.7} parent=0
    _
  %s10 = ssub.s32 1, %s8
  %s11 = scalar_select 0, %s10, %s8
  loop: start=0, step=1, limit=6
  $region2: #{discriminator_forward.7} parent=0 // loop_pre_header
    _
  $region3: #{discriminator_forward.7} parent=0 // loop_header
    %s13 = sphi 0, %s17
    %p14 = scmp.ge.s32.totalorder %s13, 6
    %s23 = sphi 0, %s25
    %s26 = sphi 0, %s23
    %s27 = sphi 0, %s26
    %s43 = sphi 0, %s27
    %s49 = sphi 0, %s51
    %s52 = sphi 0, %s49
    %s53 = sphi 0, %s52
    %s69 = sphi 0, %s53
    %s73 = sphi 0, %s73
    %s75 = sphi 0, %s73
    %s76 = sphi 0, %s75
    %s90 = sphi 0, %s76
    %s94 = sphi 0, %s94
    %s96 = sphi 0, %s94
    %s97 = sphi 0, %s96
    %s111 = sphi 0, %s97
    %s115 = sphi 0, %s115
    %s117 = sphi 0, %s115
    %s118 = sphi 0, %s117
    %s132 = sphi 0, %s118
    %s136 = sphi 0, %s136
    %s138 = sphi 0, %s136
    %s139 = sphi 0, %s138
    %s153 = sphi 0, %s139
    %s157 = sphi 0, %s157
    %s159 = sphi 0, %s157
    %s160 = sphi 0, %s159
    %s174 = sphi 0, %s160
    %s178 = sphi 0, %s178
    %s180 = sphi 0, %s178
    %s181 = sphi 0, %s180
    %s195 = sphi 0, %s181
  $region4: #{discriminator_forward.7} parent=0 // loop_header_branch
    %16 = sbr.rel (%p14) target = $region8
  $region5: #{discriminator_forward.7} parent=0 // loop_body
    %s18 = ssub.s32 %s13, 1
    %s19 = ssub.s32 %s13, 2
    %s20 = sadd.s32 %s13, 1
    %s21 = ssub.s32 %s13, %s20
    %p22 = scmp.eq.s32.totalorder %s21, 0
    %s24 = sadd.s32 %s23, 1
    %s25 = scalar_select %p22, %s23, %s24
    %p28 = pneg %p22
    %p29 = scmp.eq.s32.totalorder %s13, 3
    %p30 = por %p28, %p29
    %p31 = scmp.ne.s32.totalorder %s23, %s26
    %p32 = scmp.eq.s32.totalorder %s13, 0
    %p33 = por %p31, %p32
    %p34 = scmp.ne.s32.totalorder %s23, %s26
    %p35 = scmp.eq.s32.totalorder %s18, 3
    %p36 = por %p34, %p35
    %p37 = scmp.ne.s32.totalorder %s26, %s27
    %p38 = scmp.eq.s32.totalorder %s18, 0
    %p39 = por %p37, %p38
    %p40 = scmp.ne.s32.totalorder %s26, %s27
    %p41 = scmp.eq.s32.totalorder %s19, 3
    %p42 = por %p40, %p41
    %p44 = scmp.ne.s32.totalorder %s27, %s43
    %p45 = scmp.eq.s32.totalorder %s19, 0
    %p46 = por %p44, %p45
    %s47 = ssub.s32 %s13, %s20
    %p48 = scmp.eq.s32.totalorder %s47, 0
    %s50 = sadd.s32 %s49, 1
    %s51 = scalar_select %p48, %s49, %s50
    %p54 = pneg %p48
    %p55 = scmp.eq.s32.totalorder %s13, 3
    %p56 = por %p54, %p55
    %p57 = scmp.ne.s32.totalorder %s49, %s52
    %p58 = scmp.eq.s32.totalorder %s13, 0
    %p59 = por %p57, %p58
    %p60 = scmp.ne.s32.totalorder %s49, %s52
    %p61 = scmp.eq.s32.totalorder %s18, 3
    %p62 = por %p60, %p61
    %p63 = scmp.ne.s32.totalorder %s52, %s53
    %p64 = scmp.eq.s32.totalorder %s18, 0
    %p65 = por %p63, %p64
    %p66 = scmp.ne.s32.totalorder %s52, %s53
    %p67 = scmp.eq.s32.totalorder %s19, 3
    %p68 = por %p66, %p67
    %p70 = scmp.ne.s32.totalorder %s53, %s69
    %p71 = scmp.eq.s32.totalorder %s19, 0
    %p72 = por %p70, %p71
    %s74 = sadd.s32 %s73, 1
    %p77 = scmp.eq.s32.totalorder %s13, 3
    %p78 = scmp.ne.s32.totalorder %s73, %s75
    %p79 = scmp.eq.s32.totalorder %s13, 0
    %p80 = por %p78, %p79
    %p81 = scmp.ne.s32.totalorder %s73, %s75
    %p82 = scmp.eq.s32.totalorder %s18, 3
    %p83 = por %p81, %p82
    %p84 = scmp.ne.s32.totalorder %s75, %s76
    %p85 = scmp.eq.s32.totalorder %s18, 0
    %p86 = por %p84, %p85
    %p87 = scmp.ne.s32.totalorder %s75, %s76
    %p88 = scmp.eq.s32.totalorder %s19, 3
    %p89 = por %p87, %p88
    %p91 = scmp.ne.s32.totalorder %s76, %s90
    %p92 = scmp.eq.s32.totalorder %s19, 0
    %p93 = por %p91, %p92
    %s95 = sadd.s32 %s94, 1
    %p98 = scmp.eq.s32.totalorder %s13, 3
    %p99 = scmp.ne.s32.totalorder %s94, %s96
    %p100 = scmp.eq.s32.totalorder %s13, 0
    %p101 = por %p99, %p100
    %p102 = scmp.ne.s32.totalorder %s94, %s96
    %p103 = scmp.eq.s32.totalorder %s18, 3
    %p104 = por %p102, %p103
    %p105 = scmp.ne.s32.totalorder %s96, %s97
    %p106 = scmp.eq.s32.totalorder %s18, 0
    %p107 = por %p105, %p106
    %p108 = scmp.ne.s32.totalorder %s96, %s97
    %p109 = scmp.eq.s32.totalorder %s19, 3
    %p110 = por %p108, %p109
    %p112 = scmp.ne.s32.totalorder %s97, %s111
    %p113 = scmp.eq.s32.totalorder %s19, 0
    %p114 = por %p112, %p113
    %s116 = sadd.s32 %s115, 1
    %p119 = scmp.eq.s32.totalorder %s13, 3
    %p120 = scmp.ne.s32.totalorder %s115, %s117
    %p121 = scmp.eq.s32.totalorder %s13, 0
    %p122 = por %p120, %p121
    %p123 = scmp.ne.s32.totalorder %s115, %s117
    %p124 = scmp.eq.s32.totalorder %s18, 3
    %p125 = por %p123, %p124
    %p126 = scmp.ne.s32.totalorder %s117, %s118
    %p127 = scmp.eq.s32.totalorder %s18, 0
    %p128 = por %p126, %p127
    %p129 = scmp.ne.s32.totalorder %s117, %s118
    %p130 = scmp.eq.s32.totalorder %s19, 3
    %p131 = por %p129, %p130
    %p133 = scmp.ne.s32.totalorder %s118, %s132
    %p134 = scmp.eq.s32.totalorder %s19, 0
    %p135 = por %p133, %p134
    %s137 = sadd.s32 %s136, 1
    %p140 = scmp.eq.s32.totalorder %s13, 3
    %p141 = scmp.ne.s32.totalorder %s136, %s138
    %p142 = scmp.eq.s32.totalorder %s13, 0
    %p143 = por %p141, %p142
    %p144 = scmp.ne.s32.totalorder %s136, %s138
    %p145 = scmp.eq.s32.totalorder %s18, 3
    %p146 = por %p144, %p145
    %p147 = scmp.ne.s32.totalorder %s138, %s139
    %p148 = scmp.eq.s32.totalorder %s18, 0
    %p149 = por %p147, %p148
    %p150 = scmp.ne.s32.totalorder %s138, %s139
    %p151 = scmp.eq.s32.totalorder %s19, 3
    %p152 = por %p150, %p151
    %p154 = scmp.ne.s32.totalorder %s139, %s153
    %p155 = scmp.eq.s32.totalorder %s19, 0
    %p156 = por %p154, %p155
    %s158 = sadd.s32 %s157, 1
    %p161 = scmp.eq.s32.totalorder %s13, 3
    %p162 = scmp.ne.s32.totalorder %s157, %s159
    %p163 = scmp.eq.s32.totalorder %s13, 0
    %p164 = por %p162, %p163
    %p165 = scmp.ne.s32.totalorder %s157, %s159
    %p166 = scmp.eq.s32.totalorder %s18, 3
    %p167 = por %p165, %p166
    %p168 = scmp.ne.s32.totalorder %s159, %s160
    %p169 = scmp.eq.s32.totalorder %s18, 0
    %p170 = por %p168, %p169
    %p171 = scmp.ne.s32.totalorder %s159, %s160
    %p172 = scmp.eq.s32.totalorder %s19, 3
    %p173 = por %p171, %p172
    %p175 = scmp.ne.s32.totalorder %s160, %s174
    %p176 = scmp.eq.s32.totalorder %s19, 0
    %p177 = por %p175, %p176
    %s179 = sadd.s32 %s178, 1
    %p182 = scmp.eq.s32.totalorder %s13, 3
    %p183 = scmp.ne.s32.totalorder %s178, %s180
    %p184 = scmp.eq.s32.totalorder %s13, 0
    %p185 = por %p183, %p184
    %p186 = scmp.ne.s32.totalorder %s178, %s180
    %p187 = scmp.eq.s32.totalorder %s18, 3
    %p188 = por %p186, %p187
    %p189 = scmp.ne.s32.totalorder %s180, %s181
    %p190 = scmp.eq.s32.totalorder %s18, 0
    %p191 = por %p189, %p190
    %p192 = scmp.ne.s32.totalorder %s180, %s181
    %p193 = scmp.eq.s32.totalorder %s19, 3
    %p194 = por %p192, %p193
    %p196 = scmp.ne.s32.totalorder %s181, %s195
    %p197 = scmp.eq.s32.totalorder %s19, 0
    %p198 = por %p196, %p197
    %p199 = scmp.le.s32.totalorder 1, %s13
    %p200 = scmp.lt.s32.totalorder %s13, 5
    %p201 = pnand %p199, %p200
    %p202 = pneg %p201
    // Predicated region
    $region9: #{discriminator_forward.7} parent=5 // pred_check
      _
    $region10: #{discriminator_forward.7} parent=5 // pred_check_branch
      %204 = sbr.rel (%p201) target = $region12
    $region11: #{discriminator_forward.7} parent=5 // pred_region
      %s205 = ssub.s32 %s13, 1
      // Predicated region
      $region13: #{discriminator_forward.7} parent=11 // pred_check
        %p206 = pneg %p86
      $region14: #{discriminator_forward.7} parent=11 // pred_check_branch
        %208 = sbr.rel (%p206) target = $region16
      $region15: #{discriminator_forward.7} parent=11 // pred_region
        _
      $region16: #{discriminator_forward.7} parent=11 // pred_fallthru
        _
      // Predicated region
      $region17: #{discriminator_forward.7} parent=11 // pred_check
        %p209 = pneg %p107
      $region18: #{discriminator_forward.7} parent=11 // pred_check_branch
        %211 = sbr.rel (%p209) target = $region20
      $region19: #{discriminator_forward.7} parent=11 // pred_region
        _
      $region20: #{discriminator_forward.7} parent=11 // pred_fallthru
        _
      // Predicated region
      $region21: #{discriminator_forward.7} parent=11 // pred_check
        %p212 = pneg %p128
      $region22: #{discriminator_forward.7} parent=11 // pred_check_branch
        %214 = sbr.rel (%p212) target = $region24
      $region23: #{discriminator_forward.7} parent=11 // pred_region
        _
      $region24: #{discriminator_forward.7} parent=11 // pred_fallthru
        _
      // Predicated region
      $region25: #{discriminator_forward.7} parent=11 // pred_check
        %p215 = pneg %p149
      $region26: #{discriminator_forward.7} parent=11 // pred_check_branch
        %217 = sbr.rel (%p215) target = $region28
      $region27: #{discriminator_forward.7} parent=11 // pred_region
        _
      $region28: #{discriminator_forward.7} parent=11 // pred_fallthru
        _
      // Predicated region
      $region29: #{discriminator_forward.7} parent=11 // pred_check
        %p218 = pneg %p170
      $region30: #{discriminator_forward.7} parent=11 // pred_check_branch
        %220 = sbr.rel (%p218) target = $region32
      $region31: #{discriminator_forward.7} parent=11 // pred_region
        _
      $region32: #{discriminator_forward.7} parent=11 // pred_fallthru
        _
    $region12: #{discriminator_forward.7} parent=5 // pred_fallthru
      _
    %p221 = scmp.lt.s32.totalorder %s13, 4
    // Predicated region
    $region33: #{discriminator_forward.7} parent=5 // pred_check
      %p222 = pneg %p221
    $region34: #{discriminator_forward.7} parent=5 // pred_check_branch
      %224 = sbr.rel (%p222) target = $region36
    $region35: #{discriminator_forward.7} parent=5 // pred_region
      // Predicated region
      $region37: #{discriminator_forward.7} parent=35 // pred_check
        %p225 = pneg %p33
      $region38: #{discriminator_forward.7} parent=35 // pred_check_branch
        %227 = sbr.rel (%p225) target = $region40
      $region39: #{discriminator_forward.7} parent=35 // pred_region
        %s228 = smul.u32 4, %s13
        %p229 = scmp.lt.s32.totalorder %s228, 15
        %s230 = scalar_select %p229, %s228, 15
        %s231 = scalar_lea.vmem %s0, %s230
        %s232 = smul.u32 4, %s13
      $region40: #{discriminator_forward.7} parent=35 // pred_fallthru
        _
      // Predicated region
      $region41: #{discriminator_forward.7} parent=35 // pred_check
        %p233 = pneg %p59
      $region42: #{discriminator_forward.7} parent=35 // pred_check_branch
        %235 = sbr.rel (%p233) target = $region44
      $region43: #{discriminator_forward.7} parent=35 // pred_region
        %s236 = smul.u32 64, %s13
        %p237 = scmp.lt.s32.totalorder %s236, 255
        %s238 = scalar_select %p237, %s236, 255
        %s239 = smul.addr %s238, 8
        %s240 = smul.addr %s239, 4
        %s241 = scalar_lea.vmem %s1, %s240
        %s242 = smul.u32 64, %s13
      $region44: #{discriminator_forward.7} parent=35 // pred_fallthru
        _
    $region36: #{discriminator_forward.7} parent=5 // pred_fallthru
      _
    %p243 = scmp.le.s32.totalorder 1, %s13
    %p244 = scmp.lt.s32.totalorder %s13, 5
    %p245 = pnand %p243, %p244
    %p246 = pneg %p245
    // Predicated region
    $region45: #{discriminator_forward.7} parent=5 // pred_check
      _
    $region46: #{discriminator_forward.7} parent=5 // pred_check_branch
      %248 = sbr.rel (%p245) target = $region48
    $region47: #{discriminator_forward.7} parent=5 // pred_region
      %s249 = ssub.s32 %s13, 1
      %s250 = smul.u32 4, %s18
      %p251 = scmp.lt.s32.totalorder %s250, 15
      %s252 = scalar_select %p251, %s250, 15
      %s253 = scalar_lea.vmem %s0, %s252
      %p254 = pneg %p39
      %p255 = pneg %p36
      %s256 = smul.u32 64, %s18
      %p257 = scmp.lt.s32.totalorder %s256, 255
      %s258 = scalar_select %p257, %s256, 255
      %s259 = smul.addr %s258, 8
      %s260 = smul.addr %s259, 4
      %s261 = scalar_lea.vmem %s1, %s260
      %p262 = pneg %p65
      %p263 = pneg %p62
      %p264 = pneg %p86
      %p265 = pneg %p83
      %p266 = pneg %p107
      %p267 = pneg %p104
      %p268 = pneg %p128
      %p269 = pneg %p125
      %p270 = pneg %p149
      %p271 = pneg %p146
      %p272 = pneg %p170
      %p273 = pneg %p167
      %p274 = pneg %p191
      %p275 = pneg %p188
      %s276 = smul.u32 4, %s18
      %p277 = scmp.lt.s32.totalorder %s276, 15
      %s278 = scalar_select %p277, %s276, 15
      %s279 = scalar_lea.vmem %s0, %s278
      %s280 = smul.u32 4, %s18
      %s281 = smul.u32 64, %s18
      %p282 = scmp.lt.s32.totalorder %s281, 255
      %s283 = scalar_select %p282, %s281, 255
      %s284 = smul.addr %s283, 8
      %s285 = smul.addr %s284, 4
      %s286 = scalar_lea.vmem %s1, %s285
      %s287 = smul.u32 64, %s18
      %p289 = scmp.eq.s32.totalorder %s18, 0
      // Predicated region
      $region49: #{discriminator_forward.7} parent=47 // pred_check
        %p290 = pneg %p289
      $region50: #{discriminator_forward.7} parent=47 // pred_check_branch
        %292 = sbr.rel (%p290) target = $region52
      $region51: #{discriminator_forward.7} parent=47 // pred_region
        %293 = vst [vmem:[#allocation2] sm:$0xff] 0.0
        %294 = vst [vmem:[#allocation2 + $0x8] sm:$0xff] 0.0
      $region52: #{discriminator_forward.7} parent=47 // pred_fallthru
        _
      %v295 = vld [vmem:[#allocation2] sm:$0xff]
      %v296 = vld [vmem:[#allocation2 + $0x8] sm:$0xff]
      %v297 = vld [vmem:[%s279] sm:$0xf]
      %v298 = vld [vmem:[%s286] sm:$0xff]
      %v299 = vld [vmem:[%s286 + $0x8] sm:$0xff]
      %v300 = vld [vmem:[%s286 + $0x10] sm:$0xff]
      %v301 = vld [vmem:[%s286 + $0x18] sm:$0xff]
      %v302 = vld [vmem:[%s286 + $0x20] sm:$0xff]
      %v303 = vld [vmem:[%s286 + $0x28] sm:$0xff]
      %v304 = vld [vmem:[%s286 + $0x30] sm:$0xff]
      %v305 = vld [vmem:[%s286 + $0x38] sm:$0xff]
      %v306 = vld [vmem:[%s286 + $0x40] sm:$0xff]
      %v307 = vld [vmem:[%s286 + $0x48] sm:$0xff]
      %v308 = vld [vmem:[%s286 + $0x50] sm:$0xff]
      %v309 = vld [vmem:[%s286 + $0x58] sm:$0xff]
      %v310 = vld [vmem:[%s286 + $0x60] sm:$0xff]
      %v311 = vld [vmem:[%s286 + $0x68] sm:$0xff]
      %v312 = vld [vmem:[%s286 + $0x70] sm:$0xff]
      %v313 = vld [vmem:[%s286 + $0x78] sm:$0xff]
      %v314 = vld [vmem:[%s286 + $0x80] sm:$0xff]
      %v315 = vld [vmem:[%s286 + $0x88] sm:$0xff]
      %v316 = vld [vmem:[%s286 + $0x90] sm:$0xff]
      %v317 = vld [vmem:[%s286 + $0x98] sm:$0xff]
      %v318 = vld [vmem:[%s286 + $0xa0] sm:$0xff]
      %v319 = vld [vmem:[%s286 + $0xa8] sm:$0xff]
      %v320 = vld [vmem:[%s286 + $0xb0] sm:$0xff]
      %v321 = vld [vmem:[%s286 + $0xb8] sm:$0xff]
      %v322 = vld [vmem:[%s286 + $0xc0] sm:$0xff]
      %v323 = vld [vmem:[%s286 + $0xc8] sm:$0xff]
      %v324 = vld [vmem:[%s286 + $0xd0] sm:$0xff]
      %v325 = vld [vmem:[%s286 + $0xd8] sm:$0xff]
      %v326 = vld [vmem:[%s286 + $0xe0] sm:$0xff]
      %v327 = vld [vmem:[%s286 + $0xe8] sm:$0xff]
      %v328 = vld [vmem:[%s286 + $0xf0] sm:$0xff]
      %v329 = vld [vmem:[%s286 + $0xf8] sm:$0xff]
      %v330 = vld [vmem:[%s286 + $0x100] sm:$0xff]
      %v331 = vld [vmem:[%s286 + $0x108] sm:$0xff]
      %v332 = vld [vmem:[%s286 + $0x110] sm:$0xff]
      %v333 = vld [vmem:[%s286 + $0x118] sm:$0xff]
      %v334 = vld [vmem:[%s286 + $0x120] sm:$0xff]
      %v335 = vld [vmem:[%s286 + $0x128] sm:$0xff]
      %v336 = vld [vmem:[%s286 + $0x130] sm:$0xff]
      %v337 = vld [vmem:[%s286 + $0x138] sm:$0xff]
      %v338 = vld [vmem:[%s286 + $0x140] sm:$0xff]
      %v339 = vld [vmem:[%s286 + $0x148] sm:$0xff]
      %v340 = vld [vmem:[%s286 + $0x150] sm:$0xff]
      %v341 = vld [vmem:[%s286 + $0x158] sm:$0xff]
      %v342 = vld [vmem:[%s286 + $0x160] sm:$0xff]
      %v343 = vld [vmem:[%s286 + $0x168] sm:$0xff]
      %v344 = vld [vmem:[%s286 + $0x170] sm:$0xff]
      %v345 = vld [vmem:[%s286 + $0x178] sm:$0xff]
      %v346 = vld [vmem:[%s286 + $0x180] sm:$0xff]
      %v347 = vld [vmem:[%s286 + $0x188] sm:$0xff]
      %v348 = vld [vmem:[%s286 + $0x190] sm:$0xff]
      %v349 = vld [vmem:[%s286 + $0x198] sm:$0xff]
      %v350 = vld [vmem:[%s286 + $0x1a0] sm:$0xff]
      %v351 = vld [vmem:[%s286 + $0x1a8] sm:$0xff]
      %v352 = vld [vmem:[%s286 + $0x1b0] sm:$0xff]
      %v353 = vld [vmem:[%s286 + $0x1b8] sm:$0xff]
      %v354 = vld [vmem:[%s286 + $0x1c0] sm:$0xff]
      %v355 = vld [vmem:[%s286 + $0x1c8] sm:$0xff]
      %v356 = vld [vmem:[%s286 + $0x1d0] sm:$0xff]
      %v357 = vld [vmem:[%s286 + $0x1d8] sm:$0xff]
      %v358 = vld [vmem:[%s286 + $0x1e0] sm:$0xff]
      %v359 = vld [vmem:[%s286 + $0x1e8] sm:$0xff]
      %v360 = vld [vmem:[%s286 + $0x1f0] sm:$0xff]
      %v361 = vld [vmem:[%s286 + $0x1f8] sm:$0xff]
      %v362 = vld [vmem:[%s286 + $0x200] sm:$0xff]
      %v363 = vld [vmem:[%s286 + $0x208] sm:$0xff]
      %v364 = vld [vmem:[%s286 + $0x210] sm:$0xff]
      %v365 = vld [vmem:[%s286 + $0x218] sm:$0xff]
      %v366 = vld [vmem:[%s286 + $0x220] sm:$0xff]
      %v367 = vld [vmem:[%s286 + $0x228] sm:$0xff]
      %v368 = vld [vmem:[%s286 + $0x230] sm:$0xff]
      %v369 = vld [vmem:[%s286 + $0x238] sm:$0xff]
      %v370 = vld [vmem:[%s286 + $0x240] sm:$0xff]
      %v371 = vld [vmem:[%s286 + $0x248] sm:$0xff]
      %v372 = vld [vmem:[%s286 + $0x250] sm:$0xff]
      %v373 = vld [vmem:[%s286 + $0x258] sm:$0xff]
      %v374 = vld [vmem:[%s286 + $0x260] sm:$0xff]
      %v375 = vld [vmem:[%s286 + $0x268] sm:$0xff]
      %v376 = vld [vmem:[%s286 + $0x270] sm:$0xff]
      %v377 = vld [vmem:[%s286 + $0x278] sm:$0xff]
      %v378 = vld [vmem:[%s286 + $0x280] sm:$0xff]
      %v379 = vld [vmem:[%s286 + $0x288] sm:$0xff]
      %v380 = vld [vmem:[%s286 + $0x290] sm:$0xff]
      %v381 = vld [vmem:[%s286 + $0x298] sm:$0xff]
      %v382 = vld [vmem:[%s286 + $0x2a0] sm:$0xff]
      %v383 = vld [vmem:[%s286 + $0x2a8] sm:$0xff]
      %v384 = vld [vmem:[%s286 + $0x2b0] sm:$0xff]
      %v385 = vld [vmem:[%s286 + $0x2b8] sm:$0xff]
      %v386 = vld [vmem:[%s286 + $0x2c0] sm:$0xff]
      %v387 = vld [vmem:[%s286 + $0x2c8] sm:$0xff]
      %v388 = vld [vmem:[%s286 + $0x2d0] sm:$0xff]
      %v389 = vld [vmem:[%s286 + $0x2d8] sm:$0xff]
      %v390 = vld [vmem:[%s286 + $0x2e0] sm:$0xff]
      %v391 = vld [vmem:[%s286 + $0x2e8] sm:$0xff]
      %v392 = vld [vmem:[%s286 + $0x2f0] sm:$0xff]
      %v393 = vld [vmem:[%s286 + $0x2f8] sm:$0xff]
      %v394 = vld [vmem:[%s286 + $0x300] sm:$0xff]
      %v395 = vld [vmem:[%s286 + $0x308] sm:$0xff]
      %v396 = vld [vmem:[%s286 + $0x310] sm:$0xff]
      %v397 = vld [vmem:[%s286 + $0x318] sm:$0xff]
      %v398 = vld [vmem:[%s286 + $0x320] sm:$0xff]
      %v399 = vld [vmem:[%s286 + $0x328] sm:$0xff]
      %v400 = vld [vmem:[%s286 + $0x330] sm:$0xff]
      %v401 = vld [vmem:[%s286 + $0x338] sm:$0xff]
      %v402 = vld [vmem:[%s286 + $0x340] sm:$0xff]
      %v403 = vld [vmem:[%s286 + $0x348] sm:$0xff]
      %v404 = vld [vmem:[%s286 + $0x350] sm:$0xff]
      %v405 = vld [vmem:[%s286 + $0x358] sm:$0xff]
      %v406 = vld [vmem:[%s286 + $0x360] sm:$0xff]
      %v407 = vld [vmem:[%s286 + $0x368] sm:$0xff]
      %v408 = vld [vmem:[%s286 + $0x370] sm:$0xff]
      %v409 = vld [vmem:[%s286 + $0x378] sm:$0xff]
      %v410 = vld [vmem:[%s286 + $0x380] sm:$0xff]
      %v411 = vld [vmem:[%s286 + $0x388] sm:$0xff]
      %v412 = vld [vmem:[%s286 + $0x390] sm:$0xff]
      %v413 = vld [vmem:[%s286 + $0x398] sm:$0xff]
      %v414 = vld [vmem:[%s286 + $0x3a0] sm:$0xff]
      %v415 = vld [vmem:[%s286 + $0x3a8] sm:$0xff]
      %v416 = vld [vmem:[%s286 + $0x3b0] sm:$0xff]
      %v417 = vld [vmem:[%s286 + $0x3b8] sm:$0xff]
      %v418 = vld [vmem:[%s286 + $0x3c0] sm:$0xff]
      %v419 = vld [vmem:[%s286 + $0x3c8] sm:$0xff]
      %v420 = vld [vmem:[%s286 + $0x3d0] sm:$0xff]
      %v421 = vld [vmem:[%s286 + $0x3d8] sm:$0xff]
      %v422 = vld [vmem:[%s286 + $0x3e0] sm:$0xff]
      %v423 = vld [vmem:[%s286 + $0x3e8] sm:$0xff]
      %v424 = vld [vmem:[%s286 + $0x3f0] sm:$0xff]
      %v425 = vld [vmem:[%s286 + $0x3f8] sm:$0xff]
      %v426 = vld [vmem:[%s286 + $0x400] sm:$0xff]
      %v427 = vld [vmem:[%s286 + $0x408] sm:$0xff]
      %v428 = vld [vmem:[%s286 + $0x410] sm:$0xff]
      %v429 = vld [vmem:[%s286 + $0x418] sm:$0xff]
      %v430 = vld [vmem:[%s286 + $0x420] sm:$0xff]
      %v431 = vld [vmem:[%s286 + $0x428] sm:$0xff]
      %v432 = vld [vmem:[%s286 + $0x430] sm:$0xff]
      %v433 = vld [vmem:[%s286 + $0x438] sm:$0xff]
      %v434 = vld [vmem:[%s286 + $0x440] sm:$0xff]
      %v435 = vld [vmem:[%s286 + $0x448] sm:$0xff]
      %v436 = vld [vmem:[%s286 + $0x450] sm:$0xff]
      %v437 = vld [vmem:[%s286 + $0x458] sm:$0xff]
      %v438 = vld [vmem:[%s286 + $0x460] sm:$0xff]
      %v439 = vld [vmem:[%s286 + $0x468] sm:$0xff]
      %v440 = vld [vmem:[%s286 + $0x470] sm:$0xff]
      %v441 = vld [vmem:[%s286 + $0x478] sm:$0xff]
      %v442 = vld [vmem:[%s286 + $0x480] sm:$0xff]
      %v443 = vld [vmem:[%s286 + $0x488] sm:$0xff]
      %v444 = vld [vmem:[%s286 + $0x490] sm:$0xff]
      %v445 = vld [vmem:[%s286 + $0x498] sm:$0xff]
      %v446 = vld [vmem:[%s286 + $0x4a0] sm:$0xff]
      %v447 = vld [vmem:[%s286 + $0x4a8] sm:$0xff]
      %v448 = vld [vmem:[%s286 + $0x4b0] sm:$0xff]
      %v449 = vld [vmem:[%s286 + $0x4b8] sm:$0xff]
      %v450 = vld [vmem:[%s286 + $0x4c0] sm:$0xff]
      %v451 = vld [vmem:[%s286 + $0x4c8] sm:$0xff]
      %v452 = vld [vmem:[%s286 + $0x4d0] sm:$0xff]
      %v453 = vld [vmem:[%s286 + $0x4d8] sm:$0xff]
      %v454 = vld [vmem:[%s286 + $0x4e0] sm:$0xff]
      %v455 = vld [vmem:[%s286 + $0x4e8] sm:$0xff]
      %v456 = vld [vmem:[%s286 + $0x4f0] sm:$0xff]
      %v457 = vld [vmem:[%s286 + $0x4f8] sm:$0xff]
      %v458 = vld [vmem:[%s286 + $0x500] sm:$0xff]
      %v459 = vld [vmem:[%s286 + $0x508] sm:$0xff]
      %v460 = vld [vmem:[%s286 + $0x510] sm:$0xff]
      %v461 = vld [vmem:[%s286 + $0x518] sm:$0xff]
      %v462 = vld [vmem:[%s286 + $0x520] sm:$0xff]
      %v463 = vld [vmem:[%s286 + $0x528] sm:$0xff]
      %v464 = vld [vmem:[%s286 + $0x530] sm:$0xff]
      %v465 = vld [vmem:[%s286 + $0x538] sm:$0xff]
      %v466 = vld [vmem:[%s286 + $0x540] sm:$0xff]
      %v467 = vld [vmem:[%s286 + $0x548] sm:$0xff]
      %v468 = vld [vmem:[%s286 + $0x550] sm:$0xff]
      %v469 = vld [vmem:[%s286 + $0x558] sm:$0xff]
      %v470 = vld [vmem:[%s286 + $0x560] sm:$0xff]
      %v471 = vld [vmem:[%s286 + $0x568] sm:$0xff]
      %v472 = vld [vmem:[%s286 + $0x570] sm:$0xff]
      %v473 = vld [vmem:[%s286 + $0x578] sm:$0xff]
      %v474 = vld [vmem:[%s286 + $0x580] sm:$0xff]
      %v475 = vld [vmem:[%s286 + $0x588] sm:$0xff]
      %v476 = vld [vmem:[%s286 + $0x590] sm:$0xff]
      %v477 = vld [vmem:[%s286 + $0x598] sm:$0xff]
      %v478 = vld [vmem:[%s286 + $0x5a0] sm:$0xff]
      %v479 = vld [vmem:[%s286 + $0x5a8] sm:$0xff]
      %v480 = vld [vmem:[%s286 + $0x5b0] sm:$0xff]
      %v481 = vld [vmem:[%s286 + $0x5b8] sm:$0xff]
      %v482 = vld [vmem:[%s286 + $0x5c0] sm:$0xff]
      %v483 = vld [vmem:[%s286 + $0x5c8] sm:$0xff]
      %v484 = vld [vmem:[%s286 + $0x5d0] sm:$0xff]
      %v485 = vld [vmem:[%s286 + $0x5d8] sm:$0xff]
      %v486 = vld [vmem:[%s286 + $0x5e0] sm:$0xff]
      %v487 = vld [vmem:[%s286 + $0x5e8] sm:$0xff]
      %v488 = vld [vmem:[%s286 + $0x5f0] sm:$0xff]
      %v489 = vld [vmem:[%s286 + $0x5f8] sm:$0xff]
      %v490 = vld [vmem:[%s286 + $0x600] sm:$0xff]
      %v491 = vld [vmem:[%s286 + $0x608] sm:$0xff]
      %v492 = vld [vmem:[%s286 + $0x610] sm:$0xff]
      %v493 = vld [vmem:[%s286 + $0x618] sm:$0xff]
      %v494 = vld [vmem:[%s286 + $0x620] sm:$0xff]
      %v495 = vld [vmem:[%s286 + $0x628] sm:$0xff]
      %v496 = vld [vmem:[%s286 + $0x630] sm:$0xff]
      %v497 = vld [vmem:[%s286 + $0x638] sm:$0xff]
      %v498 = vld [vmem:[%s286 + $0x640] sm:$0xff]
      %v499 = vld [vmem:[%s286 + $0x648] sm:$0xff]
      %v500 = vld [vmem:[%s286 + $0x650] sm:$0xff]
      %v501 = vld [vmem:[%s286 + $0x658] sm:$0xff]
      %v502 = vld [vmem:[%s286 + $0x660] sm:$0xff]
      %v503 = vld [vmem:[%s286 + $0x668] sm:$0xff]
      %v504 = vld [vmem:[%s286 + $0x670] sm:$0xff]
      %v505 = vld [vmem:[%s286 + $0x678] sm:$0xff]
      %v506 = vld [vmem:[%s286 + $0x680] sm:$0xff]
      %v507 = vld [vmem:[%s286 + $0x688] sm:$0xff]
      %v508 = vld [vmem:[%s286 + $0x690] sm:$0xff]
      %v509 = vld [vmem:[%s286 + $0x698] sm:$0xff]
      %v510 = vld [vmem:[%s286 + $0x6a0] sm:$0xff]
      %v511 = vld [vmem:[%s286 + $0x6a8] sm:$0xff]
      %v512 = vld [vmem:[%s286 + $0x6b0] sm:$0xff]
      %v513 = vld [vmem:[%s286 + $0x6b8] sm:$0xff]
      %v514 = vld [vmem:[%s286 + $0x6c0] sm:$0xff]
      %v515 = vld [vmem:[%s286 + $0x6c8] sm:$0xff]
      %v516 = vld [vmem:[%s286 + $0x6d0] sm:$0xff]
      %v517 = vld [vmem:[%s286 + $0x6d8] sm:$0xff]
      %v518 = vld [vmem:[%s286 + $0x6e0] sm:$0xff]
      %v519 = vld [vmem:[%s286 + $0x6e8] sm:$0xff]
      %v520 = vld [vmem:[%s286 + $0x6f0] sm:$0xff]
      %v521 = vld [vmem:[%s286 + $0x6f8] sm:$0xff]
      %v522 = vld [vmem:[%s286 + $0x700] sm:$0xff]
      %v523 = vld [vmem:[%s286 + $0x708] sm:$0xff]
      %v524 = vld [vmem:[%s286 + $0x710] sm:$0xff]
      %v525 = vld [vmem:[%s286 + $0x718] sm:$0xff]
      %v526 = vld [vmem:[%s286 + $0x720] sm:$0xff]
      %v527 = vld [vmem:[%s286 + $0x728] sm:$0xff]
      %v528 = vld [vmem:[%s286 + $0x730] sm:$0xff]
      %v529 = vld [vmem:[%s286 + $0x738] sm:$0xff]
      %v530 = vld [vmem:[%s286 + $0x740] sm:$0xff]
      %v531 = vld [vmem:[%s286 + $0x748] sm:$0xff]
      %v532 = vld [vmem:[%s286 + $0x750] sm:$0xff]
      %v533 = vld [vmem:[%s286 + $0x758] sm:$0xff]
      %v534 = vld [vmem:[%s286 + $0x760] sm:$0xff]
      %v535 = vld [vmem:[%s286 + $0x768] sm:$0xff]
      %v536 = vld [vmem:[%s286 + $0x770] sm:$0xff]
      %v537 = vld [vmem:[%s286 + $0x778] sm:$0xff]
      %v538 = vld [vmem:[%s286 + $0x780] sm:$0xff]
      %v539 = vld [vmem:[%s286 + $0x788] sm:$0xff]
      %v540 = vld [vmem:[%s286 + $0x790] sm:$0xff]
      %v541 = vld [vmem:[%s286 + $0x798] sm:$0xff]
      %v542 = vld [vmem:[%s286 + $0x7a0] sm:$0xff]
      %v543 = vld [vmem:[%s286 + $0x7a8] sm:$0xff]
      %v544 = vld [vmem:[%s286 + $0x7b0] sm:$0xff]
      %v545 = vld [vmem:[%s286 + $0x7b8] sm:$0xff]
      %v546 = vld [vmem:[%s286 + $0x7c0] sm:$0xff]
      %v547 = vld [vmem:[%s286 + $0x7c8] sm:$0xff]
      %v548 = vld [vmem:[%s286 + $0x7d0] sm:$0xff]
      %v549 = vld [vmem:[%s286 + $0x7d8] sm:$0xff]
      %v550 = vld [vmem:[%s286 + $0x7e0] sm:$0xff]
      %v551 = vld [vmem:[%s286 + $0x7e8] sm:$0xff]
      %v552 = vld [vmem:[%s286 + $0x7f0] sm:$0xff]
      %v553 = vld [vmem:[%s286 + $0x7f8] sm:$0xff]
      %v556 = vunpack.c.l.s4 1966171168
      %v557 = vunpack.c.0.s8 %v556
      %v558 = vlaneseq
      %v559 = vshrl.u32 %v558, 7
      %v560 = vsub.s32 %v557, %v559
      %v561 = vrot.slane %v297, %v560
      %v562 = vcombine.high %v561, %v561
      %v564 = vunpack.c.l.s4 1966171168
      %v565 = vunpack.c.0.s8 %v564
      %v566 = vlaneseq
      %v567 = vshrl.u32 %v566, 7
      %v568 = vsub.s32 %v565, %v567
      %v569 = vrot.slane %v561, %v568
      %v571 = vunpack.c.l.s4 1966171168
      %v572 = vunpack.c.0.s8 %v571
      %v573 = vlaneseq
      %v574 = vshrl.u32 %v573, 7
      %v575 = vsub.s32 %v572, %v574
      %v576 = vrot.slane %v562, %v575
      %v577 = vcombine.high %v569, %v569
      %v578 = vcombine.high %v576, %v576
      %v839 = vunpack.c.l.b16 %v298
      %v840 = vunpack.c.h.b16 %v298
      %v841 = vunpack.c.l.b16 %v299
      %v842 = vunpack.c.h.b16 %v299
      %v843 = vunpack.c.l.b16 %v300
      %v844 = vunpack.c.h.b16 %v300
      %v845 = vunpack.c.l.b16 %v301
      %v846 = vunpack.c.h.b16 %v301
      %v847 = vunpack.c.l.b16 %v302
      %v848 = vunpack.c.h.b16 %v302
      %v849 = vunpack.c.l.b16 %v303
      %v850 = vunpack.c.h.b16 %v303
      %v851 = vunpack.c.l.b16 %v304
      %v852 = vunpack.c.h.b16 %v304
      %v853 = vunpack.c.l.b16 %v305
      %v854 = vunpack.c.h.b16 %v305
      %v855 = vunpack.c.l.b16 %v306
      %v856 = vunpack.c.h.b16 %v306
      %v857 = vunpack.c.l.b16 %v307
      %v858 = vunpack.c.h.b16 %v307
      %v859 = vunpack.c.l.b16 %v308
      %v860 = vunpack.c.h.b16 %v308
      %v861 = vunpack.c.l.b16 %v309
      %v862 = vunpack.c.h.b16 %v309
      %v863 = vunpack.c.l.b16 %v310
      %v864 = vunpack.c.h.b16 %v310
      %v865 = vunpack.c.l.b16 %v311
      %v866 = vunpack.c.h.b16 %v311
      %v867 = vunpack.c.l.b16 %v312
      %v868 = vunpack.c.h.b16 %v312
      %v869 = vunpack.c.l.b16 %v313
      %v870 = vunpack.c.h.b16 %v313
      %v871 = vunpack.c.l.b16 %v314
      %v872 = vunpack.c.h.b16 %v314
      %v873 = vunpack.c.l.b16 %v315
      %v874 = vunpack.c.h.b16 %v315
      %v875 = vunpack.c.l.b16 %v316
      %v876 = vunpack.c.h.b16 %v316
      %v877 = vunpack.c.l.b16 %v317
      %v878 = vunpack.c.h.b16 %v317
      %v879 = vunpack.c.l.b16 %v318
      %v880 = vunpack.c.h.b16 %v318
      %v881 = vunpack.c.l.b16 %v319
      %v882 = vunpack.c.h.b16 %v319
      %v883 = vunpack.c.l.b16 %v320
      %v884 = vunpack.c.h.b16 %v320
      %v885 = vunpack.c.l.b16 %v321
      %v886 = vunpack.c.h.b16 %v321
      %v887 = vunpack.c.l.b16 %v322
      %v888 = vunpack.c.h.b16 %v322
      %v889 = vunpack.c.l.b16 %v323
      %v890 = vunpack.c.h.b16 %v323
      %v891 = vunpack.c.l.b16 %v324
      %v892 = vunpack.c.h.b16 %v324
      %v893 = vunpack.c.l.b16 %v325
      %v894 = vunpack.c.h.b16 %v325
      %v895 = vunpack.c.l.b16 %v326
      %v896 = vunpack.c.h.b16 %v326
      %v897 = vunpack.c.l.b16 %v327
      %v898 = vunpack.c.h.b16 %v327
      %v899 = vunpack.c.l.b16 %v328
      %v900 = vunpack.c.h.b16 %v328
      %v901 = vunpack.c.l.b16 %v329
      %v902 = vunpack.c.h.b16 %v329
      %v903 = vunpack.c.l.b16 %v330
      %v904 = vunpack.c.h.b16 %v330
      %v905 = vunpack.c.l.b16 %v331
      %v906 = vunpack.c.h.b16 %v331
      %v907 = vunpack.c.l.b16 %v332
      %v908 = vunpack.c.h.b16 %v332
      %v909 = vunpack.c.l.b16 %v333
      %v910 = vunpack.c.h.b16 %v333
      %v911 = vunpack.c.l.b16 %v334
      %v912 = vunpack.c.h.b16 %v334
      %v913 = vunpack.c.l.b16 %v335
      %v914 = vunpack.c.h.b16 %v335
      %v915 = vunpack.c.l.b16 %v336
      %v916 = vunpack.c.h.b16 %v336
      %v917 = vunpack.c.l.b16 %v337
      %v918 = vunpack.c.h.b16 %v337
      %v919 = vunpack.c.l.b16 %v338
      %v920 = vunpack.c.h.b16 %v338
      %v921 = vunpack.c.l.b16 %v339
      %v922 = vunpack.c.h.b16 %v339
      %v923 = vunpack.c.l.b16 %v340
      %v924 = vunpack.c.h.b16 %v340
      %v925 = vunpack.c.l.b16 %v341
      %v926 = vunpack.c.h.b16 %v341
      %v927 = vunpack.c.l.b16 %v342
      %v928 = vunpack.c.h.b16 %v342
      %v929 = vunpack.c.l.b16 %v343
      %v930 = vunpack.c.h.b16 %v343
      %v931 = vunpack.c.l.b16 %v344
      %v932 = vunpack.c.h.b16 %v344
      %v933 = vunpack.c.l.b16 %v345
      %v934 = vunpack.c.h.b16 %v345
      %v935 = vunpack.c.l.b16 %v346
      %v936 = vunpack.c.h.b16 %v346
      %v937 = vunpack.c.l.b16 %v347
      %v938 = vunpack.c.h.b16 %v347
      %v939 = vunpack.c.l.b16 %v348
      %v940 = vunpack.c.h.b16 %v348
      %v941 = vunpack.c.l.b16 %v349
      %v942 = vunpack.c.h.b16 %v349
      %v943 = vunpack.c.l.b16 %v350
      %v944 = vunpack.c.h.b16 %v350
      %v945 = vunpack.c.l.b16 %v351
      %v946 = vunpack.c.h.b16 %v351
      %v947 = vunpack.c.l.b16 %v352
      %v948 = vunpack.c.h.b16 %v352
      %v949 = vunpack.c.l.b16 %v353
      %v950 = vunpack.c.h.b16 %v353
      %v951 = vunpack.c.l.b16 %v354
      %v952 = vunpack.c.h.b16 %v354
      %v953 = vunpack.c.l.b16 %v355
      %v954 = vunpack.c.h.b16 %v355
      %v955 = vunpack.c.l.b16 %v356
      %v956 = vunpack.c.h.b16 %v356
      %v957 = vunpack.c.l.b16 %v357
      %v958 = vunpack.c.h.b16 %v357
      %v959 = vunpack.c.l.b16 %v358
      %v960 = vunpack.c.h.b16 %v358
      %v961 = vunpack.c.l.b16 %v359
      %v962 = vunpack.c.h.b16 %v359
      %v963 = vunpack.c.l.b16 %v360
      %v964 = vunpack.c.h.b16 %v360
      %v965 = vunpack.c.l.b16 %v361
      %v966 = vunpack.c.h.b16 %v361
      %v967 = vunpack.c.l.b16 %v362
      %v968 = vunpack.c.h.b16 %v362
      %v969 = vunpack.c.l.b16 %v363
      %v970 = vunpack.c.h.b16 %v363
      %v971 = vunpack.c.l.b16 %v364
      %v972 = vunpack.c.h.b16 %v364
      %v973 = vunpack.c.l.b16 %v365
      %v974 = vunpack.c.h.b16 %v365
      %v975 = vunpack.c.l.b16 %v366
      %v976 = vunpack.c.h.b16 %v366
      %v977 = vunpack.c.l.b16 %v367
      %v978 = vunpack.c.h.b16 %v367
      %v979 = vunpack.c.l.b16 %v368
      %v980 = vunpack.c.h.b16 %v368
      %v981 = vunpack.c.l.b16 %v369
      %v982 = vunpack.c.h.b16 %v369
      %v983 = vunpack.c.l.b16 %v370
      %v984 = vunpack.c.h.b16 %v370
      %v985 = vunpack.c.l.b16 %v371
      %v986 = vunpack.c.h.b16 %v371
      %v987 = vunpack.c.l.b16 %v372
      %v988 = vunpack.c.h.b16 %v372
      %v989 = vunpack.c.l.b16 %v373
      %v990 = vunpack.c.h.b16 %v373
      %v991 = vunpack.c.l.b16 %v374
      %v992 = vunpack.c.h.b16 %v374
      %v993 = vunpack.c.l.b16 %v375
      %v994 = vunpack.c.h.b16 %v375
      %v995 = vunpack.c.l.b16 %v376
      %v996 = vunpack.c.h.b16 %v376
      %v997 = vunpack.c.l.b16 %v377
      %v998 = vunpack.c.h.b16 %v377
      %v999 = vunpack.c.l.b16 %v378
      %v1000 = vunpack.c.h.b16 %v378
      %v1001 = vunpack.c.l.b16 %v379
      %v1002 = vunpack.c.h.b16 %v379
      %v1003 = vunpack.c.l.b16 %v380
      %v1004 = vunpack.c.h.b16 %v380
      %v1005 = vunpack.c.l.b16 %v381
      %v1006 = vunpack.c.h.b16 %v381
      %v1007 = vunpack.c.l.b16 %v382
      %v1008 = vunpack.c.h.b16 %v382
      %v1009 = vunpack.c.l.b16 %v383
      %v1010 = vunpack.c.h.b16 %v383
      %v1011 = vunpack.c.l.b16 %v384
      %v1012 = vunpack.c.h.b16 %v384
      %v1013 = vunpack.c.l.b16 %v385
      %v1014 = vunpack.c.h.b16 %v385
      %v1015 = vunpack.c.l.b16 %v386
      %v1016 = vunpack.c.h.b16 %v386
      %v1017 = vunpack.c.l.b16 %v387
      %v1018 = vunpack.c.h.b16 %v387
      %v1019 = vunpack.c.l.b16 %v388
      %v1020 = vunpack.c.h.b16 %v388
      %v1021 = vunpack.c.l.b16 %v389
      %v1022 = vunpack.c.h.b16 %v389
      %v1023 = vunpack.c.l.b16 %v390
      %v1024 = vunpack.c.h.b16 %v390
      %v1025 = vunpack.c.l.b16 %v391
      %v1026 = vunpack.c.h.b16 %v391
      %v1027 = vunpack.c.l.b16 %v392
      %v1028 = vunpack.c.h.b16 %v392
      %v1029 = vunpack.c.l.b16 %v393
      %v1030 = vunpack.c.h.b16 %v393
      %v1031 = vunpack.c.l.b16 %v394
      %v1032 = vunpack.c.h.b16 %v394
      %v1033 = vunpack.c.l.b16 %v395
      %v1034 = vunpack.c.h.b16 %v395
      %v1035 = vunpack.c.l.b16 %v396
      %v1036 = vunpack.c.h.b16 %v396
      %v1037 = vunpack.c.l.b16 %v397
      %v1038 = vunpack.c.h.b16 %v397
      %v1039 = vunpack.c.l.b16 %v398
      %v1040 = vunpack.c.h.b16 %v398
      %v1041 = vunpack.c.l.b16 %v399
      %v1042 = vunpack.c.h.b16 %v399
      %v1043 = vunpack.c.l.b16 %v400
      %v1044 = vunpack.c.h.b16 %v400
      %v1045 = vunpack.c.l.b16 %v401
      %v1046 = vunpack.c.h.b16 %v401
      %v1047 = vunpack.c.l.b16 %v402
      %v1048 = vunpack.c.h.b16 %v402
      %v1049 = vunpack.c.l.b16 %v403
      %v1050 = vunpack.c.h.b16 %v403
      %v1051 = vunpack.c.l.b16 %v404
      %v1052 = vunpack.c.h.b16 %v404
      %v1053 = vunpack.c.l.b16 %v405
      %v1054 = vunpack.c.h.b16 %v405
      %v1055 = vunpack.c.l.b16 %v406
      %v1056 = vunpack.c.h.b16 %v406
      %v1057 = vunpack.c.l.b16 %v407
      %v1058 = vunpack.c.h.b16 %v407
      %v1059 = vunpack.c.l.b16 %v408
      %v1060 = vunpack.c.h.b16 %v408
      %v1061 = vunpack.c.l.b16 %v409
      %v1062 = vunpack.c.h.b16 %v409
      %v1063 = vunpack.c.l.b16 %v410
      %v1064 = vunpack.c.h.b16 %v410
      %v1065 = vunpack.c.l.b16 %v411
      %v1066 = vunpack.c.h.b16 %v411
      %v1067 = vunpack.c.l.b16 %v412
      %v1068 = vunpack.c.h.b16 %v412
      %v1069 = vunpack.c.l.b16 %v413
      %v1070 = vunpack.c.h.b16 %v413
      %v1071 = vunpack.c.l.b16 %v414
      %v1072 = vunpack.c.h.b16 %v414
      %v1073 = vunpack.c.l.b16 %v415
      %v1074 = vunpack.c.h.b16 %v415
      %v1075 = vunpack.c.l.b16 %v416
      %v1076 = vunpack.c.h.b16 %v416
      %v1077 = vunpack.c.l.b16 %v417
      %v1078 = vunpack.c.h.b16 %v417
      %v1079 = vunpack.c.l.b16 %v418
      %v1080 = vunpack.c.h.b16 %v418
      %v1081 = vunpack.c.l.b16 %v419
      %v1082 = vunpack.c.h.b16 %v419
      %v1083 = vunpack.c.l.b16 %v420
      %v1084 = vunpack.c.h.b16 %v420
      %v1085 = vunpack.c.l.b16 %v421
      %v1086 = vunpack.c.h.b16 %v421
      %v1087 = vunpack.c.l.b16 %v422
      %v1088 = vunpack.c.h.b16 %v422
      %v1089 = vunpack.c.l.b16 %v423
      %v1090 = vunpack.c.h.b16 %v423
      %v1091 = vunpack.c.l.b16 %v424
      %v1092 = vunpack.c.h.b16 %v424
      %v1093 = vunpack.c.l.b16 %v425
      %v1094 = vunpack.c.h.b16 %v425
      %v1095 = vunpack.c.l.b16 %v426
      %v1096 = vunpack.c.h.b16 %v426
      %v1097 = vunpack.c.l.b16 %v427
      %v1098 = vunpack.c.h.b16 %v427
      %v1099 = vunpack.c.l.b16 %v428
      %v1100 = vunpack.c.h.b16 %v428
      %v1101 = vunpack.c.l.b16 %v429
      %v1102 = vunpack.c.h.b16 %v429
      %v1103 = vunpack.c.l.b16 %v430
      %v1104 = vunpack.c.h.b16 %v430
      %v1105 = vunpack.c.l.b16 %v431
      %v1106 = vunpack.c.h.b16 %v431
      %v1107 = vunpack.c.l.b16 %v432
      %v1108 = vunpack.c.h.b16 %v432
      %v1109 = vunpack.c.l.b16 %v433
      %v1110 = vunpack.c.h.b16 %v433
      %v1111 = vunpack.c.l.b16 %v434
      %v1112 = vunpack.c.h.b16 %v434
      %v1113 = vunpack.c.l.b16 %v435
      %v1114 = vunpack.c.h.b16 %v435
      %v1115 = vunpack.c.l.b16 %v436
      %v1116 = vunpack.c.h.b16 %v436
      %v1117 = vunpack.c.l.b16 %v437
      %v1118 = vunpack.c.h.b16 %v437
      %v1119 = vunpack.c.l.b16 %v438
      %v1120 = vunpack.c.h.b16 %v438
      %v1121 = vunpack.c.l.b16 %v439
      %v1122 = vunpack.c.h.b16 %v439
      %v1123 = vunpack.c.l.b16 %v440
      %v1124 = vunpack.c.h.b16 %v440
      %v1125 = vunpack.c.l.b16 %v441
      %v1126 = vunpack.c.h.b16 %v441
      %v1127 = vunpack.c.l.b16 %v442
      %v1128 = vunpack.c.h.b16 %v442
      %v1129 = vunpack.c.l.b16 %v443
      %v1130 = vunpack.c.h.b16 %v443
      %v1131 = vunpack.c.l.b16 %v444
      %v1132 = vunpack.c.h.b16 %v444
      %v1133 = vunpack.c.l.b16 %v445
      %v1134 = vunpack.c.h.b16 %v445
      %v1135 = vunpack.c.l.b16 %v446
      %v1136 = vunpack.c.h.b16 %v446
      %v1137 = vunpack.c.l.b16 %v447
      %v1138 = vunpack.c.h.b16 %v447
      %v1139 = vunpack.c.l.b16 %v448
      %v1140 = vunpack.c.h.b16 %v448
      %v1141 = vunpack.c.l.b16 %v449
      %v1142 = vunpack.c.h.b16 %v449
      %v1143 = vunpack.c.l.b16 %v450
      %v1144 = vunpack.c.h.b16 %v450
      %v1145 = vunpack.c.l.b16 %v451
      %v1146 = vunpack.c.h.b16 %v451
      %v1147 = vunpack.c.l.b16 %v452
      %v1148 = vunpack.c.h.b16 %v452
      %v1149 = vunpack.c.l.b16 %v453
      %v1150 = vunpack.c.h.b16 %v453
      %v1151 = vunpack.c.l.b16 %v454
      %v1152 = vunpack.c.h.b16 %v454
      %v1153 = vunpack.c.l.b16 %v455
      %v1154 = vunpack.c.h.b16 %v455
      %v1155 = vunpack.c.l.b16 %v456
      %v1156 = vunpack.c.h.b16 %v456
      %v1157 = vunpack.c.l.b16 %v457
      %v1158 = vunpack.c.h.b16 %v457
      %v1159 = vunpack.c.l.b16 %v458
      %v1160 = vunpack.c.h.b16 %v458
      %v1161 = vunpack.c.l.b16 %v459
      %v1162 = vunpack.c.h.b16 %v459
      %v1163 = vunpack.c.l.b16 %v460
      %v1164 = vunpack.c.h.b16 %v460
      %v1165 = vunpack.c.l.b16 %v461
      %v1166 = vunpack.c.h.b16 %v461
      %v1167 = vunpack.c.l.b16 %v462
      %v1168 = vunpack.c.h.b16 %v462
      %v1169 = vunpack.c.l.b16 %v463
      %v1170 = vunpack.c.h.b16 %v463
      %v1171 = vunpack.c.l.b16 %v464
      %v1172 = vunpack.c.h.b16 %v464
      %v1173 = vunpack.c.l.b16 %v465
      %v1174 = vunpack.c.h.b16 %v465
      %v1175 = vunpack.c.l.b16 %v466
      %v1176 = vunpack.c.h.b16 %v466
      %v1177 = vunpack.c.l.b16 %v467
      %v1178 = vunpack.c.h.b16 %v467
      %v1179 = vunpack.c.l.b16 %v468
      %v1180 = vunpack.c.h.b16 %v468
      %v1181 = vunpack.c.l.b16 %v469
      %v1182 = vunpack.c.h.b16 %v469
      %v1183 = vunpack.c.l.b16 %v470
      %v1184 = vunpack.c.h.b16 %v470
      %v1185 = vunpack.c.l.b16 %v471
      %v1186 = vunpack.c.h.b16 %v471
      %v1187 = vunpack.c.l.b16 %v472
      %v1188 = vunpack.c.h.b16 %v472
      %v1189 = vunpack.c.l.b16 %v473
      %v1190 = vunpack.c.h.b16 %v473
      %v1191 = vunpack.c.l.b16 %v474
      %v1192 = vunpack.c.h.b16 %v474
      %v1193 = vunpack.c.l.b16 %v475
      %v1194 = vunpack.c.h.b16 %v475
      %v1195 = vunpack.c.l.b16 %v476
      %v1196 = vunpack.c.h.b16 %v476
      %v1197 = vunpack.c.l.b16 %v477
      %v1198 = vunpack.c.h.b16 %v477
      %v1199 = vunpack.c.l.b16 %v478
      %v1200 = vunpack.c.h.b16 %v478
      %v1201 = vunpack.c.l.b16 %v479
      %v1202 = vunpack.c.h.b16 %v479
      %v1203 = vunpack.c.l.b16 %v480
      %v1204 = vunpack.c.h.b16 %v480
      %v1205 = vunpack.c.l.b16 %v481
      %v1206 = vunpack.c.h.b16 %v481
      %v1207 = vunpack.c.l.b16 %v482
      %v1208 = vunpack.c.h.b16 %v482
      %v1209 = vunpack.c.l.b16 %v483
      %v1210 = vunpack.c.h.b16 %v483
      %v1211 = vunpack.c.l.b16 %v484
      %v1212 = vunpack.c.h.b16 %v484
      %v1213 = vunpack.c.l.b16 %v485
      %v1214 = vunpack.c.h.b16 %v485
      %v1215 = vunpack.c.l.b16 %v486
      %v1216 = vunpack.c.h.b16 %v486
      %v1217 = vunpack.c.l.b16 %v487
      %v1218 = vunpack.c.h.b16 %v487
      %v1219 = vunpack.c.l.b16 %v488
      %v1220 = vunpack.c.h.b16 %v488
      %v1221 = vunpack.c.l.b16 %v489
      %v1222 = vunpack.c.h.b16 %v489
      %v1223 = vunpack.c.l.b16 %v490
      %v1224 = vunpack.c.h.b16 %v490
      %v1225 = vunpack.c.l.b16 %v491
      %v1226 = vunpack.c.h.b16 %v491
      %v1227 = vunpack.c.l.b16 %v492
      %v1228 = vunpack.c.h.b16 %v492
      %v1229 = vunpack.c.l.b16 %v493
      %v1230 = vunpack.c.h.b16 %v493
      %v1231 = vunpack.c.l.b16 %v494
      %v1232 = vunpack.c.h.b16 %v494
      %v1233 = vunpack.c.l.b16 %v495
      %v1234 = vunpack.c.h.b16 %v495
      %v1235 = vunpack.c.l.b16 %v496
      %v1236 = vunpack.c.h.b16 %v496
      %v1237 = vunpack.c.l.b16 %v497
      %v1238 = vunpack.c.h.b16 %v497
      %v1239 = vunpack.c.l.b16 %v498
      %v1240 = vunpack.c.h.b16 %v498
      %v1241 = vunpack.c.l.b16 %v499
      %v1242 = vunpack.c.h.b16 %v499
      %v1243 = vunpack.c.l.b16 %v500
      %v1244 = vunpack.c.h.b16 %v500
      %v1245 = vunpack.c.l.b16 %v501
      %v1246 = vunpack.c.h.b16 %v501
      %v1247 = vunpack.c.l.b16 %v502
      %v1248 = vunpack.c.h.b16 %v502
      %v1249 = vunpack.c.l.b16 %v503
      %v1250 = vunpack.c.h.b16 %v503
      %v1251 = vunpack.c.l.b16 %v504
      %v1252 = vunpack.c.h.b16 %v504
      %v1253 = vunpack.c.l.b16 %v505
      %v1254 = vunpack.c.h.b16 %v505
      %v1255 = vunpack.c.l.b16 %v506
      %v1256 = vunpack.c.h.b16 %v506
      %v1257 = vunpack.c.l.b16 %v507
      %v1258 = vunpack.c.h.b16 %v507
      %v1259 = vunpack.c.l.b16 %v508
      %v1260 = vunpack.c.h.b16 %v508
      %v1261 = vunpack.c.l.b16 %v509
      %v1262 = vunpack.c.h.b16 %v509
      %v1263 = vunpack.c.l.b16 %v510
      %v1264 = vunpack.c.h.b16 %v510
      %v1265 = vunpack.c.l.b16 %v511
      %v1266 = vunpack.c.h.b16 %v511
      %v1267 = vunpack.c.l.b16 %v512
      %v1268 = vunpack.c.h.b16 %v512
      %v1269 = vunpack.c.l.b16 %v513
      %v1270 = vunpack.c.h.b16 %v513
      %v1271 = vunpack.c.l.b16 %v514
      %v1272 = vunpack.c.h.b16 %v514
      %v1273 = vunpack.c.l.b16 %v515
      %v1274 = vunpack.c.h.b16 %v515
      %v1275 = vunpack.c.l.b16 %v516
      %v1276 = vunpack.c.h.b16 %v516
      %v1277 = vunpack.c.l.b16 %v517
      %v1278 = vunpack.c.h.b16 %v517
      %v1279 = vunpack.c.l.b16 %v518
      %v1280 = vunpack.c.h.b16 %v518
      %v1281 = vunpack.c.l.b16 %v519
      %v1282 = vunpack.c.h.b16 %v519
      %v1283 = vunpack.c.l.b16 %v520
      %v1284 = vunpack.c.h.b16 %v520
      %v1285 = vunpack.c.l.b16 %v521
      %v1286 = vunpack.c.h.b16 %v521
      %v1287 = vunpack.c.l.b16 %v522
      %v1288 = vunpack.c.h.b16 %v522
      %v1289 = vunpack.c.l.b16 %v523
      %v1290 = vunpack.c.h.b16 %v523
      %v1291 = vunpack.c.l.b16 %v524
      %v1292 = vunpack.c.h.b16 %v524
      %v1293 = vunpack.c.l.b16 %v525
      %v1294 = vunpack.c.h.b16 %v525
      %v1295 = vunpack.c.l.b16 %v526
      %v1296 = vunpack.c.h.b16 %v526
      %v1297 = vunpack.c.l.b16 %v527
      %v1298 = vunpack.c.h.b16 %v527
      %v1299 = vunpack.c.l.b16 %v528
      %v1300 = vunpack.c.h.b16 %v528
      %v1301 = vunpack.c.l.b16 %v529
      %v1302 = vunpack.c.h.b16 %v529
      %v1303 = vunpack.c.l.b16 %v530
      %v1304 = vunpack.c.h.b16 %v530
      %v1305 = vunpack.c.l.b16 %v531
      %v1306 = vunpack.c.h.b16 %v531
      %v1307 = vunpack.c.l.b16 %v532
      %v1308 = vunpack.c.h.b16 %v532
      %v1309 = vunpack.c.l.b16 %v533
      %v1310 = vunpack.c.h.b16 %v533
      %v1311 = vunpack.c.l.b16 %v534
      %v1312 = vunpack.c.h.b16 %v534
      %v1313 = vunpack.c.l.b16 %v535
      %v1314 = vunpack.c.h.b16 %v535
      %v1315 = vunpack.c.l.b16 %v536
      %v1316 = vunpack.c.h.b16 %v536
      %v1317 = vunpack.c.l.b16 %v537
      %v1318 = vunpack.c.h.b16 %v537
      %v1319 = vunpack.c.l.b16 %v538
      %v1320 = vunpack.c.h.b16 %v538
      %v1321 = vunpack.c.l.b16 %v539
      %v1322 = vunpack.c.h.b16 %v539
      %v1323 = vunpack.c.l.b16 %v540
      %v1324 = vunpack.c.h.b16 %v540
      %v1325 = vunpack.c.l.b16 %v541
      %v1326 = vunpack.c.h.b16 %v541
      %v1327 = vunpack.c.l.b16 %v542
      %v1328 = vunpack.c.h.b16 %v542
      %v1329 = vunpack.c.l.b16 %v543
      %v1330 = vunpack.c.h.b16 %v543
      %v1331 = vunpack.c.l.b16 %v544
      %v1332 = vunpack.c.h.b16 %v544
      %v1333 = vunpack.c.l.b16 %v545
      %v1334 = vunpack.c.h.b16 %v545
      %v1335 = vunpack.c.l.b16 %v546
      %v1336 = vunpack.c.h.b16 %v546
      %v1337 = vunpack.c.l.b16 %v547
      %v1338 = vunpack.c.h.b16 %v547
      %v1339 = vunpack.c.l.b16 %v548
      %v1340 = vunpack.c.h.b16 %v548
      %v1341 = vunpack.c.l.b16 %v549
      %v1342 = vunpack.c.h.b16 %v549
      %v1343 = vunpack.c.l.b16 %v550
      %v1344 = vunpack.c.h.b16 %v550
      %v1345 = vunpack.c.l.b16 %v551
      %v1346 = vunpack.c.h.b16 %v551
      %v1347 = vunpack.c.l.b16 %v552
      %v1348 = vunpack.c.h.b16 %v552
      %v1349 = vunpack.c.l.b16 %v553
      %v1350 = vunpack.c.h.b16 %v553
      %v1351 = vpack.c.b16 %v847, %v839
      %v1352 = vpack.c.b16 %v848, %v840
      %v1353 = vpack.c.b16 %v849, %v841
      %v1354 = vpack.c.b16 %v850, %v842
      %v1355 = vpack.c.b16 %v851, %v843
      %v1356 = vpack.c.b16 %v852, %v844
      %v1357 = vpack.c.b16 %v853, %v845
      %v1358 = vpack.c.b16 %v854, %v846
      %v1359 = vpack.c.b16 %v863, %v855
      %v1360 = vpack.c.b16 %v864, %v856
      %v1361 = vpack.c.b16 %v865, %v857
      %v1362 = vpack.c.b16 %v866, %v858
      %v1363 = vpack.c.b16 %v867, %v859
      %v1364 = vpack.c.b16 %v868, %v860
      %v1365 = vpack.c.b16 %v869, %v861
      %v1366 = vpack.c.b16 %v870, %v862
      %v1367 = vpack.c.b16 %v879, %v871
      %v1368 = vpack.c.b16 %v880, %v872
      %v1369 = vpack.c.b16 %v881, %v873
      %v1370 = vpack.c.b16 %v882, %v874
      %v1371 = vpack.c.b16 %v883, %v875
      %v1372 = vpack.c.b16 %v884, %v876
      %v1373 = vpack.c.b16 %v885, %v877
      %v1374 = vpack.c.b16 %v886, %v878
      %v1375 = vpack.c.b16 %v895, %v887
      %v1376 = vpack.c.b16 %v896, %v888
      %v1377 = vpack.c.b16 %v897, %v889
      %v1378 = vpack.c.b16 %v898, %v890
      %v1379 = vpack.c.b16 %v899, %v891
      %v1380 = vpack.c.b16 %v900, %v892
      %v1381 = vpack.c.b16 %v901, %v893
      %v1382 = vpack.c.b16 %v902, %v894
      %v1383 = vpack.c.b16 %v911, %v903
      %v1384 = vpack.c.b16 %v912, %v904
      %v1385 = vpack.c.b16 %v913, %v905
      %v1386 = vpack.c.b16 %v914, %v906
      %v1387 = vpack.c.b16 %v915, %v907
      %v1388 = vpack.c.b16 %v916, %v908
      %v1389 = vpack.c.b16 %v917, %v909
      %v1390 = vpack.c.b16 %v918, %v910
      %v1391 = vpack.c.b16 %v927, %v919
      %v1392 = vpack.c.b16 %v928, %v920
      %v1393 = vpack.c.b16 %v929, %v921
      %v1394 = vpack.c.b16 %v930, %v922
      %v1395 = vpack.c.b16 %v931, %v923
      %v1396 = vpack.c.b16 %v932, %v924
      %v1397 = vpack.c.b16 %v933, %v925
      %v1398 = vpack.c.b16 %v934, %v926
      %v1399 = vpack.c.b16 %v943, %v935
      %v1400 = vpack.c.b16 %v944, %v936
      %v1401 = vpack.c.b16 %v945, %v937
      %v1402 = vpack.c.b16 %v946, %v938
      %v1403 = vpack.c.b16 %v947, %v939
      %v1404 = vpack.c.b16 %v948, %v940
      %v1405 = vpack.c.b16 %v949, %v941
      %v1406 = vpack.c.b16 %v950, %v942
      %v1407 = vpack.c.b16 %v959, %v951
      %v1408 = vpack.c.b16 %v960, %v952
      %v1409 = vpack.c.b16 %v961, %v953
      %v1410 = vpack.c.b16 %v962, %v954
      %v1411 = vpack.c.b16 %v963, %v955
      %v1412 = vpack.c.b16 %v964, %v956
      %v1413 = vpack.c.b16 %v965, %v957
      %v1414 = vpack.c.b16 %v966, %v958
      %v1415 = vpack.c.b16 %v975, %v967
      %v1416 = vpack.c.b16 %v976, %v968
      %v1417 = vpack.c.b16 %v977, %v969
      %v1418 = vpack.c.b16 %v978, %v970
      %v1419 = vpack.c.b16 %v979, %v971
      %v1420 = vpack.c.b16 %v980, %v972
      %v1421 = vpack.c.b16 %v981, %v973
      %v1422 = vpack.c.b16 %v982, %v974
      %v1423 = vpack.c.b16 %v991, %v983
      %v1424 = vpack.c.b16 %v992, %v984
      %v1425 = vpack.c.b16 %v993, %v985
      %v1426 = vpack.c.b16 %v994, %v986
      %v1427 = vpack.c.b16 %v995, %v987
      %v1428 = vpack.c.b16 %v996, %v988
      %v1429 = vpack.c.b16 %v997, %v989
      %v1430 = vpack.c.b16 %v998, %v990
      %v1431 = vpack.c.b16 %v1007, %v999
      %v1432 = vpack.c.b16 %v1008, %v1000
      %v1433 = vpack.c.b16 %v1009, %v1001
      %v1434 = vpack.c.b16 %v1010, %v1002
      %v1435 = vpack.c.b16 %v1011, %v1003
      %v1436 = vpack.c.b16 %v1012, %v1004
      %v1437 = vpack.c.b16 %v1013, %v1005
      %v1438 = vpack.c.b16 %v1014, %v1006
      %v1439 = vpack.c.b16 %v1023, %v1015
      %v1440 = vpack.c.b16 %v1024, %v1016
      %v1441 = vpack.c.b16 %v1025, %v1017
      %v1442 = vpack.c.b16 %v1026, %v1018
      %v1443 = vpack.c.b16 %v1027, %v1019
      %v1444 = vpack.c.b16 %v1028, %v1020
      %v1445 = vpack.c.b16 %v1029, %v1021
      %v1446 = vpack.c.b16 %v1030, %v1022
      %v1447 = vpack.c.b16 %v1039, %v1031
      %v1448 = vpack.c.b16 %v1040, %v1032
      %v1449 = vpack.c.b16 %v1041, %v1033
      %v1450 = vpack.c.b16 %v1042, %v1034
      %v1451 = vpack.c.b16 %v1043, %v1035
      %v1452 = vpack.c.b16 %v1044, %v1036
      %v1453 = vpack.c.b16 %v1045, %v1037
      %v1454 = vpack.c.b16 %v1046, %v1038
      %v1455 = vpack.c.b16 %v1055, %v1047
      %v1456 = vpack.c.b16 %v1056, %v1048
      %v1457 = vpack.c.b16 %v1057, %v1049
      %v1458 = vpack.c.b16 %v1058, %v1050
      %v1459 = vpack.c.b16 %v1059, %v1051
      %v1460 = vpack.c.b16 %v1060, %v1052
      %v1461 = vpack.c.b16 %v1061, %v1053
      %v1462 = vpack.c.b16 %v1062, %v1054
      %v1463 = vpack.c.b16 %v1071, %v1063
      %v1464 = vpack.c.b16 %v1072, %v1064
      %v1465 = vpack.c.b16 %v1073, %v1065
      %v1466 = vpack.c.b16 %v1074, %v1066
      %v1467 = vpack.c.b16 %v1075, %v1067
      %v1468 = vpack.c.b16 %v1076, %v1068
      %v1469 = vpack.c.b16 %v1077, %v1069
      %v1470 = vpack.c.b16 %v1078, %v1070
      %v1471 = vpack.c.b16 %v1087, %v1079
      %v1472 = vpack.c.b16 %v1088, %v1080
      %v1473 = vpack.c.b16 %v1089, %v1081
      %v1474 = vpack.c.b16 %v1090, %v1082
      %v1475 = vpack.c.b16 %v1091, %v1083
      %v1476 = vpack.c.b16 %v1092, %v1084
      %v1477 = vpack.c.b16 %v1093, %v1085
      %v1478 = vpack.c.b16 %v1094, %v1086
      %v1479 = vpack.c.b16 %v1103, %v1095
      %v1480 = vpack.c.b16 %v1104, %v1096
      %v1481 = vpack.c.b16 %v1105, %v1097
      %v1482 = vpack.c.b16 %v1106, %v1098
      %v1483 = vpack.c.b16 %v1107, %v1099
      %v1484 = vpack.c.b16 %v1108, %v1100
      %v1485 = vpack.c.b16 %v1109, %v1101
      %v1486 = vpack.c.b16 %v1110, %v1102
      %v1487 = vpack.c.b16 %v1119, %v1111
      %v1488 = vpack.c.b16 %v1120, %v1112
      %v1489 = vpack.c.b16 %v1121, %v1113
      %v1490 = vpack.c.b16 %v1122, %v1114
      %v1491 = vpack.c.b16 %v1123, %v1115
      %v1492 = vpack.c.b16 %v1124, %v1116
      %v1493 = vpack.c.b16 %v1125, %v1117
      %v1494 = vpack.c.b16 %v1126, %v1118
      %v1495 = vpack.c.b16 %v1135, %v1127
      %v1496 = vpack.c.b16 %v1136, %v1128
      %v1497 = vpack.c.b16 %v1137, %v1129
      %v1498 = vpack.c.b16 %v1138, %v1130
      %v1499 = vpack.c.b16 %v1139, %v1131
      %v1500 = vpack.c.b16 %v1140, %v1132
      %v1501 = vpack.c.b16 %v1141, %v1133
      %v1502 = vpack.c.b16 %v1142, %v1134
      %v1503 = vpack.c.b16 %v1151, %v1143
      %v1504 = vpack.c.b16 %v1152, %v1144
      %v1505 = vpack.c.b16 %v1153, %v1145
      %v1506 = vpack.c.b16 %v1154, %v1146
      %v1507 = vpack.c.b16 %v1155, %v1147
      %v1508 = vpack.c.b16 %v1156, %v1148
      %v1509 = vpack.c.b16 %v1157, %v1149
      %v1510 = vpack.c.b16 %v1158, %v1150
      %v1511 = vpack.c.b16 %v1167, %v1159
      %v1512 = vpack.c.b16 %v1168, %v1160
      %v1513 = vpack.c.b16 %v1169, %v1161
      %v1514 = vpack.c.b16 %v1170, %v1162
      %v1515 = vpack.c.b16 %v1171, %v1163
      %v1516 = vpack.c.b16 %v1172, %v1164
      %v1517 = vpack.c.b16 %v1173, %v1165
      %v1518 = vpack.c.b16 %v1174, %v1166
      %v1519 = vpack.c.b16 %v1183, %v1175
      %v1520 = vpack.c.b16 %v1184, %v1176
      %v1521 = vpack.c.b16 %v1185, %v1177
      %v1522 = vpack.c.b16 %v1186, %v1178
      %v1523 = vpack.c.b16 %v1187, %v1179
      %v1524 = vpack.c.b16 %v1188, %v1180
      %v1525 = vpack.c.b16 %v1189, %v1181
      %v1526 = vpack.c.b16 %v1190, %v1182
      %v1527 = vpack.c.b16 %v1199, %v1191
      %v1528 = vpack.c.b16 %v1200, %v1192
      %v1529 = vpack.c.b16 %v1201, %v1193
      %v1530 = vpack.c.b16 %v1202, %v1194
      %v1531 = vpack.c.b16 %v1203, %v1195
      %v1532 = vpack.c.b16 %v1204, %v1196
      %v1533 = vpack.c.b16 %v1205, %v1197
      %v1534 = vpack.c.b16 %v1206, %v1198
      %v1535 = vpack.c.b16 %v1215, %v1207
      %v1536 = vpack.c.b16 %v1216, %v1208
      %v1537 = vpack.c.b16 %v1217, %v1209
      %v1538 = vpack.c.b16 %v1218, %v1210
      %v1539 = vpack.c.b16 %v1219, %v1211
      %v1540 = vpack.c.b16 %v1220, %v1212
      %v1541 = vpack.c.b16 %v1221, %v1213
      %v1542 = vpack.c.b16 %v1222, %v1214
      %v1543 = vpack.c.b16 %v1231, %v1223
      %v1544 = vpack.c.b16 %v1232, %v1224
      %v1545 = vpack.c.b16 %v1233, %v1225
      %v1546 = vpack.c.b16 %v1234, %v1226
      %v1547 = vpack.c.b16 %v1235, %v1227
      %v1548 = vpack.c.b16 %v1236, %v1228
      %v1549 = vpack.c.b16 %v1237, %v1229
      %v1550 = vpack.c.b16 %v1238, %v1230
      %v1551 = vpack.c.b16 %v1247, %v1239
      %v1552 = vpack.c.b16 %v1248, %v1240
      %v1553 = vpack.c.b16 %v1249, %v1241
      %v1554 = vpack.c.b16 %v1250, %v1242
      %v1555 = vpack.c.b16 %v1251, %v1243
      %v1556 = vpack.c.b16 %v1252, %v1244
      %v1557 = vpack.c.b16 %v1253, %v1245
      %v1558 = vpack.c.b16 %v1254, %v1246
      %v1559 = vpack.c.b16 %v1263, %v1255
      %v1560 = vpack.c.b16 %v1264, %v1256
      %v1561 = vpack.c.b16 %v1265, %v1257
      %v1562 = vpack.c.b16 %v1266, %v1258
      %v1563 = vpack.c.b16 %v1267, %v1259
      %v1564 = vpack.c.b16 %v1268, %v1260
      %v1565 = vpack.c.b16 %v1269, %v1261
      %v1566 = vpack.c.b16 %v1270, %v1262
      %v1567 = vpack.c.b16 %v1279, %v1271
      %v1568 = vpack.c.b16 %v1280, %v1272
      %v1569 = vpack.c.b16 %v1281, %v1273
      %v1570 = vpack.c.b16 %v1282, %v1274
      %v1571 = vpack.c.b16 %v1283, %v1275
      %v1572 = vpack.c.b16 %v1284, %v1276
      %v1573 = vpack.c.b16 %v1285, %v1277
      %v1574 = vpack.c.b16 %v1286, %v1278
      %v1575 = vpack.c.b16 %v1295, %v1287
      %v1576 = vpack.c.b16 %v1296, %v1288
      %v1577 = vpack.c.b16 %v1297, %v1289
      %v1578 = vpack.c.b16 %v1298, %v1290
      %v1579 = vpack.c.b16 %v1299, %v1291
      %v1580 = vpack.c.b16 %v1300, %v1292
      %v1581 = vpack.c.b16 %v1301, %v1293
      %v1582 = vpack.c.b16 %v1302, %v1294
      %v1583 = vpack.c.b16 %v1311, %v1303
      %v1584 = vpack.c.b16 %v1312, %v1304
      %v1585 = vpack.c.b16 %v1313, %v1305
      %v1586 = vpack.c.b16 %v1314, %v1306
      %v1587 = vpack.c.b16 %v1315, %v1307
      %v1588 = vpack.c.b16 %v1316, %v1308
      %v1589 = vpack.c.b16 %v1317, %v1309
      %v1590 = vpack.c.b16 %v1318, %v1310
      %v1591 = vpack.c.b16 %v1327, %v1319
      %v1592 = vpack.c.b16 %v1328, %v1320
      %v1593 = vpack.c.b16 %v1329, %v1321
      %v1594 = vpack.c.b16 %v1330, %v1322
      %v1595 = vpack.c.b16 %v1331, %v1323
      %v1596 = vpack.c.b16 %v1332, %v1324
      %v1597 = vpack.c.b16 %v1333, %v1325
      %v1598 = vpack.c.b16 %v1334, %v1326
      %v1599 = vpack.c.b16 %v1343, %v1335
      %v1600 = vpack.c.b16 %v1344, %v1336
      %v1601 = vpack.c.b16 %v1345, %v1337
      %v1602 = vpack.c.b16 %v1346, %v1338
      %v1603 = vpack.c.b16 %v1347, %v1339
      %v1604 = vpack.c.b16 %v1348, %v1340
      %v1605 = vpack.c.b16 %v1349, %v1341
      %v1606 = vpack.c.b16 %v1350, %v1342
      %1863 = vmatprep.subr.bf16.mxu0 %v1408
      %1864 = vmatpush1.bf16.msra.mxu0 %v1407
      %1865 = vmatprep.subr.bf16.mxu0 %v1400
      %1866 = vmatpush1.bf16.msra.mxu0 %v1399
      %1867 = vmatprep.subr.bf16.mxu0 %v1392
      %1868 = vmatpush1.bf16.msra.mxu0 %v1391
      %1869 = vmatprep.subr.bf16.mxu0 %v1384
      %1870 = vmatpush1.bf16.msra.mxu0 %v1383
      %1871 = vmatprep.subr.bf16.mxu0 %v1376
      %1872 = vmatpush1.bf16.msra.mxu0 %v1375
      %1873 = vmatprep.subr.bf16.mxu0 %v1368
      %1874 = vmatpush1.bf16.msra.mxu0 %v1367
      %1875 = vmatprep.subr.bf16.mxu0 %v1360
      %1876 = vmatpush1.bf16.msra.mxu0 %v1359
      %1877 = vmatprep.subr.bf16.mxu0 %v1352
      %1878 = vmatpush1.bf16.msra.mxu0 %v1351
      %1879 = vmatprep.subr.bf16.mxu0 %v1472
      %1880 = vmatpush2.bf16.msra.mxu0 %v1471
      %1881 = vmatprep.subr.bf16.mxu0 %v1464
      %1882 = vmatpush2.bf16.msra.mxu0 %v1463
      %1883 = vmatprep.subr.bf16.mxu0 %v1456
      %1884 = vmatpush2.bf16.msra.mxu0 %v1455
      %1885 = vmatprep.subr.bf16.mxu0 %v1448
      %1886 = vmatpush2.bf16.msra.mxu0 %v1447
      %1887 = vmatprep.subr.bf16.mxu0 %v1440
      %1888 = vmatpush2.bf16.msra.mxu0 %v1439
      %1889 = vmatprep.subr.bf16.mxu0 %v1432
      %1890 = vmatpush2.bf16.msra.mxu0 %v1431
      %1891 = vmatprep.subr.bf16.mxu0 %v1424
      %1892 = vmatpush2.bf16.msra.mxu0 %v1423
      %1893 = vmatprep.subr.bf16.mxu0 %v1416
      %1894 = vmatpush2.bf16.msra.mxu0 %v1415
      %1895 = vmatprep.mubr.bf16.mxu0 %v576
      %1896 = vmatmul.mubr.bf16.gmra.mxu0 %v569
      %v1897 = vpop.f32.mrf.mxu0
      %v1898 = vadd.f32 0.0, %v1897
      %v1899 = vpop.f32.mrf.mxu0
      %v1900 = vadd.f32 0.0, %v1899
      %v1901 = vpop.f32.mrf.mxu0
      %v1902 = vpop.f32.mrf.mxu0
      %1903 = vdwg.mxu0
      %1904 = vmatprep.subr.bf16.mxu0 %v1536
      %1905 = vmatpush1.bf16.msra.mxu0 %v1535
      %1906 = vmatprep.subr.bf16.mxu0 %v1528
      %1907 = vmatpush1.bf16.msra.mxu0 %v1527
      %1908 = vmatprep.subr.bf16.mxu0 %v1520
      %1909 = vmatpush1.bf16.msra.mxu0 %v1519
      %1910 = vmatprep.subr.bf16.mxu0 %v1512
      %1911 = vmatpush1.bf16.msra.mxu0 %v1511
      %1912 = vmatprep.subr.bf16.mxu0 %v1504
      %1913 = vmatpush1.bf16.msra.mxu0 %v1503
      %1914 = vmatprep.subr.bf16.mxu0 %v1496
      %1915 = vmatpush1.bf16.msra.mxu0 %v1495
      %1916 = vmatprep.subr.bf16.mxu0 %v1488
      %1917 = vmatpush1.bf16.msra.mxu0 %v1487
      %1918 = vmatprep.subr.bf16.mxu0 %v1480
      %1919 = vmatpush1.bf16.msra.mxu0 %v1479
      %1920 = vmatprep.subr.bf16.mxu0 %v1600
      %1921 = vmatpush2.bf16.msra.mxu0 %v1599
      %1922 = vmatprep.subr.bf16.mxu0 %v1592
      %1923 = vmatpush2.bf16.msra.mxu0 %v1591
      %1924 = vmatprep.subr.bf16.mxu0 %v1584
      %1925 = vmatpush2.bf16.msra.mxu0 %v1583
      %1926 = vmatprep.subr.bf16.mxu0 %v1576
      %1927 = vmatpush2.bf16.msra.mxu0 %v1575
      %1928 = vmatprep.subr.bf16.mxu0 %v1568
      %1929 = vmatpush2.bf16.msra.mxu0 %v1567
      %1930 = vmatprep.subr.bf16.mxu0 %v1560
      %1931 = vmatpush2.bf16.msra.mxu0 %v1559
      %1932 = vmatprep.subr.bf16.mxu0 %v1552
      %1933 = vmatpush2.bf16.msra.mxu0 %v1551
      %1934 = vmatprep.subr.bf16.mxu0 %v1544
      %1935 = vmatpush2.bf16.msra.mxu0 %v1543
      %1936 = vmatprep.mubr.bf16.mxu0 %v578
      %1937 = vmatmul.mubr.bf16.gmra.mxu0 %v577
      %v1938 = vpop.f32.mrf.mxu0
      %v1939 = vadd.f32 %v1898, %v1938
      %v1940 = vpop.f32.mrf.mxu0
      %v1941 = vadd.f32 %v1900, %v1940
      %v1942 = vpop.f32.mrf.mxu0
      %v1943 = vpop.f32.mrf.mxu0
      %1944 = vdwg.mxu0
      %1945 = vmatprep.subr.bf16.mxu0 %v1410
      %1946 = vmatpush1.bf16.msra.mxu0 %v1409
      %1947 = vmatprep.subr.bf16.mxu0 %v1402
      %1948 = vmatpush1.bf16.msra.mxu0 %v1401
      %1949 = vmatprep.subr.bf16.mxu0 %v1394
      %1950 = vmatpush1.bf16.msra.mxu0 %v1393
      %1951 = vmatprep.subr.bf16.mxu0 %v1386
      %1952 = vmatpush1.bf16.msra.mxu0 %v1385
      %1953 = vmatprep.subr.bf16.mxu0 %v1378
      %1954 = vmatpush1.bf16.msra.mxu0 %v1377
      %1955 = vmatprep.subr.bf16.mxu0 %v1370
      %1956 = vmatpush1.bf16.msra.mxu0 %v1369
      %1957 = vmatprep.subr.bf16.mxu0 %v1362
      %1958 = vmatpush1.bf16.msra.mxu0 %v1361
      %1959 = vmatprep.subr.bf16.mxu0 %v1354
      %1960 = vmatpush1.bf16.msra.mxu0 %v1353
      %1961 = vmatprep.subr.bf16.mxu0 %v1474
      %1962 = vmatpush2.bf16.msra.mxu0 %v1473
      %1963 = vmatprep.subr.bf16.mxu0 %v1466
      %1964 = vmatpush2.bf16.msra.mxu0 %v1465
      %1965 = vmatprep.subr.bf16.mxu0 %v1458
      %1966 = vmatpush2.bf16.msra.mxu0 %v1457
      %1967 = vmatprep.subr.bf16.mxu0 %v1450
      %1968 = vmatpush2.bf16.msra.mxu0 %v1449
      %1969 = vmatprep.subr.bf16.mxu0 %v1442
      %1970 = vmatpush2.bf16.msra.mxu0 %v1441
      %1971 = vmatprep.subr.bf16.mxu0 %v1434
      %1972 = vmatpush2.bf16.msra.mxu0 %v1433
      %1973 = vmatprep.subr.bf16.mxu0 %v1426
      %1974 = vmatpush2.bf16.msra.mxu0 %v1425
      %1975 = vmatprep.subr.bf16.mxu0 %v1418
      %1976 = vmatpush2.bf16.msra.mxu0 %v1417
      %1977 = vmatprep.mubr.bf16.mxu0 %v576
      %1978 = vmatmul.mubr.bf16.gmra.mxu0 %v569
      %v1979 = vpop.f32.mrf.mxu0
      %v1980 = vadd.f32 0.0, %v1979
      %v1981 = vpop.f32.mrf.mxu0
      %v1982 = vadd.f32 0.0, %v1981
      %v1983 = vpop.f32.mrf.mxu0
      %v1984 = vpop.f32.mrf.mxu0
      %1985 = vdwg.mxu0
      %1986 = vmatprep.subr.bf16.mxu0 %v1538
      %1987 = vmatpush1.bf16.msra.mxu0 %v1537
      %1988 = vmatprep.subr.bf16.mxu0 %v1530
      %1989 = vmatpush1.bf16.msra.mxu0 %v1529
      %1990 = vmatprep.subr.bf16.mxu0 %v1522
      %1991 = vmatpush1.bf16.msra.mxu0 %v1521
      %1992 = vmatprep.subr.bf16.mxu0 %v1514
      %1993 = vmatpush1.bf16.msra.mxu0 %v1513
      %1994 = vmatprep.subr.bf16.mxu0 %v1506
      %1995 = vmatpush1.bf16.msra.mxu0 %v1505
      %1996 = vmatprep.subr.bf16.mxu0 %v1498
      %1997 = vmatpush1.bf16.msra.mxu0 %v1497
      %1998 = vmatprep.subr.bf16.mxu0 %v1490
      %1999 = vmatpush1.bf16.msra.mxu0 %v1489
      %2000 = vmatprep.subr.bf16.mxu0 %v1482
      %2001 = vmatpush1.bf16.msra.mxu0 %v1481
      %2002 = vmatprep.subr.bf16.mxu0 %v1602
      %2003 = vmatpush2.bf16.msra.mxu0 %v1601
      %2004 = vmatprep.subr.bf16.mxu0 %v1594
      %2005 = vmatpush2.bf16.msra.mxu0 %v1593
      %2006 = vmatprep.subr.bf16.mxu0 %v1586
      %2007 = vmatpush2.bf16.msra.mxu0 %v1585
      %2008 = vmatprep.subr.bf16.mxu0 %v1578
      %2009 = vmatpush2.bf16.msra.mxu0 %v1577
      %2010 = vmatprep.subr.bf16.mxu0 %v1570
      %2011 = vmatpush2.bf16.msra.mxu0 %v1569
      %2012 = vmatprep.subr.bf16.mxu0 %v1562
      %2013 = vmatpush2.bf16.msra.mxu0 %v1561
      %2014 = vmatprep.subr.bf16.mxu0 %v1554
      %2015 = vmatpush2.bf16.msra.mxu0 %v1553
      %2016 = vmatprep.subr.bf16.mxu0 %v1546
      %2017 = vmatpush2.bf16.msra.mxu0 %v1545
      %2018 = vmatprep.mubr.bf16.mxu0 %v578
      %2019 = vmatmul.mubr.bf16.gmra.mxu0 %v577
      %v2020 = vpop.f32.mrf.mxu0
      %v2021 = vadd.f32 %v1980, %v2020
      %v2022 = vpop.f32.mrf.mxu0
      %v2023 = vadd.f32 %v1982, %v2022
      %v2024 = vpop.f32.mrf.mxu0
      %v2025 = vpop.f32.mrf.mxu0
      %2026 = vdwg.mxu0
      %2027 = vmatprep.subr.bf16.mxu0 %v1412
      %2028 = vmatpush1.bf16.msra.mxu0 %v1411
      %2029 = vmatprep.subr.bf16.mxu0 %v1404
      %2030 = vmatpush1.bf16.msra.mxu0 %v1403
      %2031 = vmatprep.subr.bf16.mxu0 %v1396
      %2032 = vmatpush1.bf16.msra.mxu0 %v1395
      %2033 = vmatprep.subr.bf16.mxu0 %v1388
      %2034 = vmatpush1.bf16.msra.mxu0 %v1387
      %2035 = vmatprep.subr.bf16.mxu0 %v1380
      %2036 = vmatpush1.bf16.msra.mxu0 %v1379
      %2037 = vmatprep.subr.bf16.mxu0 %v1372
      %2038 = vmatpush1.bf16.msra.mxu0 %v1371
      %2039 = vmatprep.subr.bf16.mxu0 %v1364
      %2040 = vmatpush1.bf16.msra.mxu0 %v1363
      %2041 = vmatprep.subr.bf16.mxu0 %v1356
      %2042 = vmatpush1.bf16.msra.mxu0 %v1355
      %2043 = vmatprep.subr.bf16.mxu0 %v1476
      %2044 = vmatpush2.bf16.msra.mxu0 %v1475
      %2045 = vmatprep.subr.bf16.mxu0 %v1468
      %2046 = vmatpush2.bf16.msra.mxu0 %v1467
      %2047 = vmatprep.subr.bf16.mxu0 %v1460
      %2048 = vmatpush2.bf16.msra.mxu0 %v1459
      %2049 = vmatprep.subr.bf16.mxu0 %v1452
      %2050 = vmatpush2.bf16.msra.mxu0 %v1451
      %2051 = vmatprep.subr.bf16.mxu0 %v1444
      %2052 = vmatpush2.bf16.msra.mxu0 %v1443
      %2053 = vmatprep.subr.bf16.mxu0 %v1436
      %2054 = vmatpush2.bf16.msra.mxu0 %v1435
      %2055 = vmatprep.subr.bf16.mxu0 %v1428
      %2056 = vmatpush2.bf16.msra.mxu0 %v1427
      %2057 = vmatprep.subr.bf16.mxu0 %v1420
      %2058 = vmatpush2.bf16.msra.mxu0 %v1419
      %2059 = vmatprep.mubr.bf16.mxu0 %v576
      %2060 = vmatmul.mubr.bf16.gmra.mxu0 %v569
      %v2061 = vpop.f32.mrf.mxu0
      %v2062 = vadd.f32 0.0, %v2061
      %v2063 = vpop.f32.mrf.mxu0
      %v2064 = vadd.f32 0.0, %v2063
      %v2065 = vpop.f32.mrf.mxu0
      %v2066 = vpop.f32.mrf.mxu0
      %2067 = vdwg.mxu0
      %2068 = vmatprep.subr.bf16.mxu0 %v1540
      %2069 = vmatpush1.bf16.msra.mxu0 %v1539
      %2070 = vmatprep.subr.bf16.mxu0 %v1532
      %2071 = vmatpush1.bf16.msra.mxu0 %v1531
      %2072 = vmatprep.subr.bf16.mxu0 %v1524
      %2073 = vmatpush1.bf16.msra.mxu0 %v1523
      %2074 = vmatprep.subr.bf16.mxu0 %v1516
      %2075 = vmatpush1.bf16.msra.mxu0 %v1515
      %2076 = vmatprep.subr.bf16.mxu0 %v1508
      %2077 = vmatpush1.bf16.msra.mxu0 %v1507
      %2078 = vmatprep.subr.bf16.mxu0 %v1500
      %2079 = vmatpush1.bf16.msra.mxu0 %v1499
      %2080 = vmatprep.subr.bf16.mxu0 %v1492
      %2081 = vmatpush1.bf16.msra.mxu0 %v1491
      %2082 = vmatprep.subr.bf16.mxu0 %v1484
      %2083 = vmatpush1.bf16.msra.mxu0 %v1483
      %2084 = vmatprep.subr.bf16.mxu0 %v1604
      %2085 = vmatpush2.bf16.msra.mxu0 %v1603
      %2086 = vmatprep.subr.bf16.mxu0 %v1596
      %2087 = vmatpush2.bf16.msra.mxu0 %v1595
      %2088 = vmatprep.subr.bf16.mxu0 %v1588
      %2089 = vmatpush2.bf16.msra.mxu0 %v1587
      %2090 = vmatprep.subr.bf16.mxu0 %v1580
      %2091 = vmatpush2.bf16.msra.mxu0 %v1579
      %2092 = vmatprep.subr.bf16.mxu0 %v1572
      %2093 = vmatpush2.bf16.msra.mxu0 %v1571
      %2094 = vmatprep.subr.bf16.mxu0 %v1564
      %2095 = vmatpush2.bf16.msra.mxu0 %v1563
      %2096 = vmatprep.subr.bf16.mxu0 %v1556
      %2097 = vmatpush2.bf16.msra.mxu0 %v1555
      %2098 = vmatprep.subr.bf16.mxu0 %v1548
      %2099 = vmatpush2.bf16.msra.mxu0 %v1547
      %2100 = vmatprep.mubr.bf16.mxu0 %v578
      %2101 = vmatmul.mubr.bf16.gmra.mxu0 %v577
      %v2102 = vpop.f32.mrf.mxu0
      %v2103 = vadd.f32 %v2062, %v2102
      %v2104 = vpop.f32.mrf.mxu0
      %v2105 = vadd.f32 %v2064, %v2104
      %v2106 = vpop.f32.mrf.mxu0
      %v2107 = vpop.f32.mrf.mxu0
      %2108 = vdwg.mxu0
      %2109 = vmatprep.subr.bf16.mxu0 %v1414
      %2110 = vmatpush1.bf16.msra.mxu0 %v1413
      %2111 = vmatprep.subr.bf16.mxu0 %v1406
      %2112 = vmatpush1.bf16.msra.mxu0 %v1405
      %2113 = vmatprep.subr.bf16.mxu0 %v1398
      %2114 = vmatpush1.bf16.msra.mxu0 %v1397
      %2115 = vmatprep.subr.bf16.mxu0 %v1390
      %2116 = vmatpush1.bf16.msra.mxu0 %v1389
      %2117 = vmatprep.subr.bf16.mxu0 %v1382
      %2118 = vmatpush1.bf16.msra.mxu0 %v1381
      %2119 = vmatprep.subr.bf16.mxu0 %v1374
      %2120 = vmatpush1.bf16.msra.mxu0 %v1373
      %2121 = vmatprep.subr.bf16.mxu0 %v1366
      %2122 = vmatpush1.bf16.msra.mxu0 %v1365
      %2123 = vmatprep.subr.bf16.mxu0 %v1358
      %2124 = vmatpush1.bf16.msra.mxu0 %v1357
      %2125 = vmatprep.subr.bf16.mxu0 %v1478
      %2126 = vmatpush2.bf16.msra.mxu0 %v1477
      %2127 = vmatprep.subr.bf16.mxu0 %v1470
      %2128 = vmatpush2.bf16.msra.mxu0 %v1469
      %2129 = vmatprep.subr.bf16.mxu0 %v1462
      %2130 = vmatpush2.bf16.msra.mxu0 %v1461
      %2131 = vmatprep.subr.bf16.mxu0 %v1454
      %2132 = vmatpush2.bf16.msra.mxu0 %v1453
      %2133 = vmatprep.subr.bf16.mxu0 %v1446
      %2134 = vmatpush2.bf16.msra.mxu0 %v1445
      %2135 = vmatprep.subr.bf16.mxu0 %v1438
      %2136 = vmatpush2.bf16.msra.mxu0 %v1437
      %2137 = vmatprep.subr.bf16.mxu0 %v1430
      %2138 = vmatpush2.bf16.msra.mxu0 %v1429
      %2139 = vmatprep.subr.bf16.mxu0 %v1422
      %2140 = vmatpush2.bf16.msra.mxu0 %v1421
      %2141 = vmatprep.mubr.bf16.mxu0 %v576
      %2142 = vmatmul.mubr.bf16.gmra.mxu0 %v569
      %v2143 = vpop.f32.mrf.mxu0
      %v2144 = vadd.f32 0.0, %v2143
      %v2145 = vpop.f32.mrf.mxu0
      %v2146 = vadd.f32 0.0, %v2145
      %v2147 = vpop.f32.mrf.mxu0
      %v2148 = vpop.f32.mrf.mxu0
      %2149 = vdwg.mxu0
      %2150 = vmatprep.subr.bf16.mxu0 %v1542
      %2151 = vmatpush1.bf16.msra.mxu0 %v1541
      %2152 = vmatprep.subr.bf16.mxu0 %v1534
      %2153 = vmatpush1.bf16.msra.mxu0 %v1533
      %2154 = vmatprep.subr.bf16.mxu0 %v1526
      %2155 = vmatpush1.bf16.msra.mxu0 %v1525
      %2156 = vmatprep.subr.bf16.mxu0 %v1518
      %2157 = vmatpush1.bf16.msra.mxu0 %v1517
      %2158 = vmatprep.subr.bf16.mxu0 %v1510
      %2159 = vmatpush1.bf16.msra.mxu0 %v1509
      %2160 = vmatprep.subr.bf16.mxu0 %v1502
      %2161 = vmatpush1.bf16.msra.mxu0 %v1501
      %2162 = vmatprep.subr.bf16.mxu0 %v1494
      %2163 = vmatpush1.bf16.msra.mxu0 %v1493
      %2164 = vmatprep.subr.bf16.mxu0 %v1486
      %2165 = vmatpush1.bf16.msra.mxu0 %v1485
      %2166 = vmatprep.subr.bf16.mxu0 %v1606
      %2167 = vmatpush2.bf16.msra.mxu0 %v1605
      %2168 = vmatprep.subr.bf16.mxu0 %v1598
      %2169 = vmatpush2.bf16.msra.mxu0 %v1597
      %2170 = vmatprep.subr.bf16.mxu0 %v1590
      %2171 = vmatpush2.bf16.msra.mxu0 %v1589
      %2172 = vmatprep.subr.bf16.mxu0 %v1582
      %2173 = vmatpush2.bf16.msra.mxu0 %v1581
      %2174 = vmatprep.subr.bf16.mxu0 %v1574
      %2175 = vmatpush2.bf16.msra.mxu0 %v1573
      %2176 = vmatprep.subr.bf16.mxu0 %v1566
      %2177 = vmatpush2.bf16.msra.mxu0 %v1565
      %2178 = vmatprep.subr.bf16.mxu0 %v1558
      %2179 = vmatpush2.bf16.msra.mxu0 %v1557
      %2180 = vmatprep.subr.bf16.mxu0 %v1550
      %2181 = vmatpush2.bf16.msra.mxu0 %v1549
      %2182 = vmatprep.mubr.bf16.mxu0 %v578
      %2183 = vmatmul.mubr.bf16.gmra.mxu0 %v577
      %v2184 = vpop.f32.mrf.mxu0
      %v2185 = vadd.f32 %v2144, %v2184
      %v2186 = vpop.f32.mrf.mxu0
      %v2187 = vadd.f32 %v2146, %v2186
      %v2188 = vpop.f32.mrf.mxu0
      %v2189 = vpop.f32.mrf.mxu0
      %2190 = vdwg.mxu0
      %v2199 = vcombine.low %v1939, %v1941
      %v2200 = vcombine.low %v2021, %v2023
      %v2202 = vunpack.c.l.s4 1983009808
      %v2203 = vunpack.c.0.s8 %v2202
      %v2204 = vlaneseq
      %v2205 = vshrl.u32 %v2204, 7
      %v2206 = vsub.s32 %v2203, %v2205
      %v2207 = vrot.slane %v2199, %v2206
      %v2209 = vunpack.c.l.s4 1983009808
      %v2210 = vunpack.c.0.s8 %v2209
      %v2211 = vlaneseq
      %v2212 = vshrl.u32 %v2211, 7
      %v2213 = vsub.s32 %v2210, %v2212
      %v2214 = vrot.slane %v2200, %v2213
      %v2215 = vcombine.low %v2207, %v2214
      %v2216 = vcombine.low %v2103, %v2105
      %v2217 = vcombine.low %v2185, %v2187
      %v2219 = vunpack.c.l.s4 1983009808
      %v2220 = vunpack.c.0.s8 %v2219
      %v2221 = vlaneseq
      %v2222 = vshrl.u32 %v2221, 7
      %v2223 = vsub.s32 %v2220, %v2222
      %v2224 = vrot.slane %v2216, %v2223
      %v2226 = vunpack.c.l.s4 1983009808
      %v2227 = vunpack.c.0.s8 %v2226
      %v2228 = vlaneseq
      %v2229 = vshrl.u32 %v2228, 7
      %v2230 = vsub.s32 %v2227, %v2229
      %v2231 = vrot.slane %v2217, %v2230
      %v2232 = vcombine.low %v2224, %v2231
      %v2235 = vadd.f32 %v295, %v2215
      %v2236 = vadd.f32 %v296, %v2232
      %2237 = vst [vmem:[#allocation2] sm:$0xff] %v2235
      %2238 = vst [vmem:[#allocation2 + $0x8] sm:$0xff] %v2236
      %p2239 = scmp.eq.s32.totalorder %s18, 3
      // Predicated region
      $region53: #{discriminator_forward.7} parent=47 // pred_check
        %p2240 = pneg %p2239
      $region54: #{discriminator_forward.7} parent=47 // pred_check_branch
        %2242 = sbr.rel (%p2240) target = $region56
      $region55: #{discriminator_forward.7} parent=47 // pred_region
        %v2243 = vld [vmem:[#allocation2] sm:$0xff]
        %v2244 = vld [vmem:[#allocation2 + $0x8] sm:$0xff]
        %v2245 = vld [vmem:[%s2] sm:$0xff]
        %v2247 = vlaneseq
        %v2248 = vshrl.u32 %v2247, 7
        %v2249 = vsub.s32 0, %v2248
        %v2250 = vrot.slane %v2245, %v2249
        %v2251 = vlaneseq
        %v2252 = vshrl.u32 %v2251, 7
        %v2253 = vsub.s32 1, %v2252
        %v2254 = vrot.slane %v2245, %v2253
        %v2255 = vlaneseq
        %v2256 = vshrl.u32 %v2255, 7
        %v2257 = vsub.s32 2, %v2256
        %v2258 = vrot.slane %v2245, %v2257
        %v2259 = vlaneseq
        %v2260 = vshrl.u32 %v2259, 7
        %v2261 = vsub.s32 3, %v2260
        %v2262 = vrot.slane %v2245, %v2261
        %v2263 = vlaneseq
        %v2264 = vshrl.u32 %v2263, 7
        %v2265 = vsub.s32 4, %v2264
        %v2266 = vrot.slane %v2245, %v2265
        %v2267 = vlaneseq
        %v2268 = vshrl.u32 %v2267, 7
        %v2269 = vsub.s32 5, %v2268
        %v2270 = vrot.slane %v2245, %v2269
        %v2271 = vlaneseq
        %v2272 = vshrl.u32 %v2271, 7
        %v2273 = vsub.s32 6, %v2272
        %v2274 = vrot.slane %v2245, %v2273
        %v2275 = vlaneseq
        %v2276 = vshrl.u32 %v2275, 7
        %v2277 = vsub.s32 7, %v2276
        %v2278 = vrot.slane %v2245, %v2277
        %v2279 = vcombine.low %v2250, %v2254
        %v2280 = vcombine.low %v2258, %v2262
        %v2282 = vunpack.c.l.s4 1983009808
        %v2283 = vunpack.c.0.s8 %v2282
        %v2284 = vlaneseq
        %v2285 = vshrl.u32 %v2284, 7
        %v2286 = vsub.s32 %v2283, %v2285
        %v2287 = vrot.slane %v2279, %v2286
        %v2289 = vunpack.c.l.s4 1983009808
        %v2290 = vunpack.c.0.s8 %v2289
        %v2291 = vlaneseq
        %v2292 = vshrl.u32 %v2291, 7
        %v2293 = vsub.s32 %v2290, %v2292
        %v2294 = vrot.slane %v2280, %v2293
        %v2295 = vcombine.low %v2287, %v2294
        %v2296 = vcombine.low %v2266, %v2270
        %v2297 = vcombine.low %v2274, %v2278
        %v2299 = vunpack.c.l.s4 1983009808
        %v2300 = vunpack.c.0.s8 %v2299
        %v2301 = vlaneseq
        %v2302 = vshrl.u32 %v2301, 7
        %v2303 = vsub.s32 %v2300, %v2302
        %v2304 = vrot.slane %v2296, %v2303
        %v2306 = vunpack.c.l.s4 1983009808
        %v2307 = vunpack.c.0.s8 %v2306
        %v2308 = vlaneseq
        %v2309 = vshrl.u32 %v2308, 7
        %v2310 = vsub.s32 %v2307, %v2309
        %v2311 = vrot.slane %v2297, %v2310
        %v2312 = vcombine.low %v2304, %v2311
        %v2315 = vadd.f32 %v2243, %v2295
        %v2316 = vadd.f32 %v2244, %v2312
        %v2319 = vcombine.high %v2315, %v2315
        %v2321 = vunpack.c.l.s4 1983009808
        %v2322 = vunpack.c.0.s8 %v2321
        %v2323 = vlaneseq
        %v2324 = vshrl.u32 %v2323, 7
        %v2325 = vsub.s32 %v2322, %v2324
        %v2326 = vrot.slane %v2315, %v2325
        %v2328 = vunpack.c.l.s4 1983009808
        %v2329 = vunpack.c.0.s8 %v2328
        %v2330 = vlaneseq
        %v2331 = vshrl.u32 %v2330, 7
        %v2332 = vsub.s32 %v2329, %v2331
        %v2333 = vrot.slane %v2319, %v2332
        %v2334 = vcombine.high %v2326, %v2326
        %v2335 = vcombine.high %v2333, %v2333
        %v2336 = vcombine.high %v2316, %v2316
        %v2338 = vunpack.c.l.s4 1983009808
        %v2339 = vunpack.c.0.s8 %v2338
        %v2340 = vlaneseq
        %v2341 = vshrl.u32 %v2340, 7
        %v2342 = vsub.s32 %v2339, %v2341
        %v2343 = vrot.slane %v2316, %v2342
        %v2345 = vunpack.c.l.s4 1983009808
        %v2346 = vunpack.c.0.s8 %v2345
        %v2347 = vlaneseq
        %v2348 = vshrl.u32 %v2347, 7
        %v2349 = vsub.s32 %v2346, %v2348
        %v2350 = vrot.slane %v2336, %v2349
        %v2351 = vcombine.high %v2343, %v2343
        %v2352 = vcombine.high %v2350, %v2350
        %vm2361 = vcmask 1041408
        %v2362 = vsel %vm2361, %v2326, 0.0
        %v2363 = vrot.slane %v2362, 4
        %v2364 = vadd.f32 %v2362, %v2363
        %v2365 = vrot.slane %v2364, 2
        %v2366 = vadd.f32 %v2364, %v2365
        %v2367 = vrot.slane %v2366, 1
        %v2368 = vadd.f32 %v2366, %v2367
        %v2369 = vsel %vm2361, %v2334, 0.0
        %v2370 = vrot.slane %v2369, 4
        %v2371 = vadd.f32 %v2369, %v2370
        %v2372 = vrot.slane %v2371, 2
        %v2373 = vadd.f32 %v2371, %v2372
        %v2374 = vrot.slane %v2373, 1
        %v2375 = vadd.f32 %v2373, %v2374
        %v2376 = vsel %vm2361, %v2333, 0.0
        %v2377 = vrot.slane %v2376, 4
        %v2378 = vadd.f32 %v2376, %v2377
        %v2379 = vrot.slane %v2378, 2
        %v2380 = vadd.f32 %v2378, %v2379
        %v2381 = vrot.slane %v2380, 1
        %v2382 = vadd.f32 %v2380, %v2381
        %v2383 = vsel %vm2361, %v2335, 0.0
        %v2384 = vrot.slane %v2383, 4
        %v2385 = vadd.f32 %v2383, %v2384
        %v2386 = vrot.slane %v2385, 2
        %v2387 = vadd.f32 %v2385, %v2386
        %v2388 = vrot.slane %v2387, 1
        %v2389 = vadd.f32 %v2387, %v2388
        %v2390 = vsel %vm2361, %v2343, 0.0
        %v2391 = vrot.slane %v2390, 4
        %v2392 = vadd.f32 %v2390, %v2391
        %v2393 = vrot.slane %v2392, 2
        %v2394 = vadd.f32 %v2392, %v2393
        %v2395 = vrot.slane %v2394, 1
        %v2396 = vadd.f32 %v2394, %v2395
        %v2397 = vsel %vm2361, %v2351, 0.0
        %v2398 = vrot.slane %v2397, 4
        %v2399 = vadd.f32 %v2397, %v2398
        %v2400 = vrot.slane %v2399, 2
        %v2401 = vadd.f32 %v2399, %v2400
        %v2402 = vrot.slane %v2401, 1
        %v2403 = vadd.f32 %v2401, %v2402
        %v2404 = vsel %vm2361, %v2350, 0.0
        %v2405 = vrot.slane %v2404, 4
        %v2406 = vadd.f32 %v2404, %v2405
        %v2407 = vrot.slane %v2406, 2
        %v2408 = vadd.f32 %v2406, %v2407
        %v2409 = vrot.slane %v2408, 1
        %v2410 = vadd.f32 %v2408, %v2409
        %v2411 = vsel %vm2361, %v2352, 0.0
        %v2412 = vrot.slane %v2411, 4
        %v2413 = vadd.f32 %v2411, %v2412
        %v2414 = vrot.slane %v2413, 2
        %v2415 = vadd.f32 %v2413, %v2414
        %v2416 = vrot.slane %v2415, 1
        %v2417 = vadd.f32 %v2415, %v2416
        %v2418 = vrcp.pop 2.0
        %v2419 = vmul.f32 %v2368, %v2418
        %v2420 = vmul.f32 %v2375, %v2418
        %v2421 = vmul.f32 %v2382, %v2418
        %v2422 = vmul.f32 %v2389, %v2418
        %v2423 = vmul.f32 %v2396, %v2418
        %v2424 = vmul.f32 %v2403, %v2418
        %v2425 = vmul.f32 %v2410, %v2418
        %v2426 = vmul.f32 %v2417, %v2418
        %v2435 = vcombine.low %v2419, %v2420
        %v2436 = vcombine.low %v2421, %v2422
        %v2438 = vunpack.c.l.s4 1983009808
        %v2439 = vunpack.c.0.s8 %v2438
        %v2440 = vlaneseq
        %v2441 = vshrl.u32 %v2440, 7
        %v2442 = vsub.s32 %v2439, %v2441
        %v2443 = vrot.slane %v2435, %v2442
        %v2445 = vunpack.c.l.s4 1983009808
        %v2446 = vunpack.c.0.s8 %v2445
        %v2447 = vlaneseq
        %v2448 = vshrl.u32 %v2447, 7
        %v2449 = vsub.s32 %v2446, %v2448
        %v2450 = vrot.slane %v2436, %v2449
        %v2451 = vcombine.low %v2443, %v2450
        %v2452 = vcombine.low %v2423, %v2424
        %v2453 = vcombine.low %v2425, %v2426
        %v2455 = vunpack.c.l.s4 1983009808
        %v2456 = vunpack.c.0.s8 %v2455
        %v2457 = vlaneseq
        %v2458 = vshrl.u32 %v2457, 7
        %v2459 = vsub.s32 %v2456, %v2458
        %v2460 = vrot.slane %v2452, %v2459
        %v2462 = vunpack.c.l.s4 1983009808
        %v2463 = vunpack.c.0.s8 %v2462
        %v2464 = vlaneseq
        %v2465 = vshrl.u32 %v2464, 7
        %v2466 = vsub.s32 %v2463, %v2465
        %v2467 = vrot.slane %v2453, %v2466
        %v2468 = vcombine.low %v2460, %v2467
        %v2471 = vsub.f32 %v2315, %v2451
        %v2472 = vsub.f32 %v2316, %v2468
        %v2473 = vmul.f32 %v2471, %v2471
        %v2474 = vmul.f32 %v2472, %v2472
        %v2477 = vcombine.high %v2473, %v2473
        %v2479 = vunpack.c.l.s4 1983009808
        %v2480 = vunpack.c.0.s8 %v2479
        %v2481 = vlaneseq
        %v2482 = vshrl.u32 %v2481, 7
        %v2483 = vsub.s32 %v2480, %v2482
        %v2484 = vrot.slane %v2473, %v2483
        %v2486 = vunpack.c.l.s4 1983009808
        %v2487 = vunpack.c.0.s8 %v2486
        %v2488 = vlaneseq
        %v2489 = vshrl.u32 %v2488, 7
        %v2490 = vsub.s32 %v2487, %v2489
        %v2491 = vrot.slane %v2477, %v2490
        %v2492 = vcombine.high %v2484, %v2484
        %v2493 = vcombine.high %v2491, %v2491
        %v2494 = vcombine.high %v2474, %v2474
        %v2496 = vunpack.c.l.s4 1983009808
        %v2497 = vunpack.c.0.s8 %v2496
        %v2498 = vlaneseq
        %v2499 = vshrl.u32 %v2498, 7
        %v2500 = vsub.s32 %v2497, %v2499
        %v2501 = vrot.slane %v2474, %v2500
        %v2503 = vunpack.c.l.s4 1983009808
        %v2504 = vunpack.c.0.s8 %v2503
        %v2505 = vlaneseq
        %v2506 = vshrl.u32 %v2505, 7
        %v2507 = vsub.s32 %v2504, %v2506
        %v2508 = vrot.slane %v2494, %v2507
        %v2509 = vcombine.high %v2501, %v2501
        %v2510 = vcombine.high %v2508, %v2508
        %v2519 = vsel %vm2361, %v2484, 0.0
        %v2520 = vrot.slane %v2519, 4
        %v2521 = vadd.f32 %v2519, %v2520
        %v2522 = vrot.slane %v2521, 2
        %v2523 = vadd.f32 %v2521, %v2522
        %v2524 = vrot.slane %v2523, 1
        %v2525 = vadd.f32 %v2523, %v2524
        %v2526 = vsel %vm2361, %v2492, 0.0
        %v2527 = vrot.slane %v2526, 4
        %v2528 = vadd.f32 %v2526, %v2527
        %v2529 = vrot.slane %v2528, 2
        %v2530 = vadd.f32 %v2528, %v2529
        %v2531 = vrot.slane %v2530, 1
        %v2532 = vadd.f32 %v2530, %v2531
        %v2533 = vsel %vm2361, %v2491, 0.0
        %v2534 = vrot.slane %v2533, 4
        %v2535 = vadd.f32 %v2533, %v2534
        %v2536 = vrot.slane %v2535, 2
        %v2537 = vadd.f32 %v2535, %v2536
        %v2538 = vrot.slane %v2537, 1
        %v2539 = vadd.f32 %v2537, %v2538
        %v2540 = vsel %vm2361, %v2493, 0.0
        %v2541 = vrot.slane %v2540, 4
        %v2542 = vadd.f32 %v2540, %v2541
        %v2543 = vrot.slane %v2542, 2
        %v2544 = vadd.f32 %v2542, %v2543
        %v2545 = vrot.slane %v2544, 1
        %v2546 = vadd.f32 %v2544, %v2545
        %v2547 = vsel %vm2361, %v2501, 0.0
        %v2548 = vrot.slane %v2547, 4
        %v2549 = vadd.f32 %v2547, %v2548
        %v2550 = vrot.slane %v2549, 2
        %v2551 = vadd.f32 %v2549, %v2550
        %v2552 = vrot.slane %v2551, 1
        %v2553 = vadd.f32 %v2551, %v2552
        %v2554 = vsel %vm2361, %v2509, 0.0
        %v2555 = vrot.slane %v2554, 4
        %v2556 = vadd.f32 %v2554, %v2555
        %v2557 = vrot.slane %v2556, 2
        %v2558 = vadd.f32 %v2556, %v2557
        %v2559 = vrot.slane %v2558, 1
        %v2560 = vadd.f32 %v2558, %v2559
        %v2561 = vsel %vm2361, %v2508, 0.0
        %v2562 = vrot.slane %v2561, 4
        %v2563 = vadd.f32 %v2561, %v2562
        %v2564 = vrot.slane %v2563, 2
        %v2565 = vadd.f32 %v2563, %v2564
        %v2566 = vrot.slane %v2565, 1
        %v2567 = vadd.f32 %v2565, %v2566
        %v2568 = vsel %vm2361, %v2510, 0.0
        %v2569 = vrot.slane %v2568, 4
        %v2570 = vadd.f32 %v2568, %v2569
        %v2571 = vrot.slane %v2570, 2
        %v2572 = vadd.f32 %v2570, %v2571
        %v2573 = vrot.slane %v2572, 1
        %v2574 = vadd.f32 %v2572, %v2573
        %v2575 = vmul.f32 %v2525, %v2418
        %v2576 = vmul.f32 %v2532, %v2418
        %v2577 = vmul.f32 %v2539, %v2418
        %v2578 = vmul.f32 %v2546, %v2418
        %v2579 = vmul.f32 %v2553, %v2418
        %v2580 = vmul.f32 %v2560, %v2418
        %v2581 = vmul.f32 %v2567, %v2418
        %v2582 = vmul.f32 %v2574, %v2418
        %v2583 = vadd.f32 %v2575, 1e-05
        %v2584 = vadd.f32 %v2576, 1e-05
        %v2585 = vadd.f32 %v2577, 1e-05
        %v2586 = vadd.f32 %v2578, 1e-05
        %v2587 = vadd.f32 %v2579, 1e-05
        %v2588 = vadd.f32 %v2580, 1e-05
        %v2589 = vadd.f32 %v2581, 1e-05
        %v2590 = vadd.f32 %v2582, 1e-05
        %v2591 = vrsqrt.pop %v2583
        %v2592 = vrsqrt.pop %v2584
        %v2593 = vrsqrt.pop %v2585
        %v2594 = vrsqrt.pop %v2586
        %v2595 = vrsqrt.pop %v2587
        %v2596 = vrsqrt.pop %v2588
        %v2597 = vrsqrt.pop %v2589
        %v2598 = vrsqrt.pop %v2590
        %v2607 = vcombine.low %v2591, %v2592
        %v2608 = vcombine.low %v2593, %v2594
        %v2610 = vunpack.c.l.s4 1983009808
        %v2611 = vunpack.c.0.s8 %v2610
        %v2612 = vlaneseq
        %v2613 = vshrl.u32 %v2612, 7
        %v2614 = vsub.s32 %v2611, %v2613
        %v2615 = vrot.slane %v2607, %v2614
        %v2617 = vunpack.c.l.s4 1983009808
        %v2618 = vunpack.c.0.s8 %v2617
        %v2619 = vlaneseq
        %v2620 = vshrl.u32 %v2619, 7
        %v2621 = vsub.s32 %v2618, %v2620
        %v2622 = vrot.slane %v2608, %v2621
        %v2623 = vcombine.low %v2615, %v2622
        %v2624 = vcombine.low %v2595, %v2596
        %v2625 = vcombine.low %v2597, %v2598
        %v2627 = vunpack.c.l.s4 1983009808
        %v2628 = vunpack.c.0.s8 %v2627
        %v2629 = vlaneseq
        %v2630 = vshrl.u32 %v2629, 7
        %v2631 = vsub.s32 %v2628, %v2630
        %v2632 = vrot.slane %v2624, %v2631
        %v2634 = vunpack.c.l.s4 1983009808
        %v2635 = vunpack.c.0.s8 %v2634
        %v2636 = vlaneseq
        %v2637 = vshrl.u32 %v2636, 7
        %v2638 = vsub.s32 %v2635, %v2637
        %v2639 = vrot.slane %v2625, %v2638
        %v2640 = vcombine.low %v2632, %v2639
        %v2643 = vmul.f32 %v2471, %v2623
        %v2644 = vmul.f32 %v2472, %v2640
        %v2645 = vld [vmem:[%s3] sm:$0xff]
        %v2647 = vlaneseq
        %v2648 = vshrl.u32 %v2647, 7
        %v2649 = vsub.s32 0, %v2648
        %v2650 = vrot.slane %v2645, %v2649
        %v2651 = vlaneseq
        %v2652 = vshrl.u32 %v2651, 7
        %v2653 = vsub.s32 1, %v2652
        %v2654 = vrot.slane %v2645, %v2653
        %v2655 = vlaneseq
        %v2656 = vshrl.u32 %v2655, 7
        %v2657 = vsub.s32 2, %v2656
        %v2658 = vrot.slane %v2645, %v2657
        %v2659 = vlaneseq
        %v2660 = vshrl.u32 %v2659, 7
        %v2661 = vsub.s32 3, %v2660
        %v2662 = vrot.slane %v2645, %v2661
        %v2663 = vlaneseq
        %v2664 = vshrl.u32 %v2663, 7
        %v2665 = vsub.s32 4, %v2664
        %v2666 = vrot.slane %v2645, %v2665
        %v2667 = vlaneseq
        %v2668 = vshrl.u32 %v2667, 7
        %v2669 = vsub.s32 5, %v2668
        %v2670 = vrot.slane %v2645, %v2669
        %v2671 = vlaneseq
        %v2672 = vshrl.u32 %v2671, 7
        %v2673 = vsub.s32 6, %v2672
        %v2674 = vrot.slane %v2645, %v2673
        %v2675 = vlaneseq
        %v2676 = vshrl.u32 %v2675, 7
        %v2677 = vsub.s32 7, %v2676
        %v2678 = vrot.slane %v2645, %v2677
        %v2679 = vcombine.low %v2650, %v2654
        %v2680 = vcombine.low %v2658, %v2662
        %v2682 = vunpack.c.l.s4 1983009808
        %v2683 = vunpack.c.0.s8 %v2682
        %v2684 = vlaneseq
        %v2685 = vshrl.u32 %v2684, 7
        %v2686 = vsub.s32 %v2683, %v2685
        %v2687 = vrot.slane %v2679, %v2686
        %v2689 = vunpack.c.l.s4 1983009808
        %v2690 = vunpack.c.0.s8 %v2689
        %v2691 = vlaneseq
        %v2692 = vshrl.u32 %v2691, 7
        %v2693 = vsub.s32 %v2690, %v2692
        %v2694 = vrot.slane %v2680, %v2693
        %v2695 = vcombine.low %v2687, %v2694
        %v2696 = vcombine.low %v2666, %v2670
        %v2697 = vcombine.low %v2674, %v2678
        %v2699 = vunpack.c.l.s4 1983009808
        %v2700 = vunpack.c.0.s8 %v2699
        %v2701 = vlaneseq
        %v2702 = vshrl.u32 %v2701, 7
        %v2703 = vsub.s32 %v2700, %v2702
        %v2704 = vrot.slane %v2696, %v2703
        %v2706 = vunpack.c.l.s4 1983009808
        %v2707 = vunpack.c.0.s8 %v2706
        %v2708 = vlaneseq
        %v2709 = vshrl.u32 %v2708, 7
        %v2710 = vsub.s32 %v2707, %v2709
        %v2711 = vrot.slane %v2697, %v2710
        %v2712 = vcombine.low %v2704, %v2711
        %v2715 = vmul.f32 %v2643, %v2695
        %v2716 = vmul.f32 %v2644, %v2712
        %v2717 = vld [vmem:[%s4] sm:$0xff]
        %v2719 = vlaneseq
        %v2720 = vshrl.u32 %v2719, 7
        %v2721 = vsub.s32 0, %v2720
        %v2722 = vrot.slane %v2717, %v2721
        %v2723 = vlaneseq
        %v2724 = vshrl.u32 %v2723, 7
        %v2725 = vsub.s32 1, %v2724
        %v2726 = vrot.slane %v2717, %v2725
        %v2727 = vlaneseq
        %v2728 = vshrl.u32 %v2727, 7
        %v2729 = vsub.s32 2, %v2728
        %v2730 = vrot.slane %v2717, %v2729
        %v2731 = vlaneseq
        %v2732 = vshrl.u32 %v2731, 7
        %v2733 = vsub.s32 3, %v2732
        %v2734 = vrot.slane %v2717, %v2733
        %v2735 = vlaneseq
        %v2736 = vshrl.u32 %v2735, 7
        %v2737 = vsub.s32 4, %v2736
        %v2738 = vrot.slane %v2717, %v2737
        %v2739 = vlaneseq
        %v2740 = vshrl.u32 %v2739, 7
        %v2741 = vsub.s32 5, %v2740
        %v2742 = vrot.slane %v2717, %v2741
        %v2743 = vlaneseq
        %v2744 = vshrl.u32 %v2743, 7
        %v2745 = vsub.s32 6, %v2744
        %v2746 = vrot.slane %v2717, %v2745
        %v2747 = vlaneseq
        %v2748 = vshrl.u32 %v2747, 7
        %v2749 = vsub.s32 7, %v2748
        %v2750 = vrot.slane %v2717, %v2749
        %v2751 = vcombine.low %v2722, %v2726
        %v2752 = vcombine.low %v2730, %v2734
        %v2754 = vunpack.c.l.s4 1983009808
        %v2755 = vunpack.c.0.s8 %v2754
        %v2756 = vlaneseq
        %v2757 = vshrl.u32 %v2756, 7
        %v2758 = vsub.s32 %v2755, %v2757
        %v2759 = vrot.slane %v2751, %v2758
        %v2761 = vunpack.c.l.s4 1983009808
        %v2762 = vunpack.c.0.s8 %v2761
        %v2763 = vlaneseq
        %v2764 = vshrl.u32 %v2763, 7
        %v2765 = vsub.s32 %v2762, %v2764
        %v2766 = vrot.slane %v2752, %v2765
        %v2767 = vcombine.low %v2759, %v2766
        %v2768 = vcombine.low %v2738, %v2742
        %v2769 = vcombine.low %v2746, %v2750
        %v2771 = vunpack.c.l.s4 1983009808
        %v2772 = vunpack.c.0.s8 %v2771
        %v2773 = vlaneseq
        %v2774 = vshrl.u32 %v2773, 7
        %v2775 = vsub.s32 %v2772, %v2774
        %v2776 = vrot.slane %v2768, %v2775
        %v2778 = vunpack.c.l.s4 1983009808
        %v2779 = vunpack.c.0.s8 %v2778
        %v2780 = vlaneseq
        %v2781 = vshrl.u32 %v2780, 7
        %v2782 = vsub.s32 %v2779, %v2781
        %v2783 = vrot.slane %v2769, %v2782
        %v2784 = vcombine.low %v2776, %v2783
        %v2787 = vadd.f32 %v2715, %v2767
        %v2788 = vadd.f32 %v2716, %v2784
        %vm2789 = vcmp.ge.f32.partialorder %v2787, 0.0
        %vm2790 = vcmp.ge.f32.partialorder %v2788, 0.0
        %v2791 = vmul.f32 %v2787, 0.2
        %v2792 = vmul.f32 %v2788, 0.2
        %v2793 = vsel %vm2789, %v2787, %v2791
        %v2794 = vsel %vm2790, %v2788, %v2792
        %v2797 = vcombine.high %v2793, %v2793
        %v2799 = vunpack.c.l.s4 1983009808
        %v2800 = vunpack.c.0.s8 %v2799
        %v2801 = vlaneseq
        %v2802 = vshrl.u32 %v2801, 7
        %v2803 = vsub.s32 %v2800, %v2802
        %v2804 = vrot.slane %v2793, %v2803
        %v2806 = vunpack.c.l.s4 1983009808
        %v2807 = vunpack.c.0.s8 %v2806
        %v2808 = vlaneseq
        %v2809 = vshrl.u32 %v2808, 7
        %v2810 = vsub.s32 %v2807, %v2809
        %v2811 = vrot.slane %v2797, %v2810
        %v2812 = vcombine.high %v2804, %v2804
        %v2813 = vcombine.high %v2811, %v2811
        %v2814 = vcombine.high %v2794, %v2794
        %v2816 = vunpack.c.l.s4 1983009808
        %v2817 = vunpack.c.0.s8 %v2816
        %v2818 = vlaneseq
        %v2819 = vshrl.u32 %v2818, 7
        %v2820 = vsub.s32 %v2817, %v2819
        %v2821 = vrot.slane %v2794, %v2820
        %v2823 = vunpack.c.l.s4 1983009808
        %v2824 = vunpack.c.0.s8 %v2823
        %v2825 = vlaneseq
        %v2826 = vshrl.u32 %v2825, 7
        %v2827 = vsub.s32 %v2824, %v2826
        %v2828 = vrot.slane %v2814, %v2827
        %v2829 = vcombine.high %v2821, %v2821
        %v2830 = vcombine.high %v2828, %v2828
        %v2839 = vpack.c.bf16 %v2804, %v2804
        %v2840 = vpack.c.bf16 %v2812, %v2812
        %v2841 = vpack.c.bf16 %v2811, %v2811
        %v2842 = vpack.c.bf16 %v2813, %v2813
        %v2843 = vpack.c.bf16 %v2821, %v2821
        %v2844 = vpack.c.bf16 %v2829, %v2829
        %v2845 = vpack.c.bf16 %v2828, %v2828
        %v2846 = vpack.c.bf16 %v2830, %v2830
        %v2847 = vld [vmem:[%s5] sm:$0xf]
        %v2848 = vld [vmem:[%s5 + $0x4] sm:$0xf]
        %v2849 = vld [vmem:[%s5 + $0x8] sm:$0xf]
        %v2850 = vld [vmem:[%s5 + $0xc] sm:$0xf]
        %v2851 = vld [vmem:[%s5 + $0x10] sm:$0xf]
        %v2852 = vld [vmem:[%s5 + $0x14] sm:$0xf]
        %v2853 = vld [vmem:[%s5 + $0x18] sm:$0xf]
        %v2854 = vld [vmem:[%s5 + $0x1c] sm:$0xf]
        %v2855 = vld [vmem:[%s5 + $0x20] sm:$0xf]
        %v2856 = vld [vmem:[%s5 + $0x24] sm:$0xf]
        %v2857 = vld [vmem:[%s5 + $0x28] sm:$0xf]
        %v2858 = vld [vmem:[%s5 + $0x2c] sm:$0xf]
        %v2859 = vld [vmem:[%s5 + $0x30] sm:$0xf]
        %v2860 = vld [vmem:[%s5 + $0x34] sm:$0xf]
        %v2861 = vld [vmem:[%s5 + $0x38] sm:$0xf]
        %v2862 = vld [vmem:[%s5 + $0x3c] sm:$0xf]
        %v2863 = vld [vmem:[%s5 + $0x40] sm:$0xf]
        %v2864 = vld [vmem:[%s5 + $0x44] sm:$0xf]
        %v2865 = vld [vmem:[%s5 + $0x48] sm:$0xf]
        %v2866 = vld [vmem:[%s5 + $0x4c] sm:$0xf]
        %v2867 = vld [vmem:[%s5 + $0x50] sm:$0xf]
        %v2868 = vld [vmem:[%s5 + $0x54] sm:$0xf]
        %v2869 = vld [vmem:[%s5 + $0x58] sm:$0xf]
        %v2870 = vld [vmem:[%s5 + $0x5c] sm:$0xf]
        %v2871 = vld [vmem:[%s5 + $0x60] sm:$0xf]
        %v2872 = vld [vmem:[%s5 + $0x64] sm:$0xf]
        %v2873 = vld [vmem:[%s5 + $0x68] sm:$0xf]
        %v2874 = vld [vmem:[%s5 + $0x6c] sm:$0xf]
        %v2875 = vld [vmem:[%s5 + $0x70] sm:$0xf]
        %v2876 = vld [vmem:[%s5 + $0x74] sm:$0xf]
        %v2877 = vld [vmem:[%s5 + $0x78] sm:$0xf]
        %v2878 = vld [vmem:[%s5 + $0x7c] sm:$0xf]
        %v2879 = vld [vmem:[%s5 + $0x80] sm:$0xf]
        %v2880 = vld [vmem:[%s5 + $0x84] sm:$0xf]
        %v2881 = vld [vmem:[%s5 + $0x88] sm:$0xf]
        %v2882 = vld [vmem:[%s5 + $0x8c] sm:$0xf]
        %v2883 = vld [vmem:[%s5 + $0x90] sm:$0xf]
        %v2884 = vld [vmem:[%s5 + $0x94] sm:$0xf]
        %v2885 = vld [vmem:[%s5 + $0x98] sm:$0xf]
        %v2886 = vld [vmem:[%s5 + $0x9c] sm:$0xf]
        %v2887 = vld [vmem:[%s5 + $0xa0] sm:$0xf]
        %v2888 = vld [vmem:[%s5 + $0xa4] sm:$0xf]
        %v2889 = vld [vmem:[%s5 + $0xa8] sm:$0xf]
        %v2890 = vld [vmem:[%s5 + $0xac] sm:$0xf]
        %v2891 = vld [vmem:[%s5 + $0xb0] sm:$0xf]
        %v2892 = vld [vmem:[%s5 + $0xb4] sm:$0xf]
        %v2893 = vld [vmem:[%s5 + $0xb8] sm:$0xf]
        %v2894 = vld [vmem:[%s5 + $0xbc] sm:$0xf]
        %v2895 = vld [vmem:[%s5 + $0xc0] sm:$0xf]
        %v2896 = vld [vmem:[%s5 + $0xc4] sm:$0xf]
        %v2897 = vld [vmem:[%s5 + $0xc8] sm:$0xf]
        %v2898 = vld [vmem:[%s5 + $0xcc] sm:$0xf]
        %v2899 = vld [vmem:[%s5 + $0xd0] sm:$0xf]
        %v2900 = vld [vmem:[%s5 + $0xd4] sm:$0xf]
        %v2901 = vld [vmem:[%s5 + $0xd8] sm:$0xf]
        %v2902 = vld [vmem:[%s5 + $0xdc] sm:$0xf]
        %v2903 = vld [vmem:[%s5 + $0xe0] sm:$0xf]
        %v2904 = vld [vmem:[%s5 + $0xe4] sm:$0xf]
        %v2905 = vld [vmem:[%s5 + $0xe8] sm:$0xf]
        %v2906 = vld [vmem:[%s5 + $0xec] sm:$0xf]
        %v2907 = vld [vmem:[%s5 + $0xf0] sm:$0xf]
        %v2908 = vld [vmem:[%s5 + $0xf4] sm:$0xf]
        %v2909 = vld [vmem:[%s5 + $0xf8] sm:$0xf]
        %v2910 = vld [vmem:[%s5 + $0xfc] sm:$0xf]
        %v2911 = vld [vmem:[%s5 + $0x100] sm:$0xf]
        %v2912 = vld [vmem:[%s5 + $0x104] sm:$0xf]
        %v2913 = vld [vmem:[%s5 + $0x108] sm:$0xf]
        %v2914 = vld [vmem:[%s5 + $0x10c] sm:$0xf]
        %v2915 = vld [vmem:[%s5 + $0x110] sm:$0xf]
        %v2916 = vld [vmem:[%s5 + $0x114] sm:$0xf]
        %v2917 = vld [vmem:[%s5 + $0x118] sm:$0xf]
        %v2918 = vld [vmem:[%s5 + $0x11c] sm:$0xf]
        %v2919 = vld [vmem:[%s5 + $0x120] sm:$0xf]
        %v2920 = vld [vmem:[%s5 + $0x124] sm:$0xf]
        %v2921 = vld [vmem:[%s5 + $0x128] sm:$0xf]
        %v2922 = vld [vmem:[%s5 + $0x12c] sm:$0xf]
        %v2923 = vld [vmem:[%s5 + $0x130] sm:$0xf]
        %v2924 = vld [vmem:[%s5 + $0x134] sm:$0xf]
        %v2925 = vld [vmem:[%s5 + $0x138] sm:$0xf]
        %v2926 = vld [vmem:[%s5 + $0x13c] sm:$0xf]
        %v2927 = vld [vmem:[%s5 + $0x140] sm:$0xf]
        %v2928 = vld [vmem:[%s5 + $0x144] sm:$0xf]
        %v2929 = vld [vmem:[%s5 + $0x148] sm:$0xf]
        %v2930 = vld [vmem:[%s5 + $0x14c] sm:$0xf]
        %v2931 = vld [vmem:[%s5 + $0x150] sm:$0xf]
        %v2932 = vld [vmem:[%s5 + $0x154] sm:$0xf]
        %v2933 = vld [vmem:[%s5 + $0x158] sm:$0xf]
        %v2934 = vld [vmem:[%s5 + $0x15c] sm:$0xf]
        %v2935 = vld [vmem:[%s5 + $0x160] sm:$0xf]
        %v2936 = vld [vmem:[%s5 + $0x164] sm:$0xf]
        %v2937 = vld [vmem:[%s5 + $0x168] sm:$0xf]
        %v2938 = vld [vmem:[%s5 + $0x16c] sm:$0xf]
        %v2939 = vld [vmem:[%s5 + $0x170] sm:$0xf]
        %v2940 = vld [vmem:[%s5 + $0x174] sm:$0xf]
        %v2941 = vld [vmem:[%s5 + $0x178] sm:$0xf]
        %v2942 = vld [vmem:[%s5 + $0x17c] sm:$0xf]
        %v2943 = vld [vmem:[%s5 + $0x180] sm:$0xf]
        %v2944 = vld [vmem:[%s5 + $0x184] sm:$0xf]
        %v2945 = vld [vmem:[%s5 + $0x188] sm:$0xf]
        %v2946 = vld [vmem:[%s5 + $0x18c] sm:$0xf]
        %v2947 = vld [vmem:[%s5 + $0x190] sm:$0xf]
        %v2948 = vld [vmem:[%s5 + $0x194] sm:$0xf]
        %v2949 = vld [vmem:[%s5 + $0x198] sm:$0xf]
        %v2950 = vld [vmem:[%s5 + $0x19c] sm:$0xf]
        %v2951 = vld [vmem:[%s5 + $0x1a0] sm:$0xf]
        %v2952 = vld [vmem:[%s5 + $0x1a4] sm:$0xf]
        %v2953 = vld [vmem:[%s5 + $0x1a8] sm:$0xf]
        %v2954 = vld [vmem:[%s5 + $0x1ac] sm:$0xf]
        %v2955 = vld [vmem:[%s5 + $0x1b0] sm:$0xf]
        %v2956 = vld [vmem:[%s5 + $0x1b4] sm:$0xf]
        %v2957 = vld [vmem:[%s5 + $0x1b8] sm:$0xf]
        %v2958 = vld [vmem:[%s5 + $0x1bc] sm:$0xf]
        %v2959 = vld [vmem:[%s5 + $0x1c0] sm:$0xf]
        %v2960 = vld [vmem:[%s5 + $0x1c4] sm:$0xf]
        %v2961 = vld [vmem:[%s5 + $0x1c8] sm:$0xf]
        %v2962 = vld [vmem:[%s5 + $0x1cc] sm:$0xf]
        %v2963 = vld [vmem:[%s5 + $0x1d0] sm:$0xf]
        %v2964 = vld [vmem:[%s5 + $0x1d4] sm:$0xf]
        %v2965 = vld [vmem:[%s5 + $0x1d8] sm:$0xf]
        %v2966 = vld [vmem:[%s5 + $0x1dc] sm:$0xf]
        %v2967 = vld [vmem:[%s5 + $0x1e0] sm:$0xf]
        %v2968 = vld [vmem:[%s5 + $0x1e4] sm:$0xf]
        %v2969 = vld [vmem:[%s5 + $0x1e8] sm:$0xf]
        %v2970 = vld [vmem:[%s5 + $0x1ec] sm:$0xf]
        %v2971 = vld [vmem:[%s5 + $0x1f0] sm:$0xf]
        %v2972 = vld [vmem:[%s5 + $0x1f4] sm:$0xf]
        %v2973 = vld [vmem:[%s5 + $0x1f8] sm:$0xf]
        %v2974 = vld [vmem:[%s5 + $0x1fc] sm:$0xf]
        %v2975 = vld [vmem:[%s6] sm:$0x1]
        %v2977 = vlaneseq
        %v2978 = vshrl.u32 %v2977, 7
        %v2979 = vsub.s32 0, %v2978
        %v2980 = vrot.slane %v2975, %v2979
        %v3110 = vunpack.c.l.b16 %v2847
        %v3111 = vunpack.c.l.b16 %v2848
        %v3112 = vunpack.c.l.b16 %v2849
        %v3113 = vunpack.c.l.b16 %v2850
        %v3114 = vunpack.c.l.b16 %v2851
        %v3115 = vunpack.c.l.b16 %v2852
        %v3116 = vunpack.c.l.b16 %v2853
        %v3117 = vunpack.c.l.b16 %v2854
        %v3118 = vunpack.c.l.b16 %v2855
        %v3119 = vunpack.c.l.b16 %v2856
        %v3120 = vunpack.c.l.b16 %v2857
        %v3121 = vunpack.c.l.b16 %v2858
        %v3122 = vunpack.c.l.b16 %v2859
        %v3123 = vunpack.c.l.b16 %v2860
        %v3124 = vunpack.c.l.b16 %v2861
        %v3125 = vunpack.c.l.b16 %v2862
        %v3126 = vunpack.c.l.b16 %v2863
        %v3127 = vunpack.c.l.b16 %v2864
        %v3128 = vunpack.c.l.b16 %v2865
        %v3129 = vunpack.c.l.b16 %v2866
        %v3130 = vunpack.c.l.b16 %v2867
        %v3131 = vunpack.c.l.b16 %v2868
        %v3132 = vunpack.c.l.b16 %v2869
        %v3133 = vunpack.c.l.b16 %v2870
        %v3134 = vunpack.c.l.b16 %v2871
        %v3135 = vunpack.c.l.b16 %v2872
        %v3136 = vunpack.c.l.b16 %v2873
        %v3137 = vunpack.c.l.b16 %v2874
        %v3138 = vunpack.c.l.b16 %v2875
        %v3139 = vunpack.c.l.b16 %v2876
        %v3140 = vunpack.c.l.b16 %v2877
        %v3141 = vunpack.c.l.b16 %v2878
        %v3142 = vunpack.c.l.b16 %v2879
        %v3143 = vunpack.c.l.b16 %v2880
        %v3144 = vunpack.c.l.b16 %v2881
        %v3145 = vunpack.c.l.b16 %v2882
        %v3146 = vunpack.c.l.b16 %v2883
        %v3147 = vunpack.c.l.b16 %v2884
        %v3148 = vunpack.c.l.b16 %v2885
        %v3149 = vunpack.c.l.b16 %v2886
        %v3150 = vunpack.c.l.b16 %v2887
        %v3151 = vunpack.c.l.b16 %v2888
        %v3152 = vunpack.c.l.b16 %v2889
        %v3153 = vunpack.c.l.b16 %v2890
        %v3154 = vunpack.c.l.b16 %v2891
        %v3155 = vunpack.c.l.b16 %v2892
        %v3156 = vunpack.c.l.b16 %v2893
        %v3157 = vunpack.c.l.b16 %v2894
        %v3158 = vunpack.c.l.b16 %v2895
        %v3159 = vunpack.c.l.b16 %v2896
        %v3160 = vunpack.c.l.b16 %v2897
        %v3161 = vunpack.c.l.b16 %v2898
        %v3162 = vunpack.c.l.b16 %v2899
        %v3163 = vunpack.c.l.b16 %v2900
        %v3164 = vunpack.c.l.b16 %v2901
        %v3165 = vunpack.c.l.b16 %v2902
        %v3166 = vunpack.c.l.b16 %v2903
        %v3167 = vunpack.c.l.b16 %v2904
        %v3168 = vunpack.c.l.b16 %v2905
        %v3169 = vunpack.c.l.b16 %v2906
        %v3170 = vunpack.c.l.b16 %v2907
        %v3171 = vunpack.c.l.b16 %v2908
        %v3172 = vunpack.c.l.b16 %v2909
        %v3173 = vunpack.c.l.b16 %v2910
        %v3174 = vunpack.c.l.b16 %v2911
        %v3175 = vunpack.c.l.b16 %v2912
        %v3176 = vunpack.c.l.b16 %v2913
        %v3177 = vunpack.c.l.b16 %v2914
        %v3178 = vunpack.c.l.b16 %v2915
        %v3179 = vunpack.c.l.b16 %v2916
        %v3180 = vunpack.c.l.b16 %v2917
        %v3181 = vunpack.c.l.b16 %v2918
        %v3182 = vunpack.c.l.b16 %v2919
        %v3183 = vunpack.c.l.b16 %v2920
        %v3184 = vunpack.c.l.b16 %v2921
        %v3185 = vunpack.c.l.b16 %v2922
        %v3186 = vunpack.c.l.b16 %v2923
        %v3187 = vunpack.c.l.b16 %v2924
        %v3188 = vunpack.c.l.b16 %v2925
        %v3189 = vunpack.c.l.b16 %v2926
        %v3190 = vunpack.c.l.b16 %v2927
        %v3191 = vunpack.c.l.b16 %v2928
        %v3192 = vunpack.c.l.b16 %v2929
        %v3193 = vunpack.c.l.b16 %v2930
        %v3194 = vunpack.c.l.b16 %v2931
        %v3195 = vunpack.c.l.b16 %v2932
        %v3196 = vunpack.c.l.b16 %v2933
        %v3197 = vunpack.c.l.b16 %v2934
        %v3198 = vunpack.c.l.b16 %v2935
        %v3199 = vunpack.c.l.b16 %v2936
        %v3200 = vunpack.c.l.b16 %v2937
        %v3201 = vunpack.c.l.b16 %v2938
        %v3202 = vunpack.c.l.b16 %v2939
        %v3203 = vunpack.c.l.b16 %v2940
        %v3204 = vunpack.c.l.b16 %v2941
        %v3205 = vunpack.c.l.b16 %v2942
        %v3206 = vunpack.c.l.b16 %v2943
        %v3207 = vunpack.c.l.b16 %v2944
        %v3208 = vunpack.c.l.b16 %v2945
        %v3209 = vunpack.c.l.b16 %v2946
        %v3210 = vunpack.c.l.b16 %v2947
        %v3211 = vunpack.c.l.b16 %v2948
        %v3212 = vunpack.c.l.b16 %v2949
        %v3213 = vunpack.c.l.b16 %v2950
        %v3214 = vunpack.c.l.b16 %v2951
        %v3215 = vunpack.c.l.b16 %v2952
        %v3216 = vunpack.c.l.b16 %v2953
        %v3217 = vunpack.c.l.b16 %v2954
        %v3218 = vunpack.c.l.b16 %v2955
        %v3219 = vunpack.c.l.b16 %v2956
        %v3220 = vunpack.c.l.b16 %v2957
        %v3221 = vunpack.c.l.b16 %v2958
        %v3222 = vunpack.c.l.b16 %v2959
        %v3223 = vunpack.c.l.b16 %v2960
        %v3224 = vunpack.c.l.b16 %v2961
        %v3225 = vunpack.c.l.b16 %v2962
        %v3226 = vunpack.c.l.b16 %v2963
        %v3227 = vunpack.c.l.b16 %v2964
        %v3228 = vunpack.c.l.b16 %v2965
        %v3229 = vunpack.c.l.b16 %v2966
        %v3230 = vunpack.c.l.b16 %v2967
        %v3231 = vunpack.c.l.b16 %v2968
        %v3232 = vunpack.c.l.b16 %v2969
        %v3233 = vunpack.c.l.b16 %v2970
        %v3234 = vunpack.c.l.b16 %v2971
        %v3235 = vunpack.c.l.b16 %v2972
        %v3236 = vunpack.c.l.b16 %v2973
        %v3237 = vunpack.c.l.b16 %v2974
        %v3238 = vpack.c.b16 %v3111, %v3110
        %v3239 = vpack.c.b16 %v3113, %v3112
        %v3240 = vpack.c.b16 %v3115, %v3114
        %v3241 = vpack.c.b16 %v3117, %v3116
        %v3242 = vpack.c.b16 %v3119, %v3118
        %v3243 = vpack.c.b16 %v3121, %v3120
        %v3244 = vpack.c.b16 %v3123, %v3122
        %v3245 = vpack.c.b16 %v3125, %v3124
        %v3246 = vpack.c.b16 %v3127, %v3126
        %v3247 = vpack.c.b16 %v3129, %v3128
        %v3248 = vpack.c.b16 %v3131, %v3130
        %v3249 = vpack.c.b16 %v3133, %v3132
        %v3250 = vpack.c.b16 %v3135, %v3134
        %v3251 = vpack.c.b16 %v3137, %v3136
        %v3252 = vpack.c.b16 %v3139, %v3138
        %v3253 = vpack.c.b16 %v3141, %v3140
        %v3254 = vpack.c.b16 %v3143, %v3142
        %v3255 = vpack.c.b16 %v3145, %v3144
        %v3256 = vpack.c.b16 %v3147, %v3146
        %v3257 = vpack.c.b16 %v3149, %v3148
        %v3258 = vpack.c.b16 %v3151, %v3150
        %v3259 = vpack.c.b16 %v3153, %v3152
        %v3260 = vpack.c.b16 %v3155, %v3154
        %v3261 = vpack.c.b16 %v3157, %v3156
        %v3262 = vpack.c.b16 %v3159, %v3158
        %v3263 = vpack.c.b16 %v3161, %v3160
        %v3264 = vpack.c.b16 %v3163, %v3162
        %v3265 = vpack.c.b16 %v3165, %v3164
        %v3266 = vpack.c.b16 %v3167, %v3166
        %v3267 = vpack.c.b16 %v3169, %v3168
        %v3268 = vpack.c.b16 %v3171, %v3170
        %v3269 = vpack.c.b16 %v3173, %v3172
        %v3270 = vpack.c.b16 %v3175, %v3174
        %v3271 = vpack.c.b16 %v3177, %v3176
        %v3272 = vpack.c.b16 %v3179, %v3178
        %v3273 = vpack.c.b16 %v3181, %v3180
        %v3274 = vpack.c.b16 %v3183, %v3182
        %v3275 = vpack.c.b16 %v3185, %v3184
        %v3276 = vpack.c.b16 %v3187, %v3186
        %v3277 = vpack.c.b16 %v3189, %v3188
        %v3278 = vpack.c.b16 %v3191, %v3190
        %v3279 = vpack.c.b16 %v3193, %v3192
        %v3280 = vpack.c.b16 %v3195, %v3194
        %v3281 = vpack.c.b16 %v3197, %v3196
        %v3282 = vpack.c.b16 %v3199, %v3198
        %v3283 = vpack.c.b16 %v3201, %v3200
        %v3284 = vpack.c.b16 %v3203, %v3202
        %v3285 = vpack.c.b16 %v3205, %v3204
        %v3286 = vpack.c.b16 %v3207, %v3206
        %v3287 = vpack.c.b16 %v3209, %v3208
        %v3288 = vpack.c.b16 %v3211, %v3210
        %v3289 = vpack.c.b16 %v3213, %v3212
        %v3290 = vpack.c.b16 %v3215, %v3214
        %v3291 = vpack.c.b16 %v3217, %v3216
        %v3292 = vpack.c.b16 %v3219, %v3218
        %v3293 = vpack.c.b16 %v3221, %v3220
        %v3294 = vpack.c.b16 %v3223, %v3222
        %v3295 = vpack.c.b16 %v3225, %v3224
        %v3296 = vpack.c.b16 %v3227, %v3226
        %v3297 = vpack.c.b16 %v3229, %v3228
        %v3298 = vpack.c.b16 %v3231, %v3230
        %v3299 = vpack.c.b16 %v3233, %v3232
        %v3300 = vpack.c.b16 %v3235, %v3234
        %v3301 = vpack.c.b16 %v3237, %v3236
        %3366 = vmatprep.subr.bf16.mxu0 0
        %3367 = vmatpush1.bf16.msra.mxu0 %v3245
        %3368 = vmatprep.subr.bf16.mxu0 0
        %3369 = vmatpush1.bf16.msra.mxu0 %v3244
        %3370 = vmatprep.subr.bf16.mxu0 0
        %3371 = vmatpush1.bf16.msra.mxu0 %v3243
        %3372 = vmatprep.subr.bf16.mxu0 0
        %3373 = vmatpush1.bf16.msra.mxu0 %v3242
        %3374 = vmatprep.subr.bf16.mxu0 0
        %3375 = vmatpush1.bf16.msra.mxu0 %v3241
        %3376 = vmatprep.subr.bf16.mxu0 0
        %3377 = vmatpush1.bf16.msra.mxu0 %v3240
        %3378 = vmatprep.subr.bf16.mxu0 0
        %3379 = vmatpush1.bf16.msra.mxu0 %v3239
        %3380 = vmatprep.subr.bf16.mxu0 0
        %3381 = vmatpush1.bf16.msra.mxu0 %v3238
        %3382 = vmatprep.subr.bf16.mxu0 0
        %3383 = vmatpush2.bf16.msra.mxu0 %v3253
        %3384 = vmatprep.subr.bf16.mxu0 0
        %3385 = vmatpush2.bf16.msra.mxu0 %v3252
        %3386 = vmatprep.subr.bf16.mxu0 0
        %3387 = vmatpush2.bf16.msra.mxu0 %v3251
        %3388 = vmatprep.subr.bf16.mxu0 0
        %3389 = vmatpush2.bf16.msra.mxu0 %v3250
        %3390 = vmatprep.subr.bf16.mxu0 0
        %3391 = vmatpush2.bf16.msra.mxu0 %v3249
        %3392 = vmatprep.subr.bf16.mxu0 0
        %3393 = vmatpush2.bf16.msra.mxu0 %v3248
        %3394 = vmatprep.subr.bf16.mxu0 0
        %3395 = vmatpush2.bf16.msra.mxu0 %v3247
        %3396 = vmatprep.subr.bf16.mxu0 0
        %3397 = vmatpush2.bf16.msra.mxu0 %v3246
        %3398 = vmatprep.mubr.bf16.mxu0 %v2840
        %3399 = vmatmul.mubr.bf16.gmra.mxu0 %v2839
        %v3400 = vpop.f32.mrf.mxu0
        %v3401 = vadd.f32 %v2980, %v3400
        %v3402 = vpop.f32.mrf.mxu0
        %v3403 = vpop.f32.mrf.mxu0
        %v3404 = vpop.f32.mrf.mxu0
        %3405 = vdwg.mxu0
        %3406 = vmatprep.subr.bf16.mxu0 0
        %3407 = vmatpush1.bf16.msra.mxu0 %v3261
        %3408 = vmatprep.subr.bf16.mxu0 0
        %3409 = vmatpush1.bf16.msra.mxu0 %v3260
        %3410 = vmatprep.subr.bf16.mxu0 0
        %3411 = vmatpush1.bf16.msra.mxu0 %v3259
        %3412 = vmatprep.subr.bf16.mxu0 0
        %3413 = vmatpush1.bf16.msra.mxu0 %v3258
        %3414 = vmatprep.subr.bf16.mxu0 0
        %3415 = vmatpush1.bf16.msra.mxu0 %v3257
        %3416 = vmatprep.subr.bf16.mxu0 0
        %3417 = vmatpush1.bf16.msra.mxu0 %v3256
        %3418 = vmatprep.subr.bf16.mxu0 0
        %3419 = vmatpush1.bf16.msra.mxu0 %v3255
        %3420 = vmatprep.subr.bf16.mxu0 0
        %3421 = vmatpush1.bf16.msra.mxu0 %v3254
        %3422 = vmatprep.subr.bf16.mxu0 0
        %3423 = vmatpush2.bf16.msra.mxu0 %v3269
        %3424 = vmatprep.subr.bf16.mxu0 0
        %3425 = vmatpush2.bf16.msra.mxu0 %v3268
        %3426 = vmatprep.subr.bf16.mxu0 0
        %3427 = vmatpush2.bf16.msra.mxu0 %v3267
        %3428 = vmatprep.subr.bf16.mxu0 0
        %3429 = vmatpush2.bf16.msra.mxu0 %v3266
        %3430 = vmatprep.subr.bf16.mxu0 0
        %3431 = vmatpush2.bf16.msra.mxu0 %v3265
        %3432 = vmatprep.subr.bf16.mxu0 0
        %3433 = vmatpush2.bf16.msra.mxu0 %v3264
        %3434 = vmatprep.subr.bf16.mxu0 0
        %3435 = vmatpush2.bf16.msra.mxu0 %v3263
        %3436 = vmatprep.subr.bf16.mxu0 0
        %3437 = vmatpush2.bf16.msra.mxu0 %v3262
        %3438 = vmatprep.mubr.bf16.mxu0 %v2842
        %3439 = vmatmul.mubr.bf16.gmra.mxu0 %v2841
        %v3440 = vpop.f32.mrf.mxu0
        %v3441 = vadd.f32 %v3401, %v3440
        %v3442 = vpop.f32.mrf.mxu0
        %v3443 = vpop.f32.mrf.mxu0
        %v3444 = vpop.f32.mrf.mxu0
        %3445 = vdwg.mxu0
        %3446 = vmatprep.subr.bf16.mxu0 0
        %3447 = vmatpush1.bf16.msra.mxu0 %v3277
        %3448 = vmatprep.subr.bf16.mxu0 0
        %3449 = vmatpush1.bf16.msra.mxu0 %v3276
        %3450 = vmatprep.subr.bf16.mxu0 0
        %3451 = vmatpush1.bf16.msra.mxu0 %v3275
        %3452 = vmatprep.subr.bf16.mxu0 0
        %3453 = vmatpush1.bf16.msra.mxu0 %v3274
        %3454 = vmatprep.subr.bf16.mxu0 0
        %3455 = vmatpush1.bf16.msra.mxu0 %v3273
        %3456 = vmatprep.subr.bf16.mxu0 0
        %3457 = vmatpush1.bf16.msra.mxu0 %v3272
        %3458 = vmatprep.subr.bf16.mxu0 0
        %3459 = vmatpush1.bf16.msra.mxu0 %v3271
        %3460 = vmatprep.subr.bf16.mxu0 0
        %3461 = vmatpush1.bf16.msra.mxu0 %v3270
        %3462 = vmatprep.subr.bf16.mxu0 0
        %3463 = vmatpush2.bf16.msra.mxu0 %v3285
        %3464 = vmatprep.subr.bf16.mxu0 0
        %3465 = vmatpush2.bf16.msra.mxu0 %v3284
        %3466 = vmatprep.subr.bf16.mxu0 0
        %3467 = vmatpush2.bf16.msra.mxu0 %v3283
        %3468 = vmatprep.subr.bf16.mxu0 0
        %3469 = vmatpush2.bf16.msra.mxu0 %v3282
        %3470 = vmatprep.subr.bf16.mxu0 0
        %3471 = vmatpush2.bf16.msra.mxu0 %v3281
        %3472 = vmatprep.subr.bf16.mxu0 0
        %3473 = vmatpush2.bf16.msra.mxu0 %v3280
        %3474 = vmatprep.subr.bf16.mxu0 0
        %3475 = vmatpush2.bf16.msra.mxu0 %v3279
        %3476 = vmatprep.subr.bf16.mxu0 0
        %3477 = vmatpush2.bf16.msra.mxu0 %v3278
        %3478 = vmatprep.mubr.bf16.mxu0 %v2844
        %3479 = vmatmul.mubr.bf16.gmra.mxu0 %v2843
        %v3480 = vpop.f32.mrf.mxu0
        %v3481 = vadd.f32 %v3441, %v3480
        %v3482 = vpop.f32.mrf.mxu0
        %v3483 = vpop.f32.mrf.mxu0
        %v3484 = vpop.f32.mrf.mxu0
        %3485 = vdwg.mxu0
        %3486 = vmatprep.subr.bf16.mxu0 0
        %3487 = vmatpush1.bf16.msra.mxu0 %v3293
        %3488 = vmatprep.subr.bf16.mxu0 0
        %3489 = vmatpush1.bf16.msra.mxu0 %v3292
        %3490 = vmatprep.subr.bf16.mxu0 0
        %3491 = vmatpush1.bf16.msra.mxu0 %v3291
        %3492 = vmatprep.subr.bf16.mxu0 0
        %3493 = vmatpush1.bf16.msra.mxu0 %v3290
        %3494 = vmatprep.subr.bf16.mxu0 0
        %3495 = vmatpush1.bf16.msra.mxu0 %v3289
        %3496 = vmatprep.subr.bf16.mxu0 0
        %3497 = vmatpush1.bf16.msra.mxu0 %v3288
        %3498 = vmatprep.subr.bf16.mxu0 0
        %3499 = vmatpush1.bf16.msra.mxu0 %v3287
        %3500 = vmatprep.subr.bf16.mxu0 0
        %3501 = vmatpush1.bf16.msra.mxu0 %v3286
        %3502 = vmatprep.subr.bf16.mxu0 0
        %3503 = vmatpush2.bf16.msra.mxu0 %v3301
        %3504 = vmatprep.subr.bf16.mxu0 0
        %3505 = vmatpush2.bf16.msra.mxu0 %v3300
        %3506 = vmatprep.subr.bf16.mxu0 0
        %3507 = vmatpush2.bf16.msra.mxu0 %v3299
        %3508 = vmatprep.subr.bf16.mxu0 0
        %3509 = vmatpush2.bf16.msra.mxu0 %v3298
        %3510 = vmatprep.subr.bf16.mxu0 0
        %3511 = vmatpush2.bf16.msra.mxu0 %v3297
        %3512 = vmatprep.subr.bf16.mxu0 0
        %3513 = vmatpush2.bf16.msra.mxu0 %v3296
        %3514 = vmatprep.subr.bf16.mxu0 0
        %3515 = vmatpush2.bf16.msra.mxu0 %v3295
        %3516 = vmatprep.subr.bf16.mxu0 0
        %3517 = vmatpush2.bf16.msra.mxu0 %v3294
        %3518 = vmatprep.mubr.bf16.mxu0 %v2846
        %3519 = vmatmul.mubr.bf16.gmra.mxu0 %v2845
        %v3520 = vpop.f32.mrf.mxu0
        %v3521 = vadd.f32 %v3481, %v3520
        %v3522 = vpop.f32.mrf.mxu0
        %v3523 = vpop.f32.mrf.mxu0
        %v3524 = vpop.f32.mrf.mxu0
        %3525 = vdwg.mxu0
        %v3526 = vsub.f32 0.0, %v3521
        %v3527 = vmul.f32 %v3526, 1.442695
        %v3528 = vpow.pop %v3527
        %v3529 = vadd.f32 %v3528, 1.0
        %v3530 = vrcp.pop %v3529
        %v3531 = vmax.f32 %v3530, 0.0
        %v3532 = vmin.f32 %v3531, 1.0
        %3533 = vst [vmem:[%s7] sm:$0x3] %v3532
      $region56: #{discriminator_forward.7} parent=47 // pred_fallthru
        _
      // Predicated region
      $region57: #{discriminator_forward.7} parent=47 // pred_check
        %p3534 = pneg %p188
      $region58: #{discriminator_forward.7} parent=47 // pred_check_branch
        %3536 = sbr.rel (%p3534) target = $region60
      $region59: #{discriminator_forward.7} parent=47 // pred_region
        _
      $region60: #{discriminator_forward.7} parent=47 // pred_fallthru
        _
      // Predicated region
      $region61: #{discriminator_forward.7} parent=47 // pred_check
        %p3537 = pneg %p188
      $region62: #{discriminator_forward.7} parent=47 // pred_check_branch
        %3539 = sbr.rel (%p3537) target = $region64
      $region63: #{discriminator_forward.7} parent=47 // pred_region
        _
      $region64: #{discriminator_forward.7} parent=47 // pred_fallthru
        _
    $region48: #{discriminator_forward.7} parent=5 // pred_fallthru
      _
    %p3540 = scmp.le.s32.totalorder 2, %s13
    // Predicated region
    $region65: #{discriminator_forward.7} parent=5 // pred_check
      %p3541 = pneg %p3540
    $region66: #{discriminator_forward.7} parent=5 // pred_check_branch
      %3543 = sbr.rel (%p3541) target = $region68
    $region67: #{discriminator_forward.7} parent=5 // pred_region
      %s3544 = ssub.s32 %s13, 2
    $region68: #{discriminator_forward.7} parent=5 // pred_fallthru
      _
  $region6: #{discriminator_forward.7} parent=0 // loop_footer
    %s17 = sadd.s32 1, %s13
  $region7: #{discriminator_forward.7} parent=0 // loop_footer_branch
    %12 = sbr.rel target = $region3
  $region8: #{discriminator_forward.7} parent=0 // loop_exit
    _

</llo_original>
